<compile_context>
chip_gen: v5e
topology: v5e:2x2
jax: 0.10.0
libtpu: 0.0.40
codegen_flags: <defaults>
</compile_context>

<pallas_src>
import jax
import jax.numpy as jnp
from jax import lax
from jax.experimental import pallas as pl
from jax.experimental.pallas import tpu as pltpu

_LANE = 128     # lane width (last-dim alignment)
_SUBLANE = 8    # f32 sublane count (second-to-last-dim alignment)


def _round_up(v, m):
    return (v + m - 1) // m * m


def _num_tensorcores():
    """2 TensorCores per chip on v7x, 1 on v5e/v6e. Conservative fallback = 1."""
    try:
        kind = jax.devices()[0].device_kind.lower()
    except Exception:
        return 1
    return 2 if "v7" in kind else 1


def _bigru_fused_kernel(x_ref, wih_ref, whh_ref, bgi_ref, bhn_ref,
                        out_ref, gi_ref):
    """Fused bidirectional GRU over a (T, Bb, 2*Dp) block -> (T, Bb, 2*Hp).

    Layouts (all 128-lane aligned; Hp = padded hidden, Dp = padded input):
      x_ref  : (T, Bb, 2*Dp) f32,  [:, :, :Dp] = x[t],  [:, :, Dp:] = x[T-1-t]
      wih_ref: (2*Dp, 6*Hp)  bf16, gate cols [r_f r_b | z_f z_b | n_f n_b]
      whh_ref: (2*Hp, 6*Hp)  bf16, block-diagonal (fwd rows -> fwd gate cols)
      bgi_ref: (1, 6*Hp)     f32,  b_ih + b_hh folded for the r,z gates
      bhn_ref: (1, 2*Hp)     f32,  [b_hn_f | b_hn_b]  (stays inside r*(...))
      out_ref: (T, Bb, 2*Hp) f32,  [:, :, :Hp] fwd hidden, [:, :, Hp:] bwd hidden
      gi_ref : (T, Bb, 6*Hp) f32 scratch holding the hoisted input projection.
    """
    T, Bb, D2 = x_ref.shape
    Hp = out_ref.shape[-1] // 2
    H2 = 2 * Hp                   # width of one fused gate block (fwd|bwd)
    G = gi_ref.shape[-1]          # 6 * Hp

    # ---- Hoisted input projection: ONE bf16 MXU matmul for the whole
    # sequence and both directions; only h @ W_hh stays on the serial path.
    # Bb is a multiple of 8, so the reshape is a pure leading-dim collapse.
    # TODO(synk): for long sequences, time-chunk this projection (or keep gi
    # in bf16) so the scratch stays well inside v7x's 64 MiB VMEM.
    x_flat = x_ref[...].reshape(T * Bb, D2).astype(jnp.bfloat16)
    gi_ref[...] = (
        jnp.dot(x_flat, wih_ref[...], preferred_element_type=jnp.float32)
        + bgi_ref[...]
    ).reshape(T, Bb, G)

    # Loop-invariant operands hoisted out of the unrolled recurrence
    # (broadcast hoisted explicitly: JAX does not CSE broadcast_in_dim).
    whh = whh_ref[...]                                   # (2Hp, 6Hp) bf16
    bhn = jnp.broadcast_to(bhn_ref[...], (Bb, H2))       # (Bb, 2Hp)  f32

    def step(s, h):
        # h = [h_f | h_b]: the forward chain walks time s, the backward chain
        # walks time T-1-s (its gi columns were built from the flipped x).
        gi = gi_ref[s]                                   # (Bb, 6Hp) f32
        # One MXU push per step for BOTH directions (block-diagonal W_hh).
        gh = jnp.dot(h.astype(jnp.bfloat16), whh,
                     preferred_element_type=jnp.float32)
        rz = jax.nn.sigmoid(gi[:, :2 * H2] + gh[:, :2 * H2])   # one EUP pass
        r = rz[:, :H2]
        z = rz[:, H2:]
        n = jnp.tanh(gi[:, 2 * H2:] + r * (gh[:, 2 * H2:] + bhn))
        h_new = (1.0 - z) * n + z * h
        # 128-lane-aligned, unmasked stores of each direction's half.
        out_ref[s, :, :Hp] = h_new[:, :Hp]
        out_ref[T - 1 - s, :, Hp:] = h_new[:, Hp:]
        return h_new

    h0 = jnp.zeros((Bb, H2), jnp.float32)
    # T is static and small: fully unroll so the LLO scheduler can overlap the
    # MXU result pop with the VPU/EUP gate math.
    lax.fori_loop(0, T, step, h0, unroll=True)


@jax.jit
def word_encoder_forward(x, params):
    """Bidirectional GRU forward. x: (T, B, D) -> (T, B, 2H) = [fwd | bwd]."""
    T, B, D = x.shape
    H = params["whh_f"].shape[0]

    # Hardware-aligned (padded) sizes: lanes multiple of 128, sublanes of 8.
    Hp = _round_up(H, _LANE)
    Dp = _round_up(D, _LANE)
    Bp = _round_up(B, _SUBLANE)

    # --- Pack fused, gate-permuted, zero-padded parameters. -----------------
    # (In production this packing would be done once, outside the forward.)
    def place_gates(dst, src, row0, col0):
        # src: (rows, 3H) in PyTorch gate order [r | z | n]; scatter each gate
        # block into the fused layout [r_f r_b | z_f z_b | n_f n_b] at column
        # offset col0 (0 = forward half, Hp = backward half).
        rows = src.shape[0]
        for g in range(3):
            dst = dst.at[row0:row0 + rows,
                         g * 2 * Hp + col0: g * 2 * Hp + col0 + H].set(
                             src[:, g * H:(g + 1) * H])
        return dst

    f32, bf16 = jnp.float32, jnp.bfloat16

    wih = jnp.zeros((2 * Dp, 6 * Hp), f32)
    wih = place_gates(wih, params["wih_f"], 0, 0)
    wih = place_gates(wih, params["wih_b"], Dp, Hp)

    whh = jnp.zeros((2 * Hp, 6 * Hp), f32)            # block-diagonal fused W_hh
    whh = place_gates(whh, params["whh_f"], 0, 0)
    whh = place_gates(whh, params["whh_b"], Hp, Hp)

    # gi bias = b_ih + [b_hh_r, b_hh_z, 0]; b_hn stays inside r*(W_hn h + b_hn).
    def fold(bih, bhh):
        return bih + jnp.concatenate(
            [bhh[:, :2 * H], jnp.zeros((1, H), bhh.dtype)], axis=1)

    bgi = jnp.zeros((1, 6 * Hp), f32)
    bgi = place_gates(bgi, fold(params["bih_f"], params["bhh_f"]), 0, 0)
    bgi = place_gates(bgi, fold(params["bih_b"], params["bhh_b"]), 0, Hp)

    bhn = jnp.zeros((1, 2 * Hp), f32)
    bhn = bhn.at[:, :H].set(params["bhh_f"][:, 2 * H:])
    bhn = bhn.at[:, Hp:Hp + H].set(params["bhh_b"][:, 2 * H:])

    # Combined input: [x[t] | x[T-1-t]] so both directions share one hoisted
    # projection and one fused per-step cell (layout plumbing only).
    x_comb = jnp.zeros((T, Bp, 2 * Dp), f32)
    x_comb = x_comb.at[:, :B, :D].set(x)
    x_comb = x_comb.at[:, :B, Dp:Dp + D].set(x[::-1])

    # Batch-parallel grid only when there are 2 TensorCores (v7x) and the
    # padded batch splits into >=8-sublane blocks; on v5e/v6e a grid would
    # just be a serial loop with worse occupancy.
    nb = 2 if (_num_tensorcores() >= 2 and Bp % (2 * _SUBLANE) == 0) else 1
    bb = Bp // nb

    grid_spec = pltpu.PrefetchScalarGridSpec(
        num_scalar_prefetch=0,
        grid=(nb,),
        in_specs=[
            pl.BlockSpec((T, bb, 2 * Dp), lambda b: (0, b, 0)),   # x_comb
            pl.BlockSpec((2 * Dp, 6 * Hp), lambda b: (0, 0)),     # fused W_ih (bf16)
            pl.BlockSpec((2 * Hp, 6 * Hp), lambda b: (0, 0)),     # fused W_hh (bf16)
            pl.BlockSpec((1, 6 * Hp), lambda b: (0, 0)),          # folded gi bias
            pl.BlockSpec((1, 2 * Hp), lambda b: (0, 0)),          # b_hn (fwd|bwd)
        ],
        out_specs=pl.BlockSpec((T, bb, 2 * Hp), lambda b: (0, b, 0)),
        scratch_shapes=[pltpu.VMEM((T, bb, 6 * Hp), jnp.float32)],   # hoisted gi
    )

    out_pad = pl.pallas_call(
        _bigru_fused_kernel,
        out_shape=jax.ShapeDtypeStruct((T, Bp, 2 * Hp), jnp.float32),
        grid_spec=grid_spec,
        compiler_params=pltpu.CompilerParams(
            dimension_semantics=("parallel",),
            vmem_limit_bytes=32 * 1024 * 1024,
        ),
    )(x_comb, wih.astype(bf16), whh.astype(bf16), bgi, bhn)

    # Strip padding and return PyTorch nn.GRU layout: (T, B, [h_fwd | h_bwd]).
    return jnp.concatenate(
        [out_pad[:, :B, :H], out_pad[:, :B, Hp:Hp + H]], axis=-1)


def init_params(key, input_dim, hidden_dim):
    """Deterministic init mirroring nn.GRU parameter shapes (gate order r,z,n).

    Weights are stored already transposed for x @ W use in the kernel.
    """
    bound = 1.0 / jnp.sqrt(jnp.float32(hidden_dim))
    ks = jax.random.split(key, 8)

    def u(k, shape):
        return jax.random.uniform(k, shape, jnp.float32, -bound, bound)

    return {
        # forward direction
        "wih_f": u(ks[0], (input_dim, 3 * hidden_dim)),     # W_ih^T
        "whh_f": u(ks[1], (hidden_dim, 3 * hidden_dim)),    # W_hh^T
        "bih_f": u(ks[2], (1, 3 * hidden_dim)),
        "bhh_f": u(ks[3], (1, 3 * hidden_dim)),
        # backward direction
        "wih_b": u(ks[4], (input_dim, 3 * hidden_dim)),
        "whh_b": u(ks[5], (hidden_dim, 3 * hidden_dim)),
        "bih_b": u(ks[6], (1, 3 * hidden_dim)),
        "bhh_b": u(ks[7], (1, 3 * hidden_dim)),
    }


def _reference_forward(x, params, *, bf16_matmul=False):
    """Pure-JAX reference (same math as PyTorch nn.GRU, bidirectional).

    With bf16_matmul=True, matmul operands are rounded to bf16 first, matching
    the kernel's MXU operand precision (f32 accumulation in both cases).
    """
    H = params["whh_f"].shape[0]

    def mm(a, b):
        if bf16_matmul:
            a = a.astype(jnp.bfloat16).astype(jnp.float32)
            b = b.astype(jnp.bfloat16).astype(jnp.float32)
        return lax.dot(a, b, precision=lax.Precision.HIGHEST)

    def cell(x_t, h, wih, whh, bih, bhh):
        gi = mm(x_t, wih) + bih
        gh = mm(h, whh) + bhh
        r = jax.nn.sigmoid(gi[:, :H] + gh[:, :H])
        z = jax.nn.sigmoid(gi[:, H:2 * H] + gh[:, H:2 * H])
        n = jnp.tanh(gi[:, 2 * H:] + r * gh[:, 2 * H:])
        return (1.0 - z) * n + z * h

    B = x.shape[1]
    h0 = jnp.zeros((B, H), jnp.float32)

    def fwd_step(h, x_t):
        h2 = cell(x_t, h, params["wih_f"], params["whh_f"],
                  params["bih_f"], params["bhh_f"])
        return h2, h2

    def bwd_step(h, x_t):
        h2 = cell(x_t, h, params["wih_b"], params["whh_b"],
                  params["bih_b"], params["bhh_b"])
        return h2, h2

    _, out_f = lax.scan(fwd_step, h0, x)
    _, out_b_rev = lax.scan(bwd_step, h0, x[::-1])
    out_b = out_b_rev[::-1]
    return jnp.concatenate([out_f, out_b], axis=-1)


if __name__ == "__main__":
    # Small shapes consistent with WordEncoder: seq=8, batch=4, input_dim=32, hidden_dim=32
    T, B, D, H = 8, 4, 32, 32

    key = jax.random.PRNGKey(0)
    k_x, k_p = jax.random.split(key)
    x = jax.random.normal(k_x, (T, B, D), jnp.float32)
    params = init_params(k_p, D, H)

    out = jax.block_until_ready(word_encoder_forward(x, params))
    assert out.shape == (T, B, 2 * H), out.shape

    # Tight check vs. a reference with matching (bf16) matmul-operand precision.
    ref_bf16 = jax.block_until_ready(
        _reference_forward(x, params, bf16_matmul=True))
    assert jnp.allclose(out, ref_bf16, atol=2e-3, rtol=2e-3), \
        "mismatch vs. bf16-operand reference"

    # Loose check vs. the full-f32 reference (bf16 MXU operands in the kernel).
    ref_f32 = jax.block_until_ready(_reference_forward(x, params))
    assert jnp.allclose(out, ref_f32, atol=6e-2, rtol=6e-2), \
        "mismatch vs. f32 reference"

    print("KERNEL_OK")
</pallas_src>

<mosaic_0001>
module attributes {stable_mosaic.version = 11 : i64} {
  func.func @_bigru_fused_kernel(%arg0: i32, %arg1: memref<8x8x256xf32, #tpu.memory_space<vmem>>, %arg2: memref<256x768xbf16, #tpu.memory_space<vmem>>, %arg3: memref<256x768xbf16, #tpu.memory_space<vmem>>, %arg4: memref<1x768xf32, #tpu.memory_space<vmem>>, %arg5: memref<1x256xf32, #tpu.memory_space<vmem>>, %arg6: memref<8x8x256xf32, #tpu.memory_space<vmem>>, %arg7: memref<8x8x768xf32, #tpu.memory_space<vmem>>) attributes {dimension_semantics = [#tpu.dimension_semantics<parallel>], iteration_bounds = array<i64: 1>, scalar_prefetch = 0 : i64, scratch_operands = 1 : i64, tpu.core_type = #tpu.core_type<tc>, window_params = [{transform_indices = @transform_0, window_bounds = array<i64: 8, 8, 256>}, {pipeline_mode = #tpu.pipeline_mode<synchronous>, transform_indices = @transform_1, window_bounds = array<i64: 256, 768>}, {pipeline_mode = #tpu.pipeline_mode<synchronous>, transform_indices = @transform_2, window_bounds = array<i64: 256, 768>}, {pipeline_mode = #tpu.pipeline_mode<synchronous>, transform_indices = @transform_3, window_bounds = array<i64: 1, 768>}, {pipeline_mode = #tpu.pipeline_mode<synchronous>, transform_indices = @transform_4, window_bounds = array<i64: 1, 256>}, {transform_indices = @transform_5, window_bounds = array<i64: 8, 8, 256>}]} {
    %c0 = arith.constant 0 : index
    %c0_0 = arith.constant 0 : index
    %c0_1 = arith.constant 0 : index
    %0 = vector.load %arg1[%c0, %c0_0, %c0_1] : memref<8x8x256xf32, #tpu.memory_space<vmem>>, vector<8x8x256xf32>
    %1 = vector.shape_cast %0 : vector<8x8x256xf32> to vector<64x256xf32>
    %2 = arith.truncf %1 : vector<64x256xf32> to vector<64x256xbf16>
    %c0_2 = arith.constant 0 : index
    %c0_3 = arith.constant 0 : index
    %3 = vector.load %arg2[%c0_2, %c0_3] : memref<256x768xbf16, #tpu.memory_space<vmem>>, vector<256x768xbf16>
    %cst = arith.constant dense<0.000000e+00> : vector<64x768xf32>
    %4 = tpu.matmul %2, %3, %cst {dimension_numbers = #tpu.dot_dimension_numbers<[1], [0], [0], [1], [0, 0, 1, 1], [], []>} : vector<64x256xbf16>, vector<256x768xbf16>, vector<64x768xf32> -> vector<64x768xf32>
    %c0_4 = arith.constant 0 : index
    %c0_5 = arith.constant 0 : index
    %5 = vector.load %arg4[%c0_4, %c0_5] : memref<1x768xf32, #tpu.memory_space<vmem>>, vector<1x768xf32>
    %6 = vector.broadcast %5 : vector<1x768xf32> to vector<64x768xf32>
    %7 = arith.addf %4, %6 : vector<64x768xf32>
    %8 = vector.shape_cast %7 : vector<64x768xf32> to vector<8x8x768xf32>
    %c0_6 = arith.constant 0 : index
    %c0_7 = arith.constant 0 : index
    %c0_8 = arith.constant 0 : index
    %9 = vector.load %arg7[%c0_6, %c0_7, %c0_8] : memref<8x8x768xf32, #tpu.memory_space<vmem>>, vector<8x8x768xf32>
    tpu.vector_store %arg7[%c0_6, %c0_7, %c0_8], %8 {strides = array<i32>} : memref<8x8x768xf32, #tpu.memory_space<vmem>>, vector<8x8x768xf32>,
    %c0_9 = arith.constant 0 : index
    %c0_10 = arith.constant 0 : index
    %10 = vector.load %arg3[%c0_9, %c0_10] : memref<256x768xbf16, #tpu.memory_space<vmem>>, vector<256x768xbf16>
    %c0_11 = arith.constant 0 : index
    %c0_12 = arith.constant 0 : index
    %11 = vector.load %arg5[%c0_11, %c0_12] : memref<1x256xf32, #tpu.memory_space<vmem>>, vector<1x256xf32>
    %12 = vector.shape_cast %11 : vector<1x256xf32> to vector<1x256xf32>
    %13 = vector.broadcast %12 : vector<1x256xf32> to vector<8x256xf32>
    %cst_13 = arith.constant 0.000000e+00 : f32
    %14 = vector.broadcast %cst_13 : f32 to vector<8x256xf32>
    %c0_i32 = arith.constant 0 : i32
    %15 = arith.index_cast %c0_i32 : i32 to index
    %c0_14 = arith.constant 0 : index
    %c0_15 = arith.constant 0 : index
    %16 = vector.load %arg7[%15, %c0_14, %c0_15] : memref<8x8x768xf32, #tpu.memory_space<vmem>>, vector<1x8x768xf32>
    %17 = vector.shape_cast %16 : vector<1x8x768xf32> to vector<8x768xf32>
    %18 = arith.truncf %14 : vector<8x256xf32> to vector<8x256xbf16>
    %cst_16 = arith.constant dense<0.000000e+00> : vector<8x768xf32>
    %19 = tpu.matmul %18, %10, %cst_16 {dimension_numbers = #tpu.dot_dimension_numbers<[1], [0], [0], [1], [0, 0, 1, 1], [], []>} : vector<8x256xbf16>, vector<256x768xbf16>, vector<8x768xf32> -> vector<8x768xf32>
    %20 = vector.extract_strided_slice %17 {offsets = [0, 0], sizes = [8, 512], strides = [1, 1]} : vector<8x768xf32> to vector<8x512xf32>
    %21 = vector.extract_strided_slice %19 {offsets = [0, 0], sizes = [8, 512], strides = [1, 1]} : vector<8x768xf32> to vector<8x512xf32>
    %22 = arith.addf %20, %21 : vector<8x512xf32>
    %23 = arith.negf %22 : vector<8x512xf32>
    %24 = math.exp %23 : vector<8x512xf32>
    %cst_17 = arith.constant 1.000000e+00 : f32
    %25 = vector.broadcast %cst_17 : f32 to vector<8x512xf32>
    %26 = arith.addf %25, %24 : vector<8x512xf32>
    %27 = arith.divf %25, %26 : vector<8x512xf32>
    %28 = vector.extract_strided_slice %27 {offsets = [0, 0], sizes = [8, 256], strides = [1, 1]} : vector<8x512xf32> to vector<8x256xf32>
    %29 = vector.extract_strided_slice %27 {offsets = [0, 256], sizes = [8, 256], strides = [1, 1]} : vector<8x512xf32> to vector<8x256xf32>
    %30 = vector.extract_strided_slice %17 {offsets = [0, 512], sizes = [8, 256], strides = [1, 1]} : vector<8x768xf32> to vector<8x256xf32>
    %31 = vector.extract_strided_slice %19 {offsets = [0, 512], sizes = [8, 256], strides = [1, 1]} : vector<8x768xf32> to vector<8x256xf32>
    %32 = arith.addf %31, %13 : vector<8x256xf32>
    %33 = arith.mulf %28, %32 : vector<8x256xf32>
    %34 = arith.addf %30, %33 : vector<8x256xf32>
    %35 = math.tanh %34 : vector<8x256xf32>
    %cst_18 = arith.constant 1.000000e+00 : f32
    %36 = vector.broadcast %cst_18 : f32 to vector<8x256xf32>
    %37 = arith.subf %36, %29 : vector<8x256xf32>
    %38 = arith.mulf %37, %35 : vector<8x256xf32>
    %39 = arith.mulf %29, %14 : vector<8x256xf32>
    %40 = arith.addf %38, %39 : vector<8x256xf32>
    %41 = vector.extract_strided_slice %40 {offsets = [0, 0], sizes = [8, 128], strides = [1, 1]} : vector<8x256xf32> to vector<8x128xf32>
    %42 = arith.index_cast %c0_i32 : i32 to index
    %c0_19 = arith.constant 0 : index
    %c0_20 = arith.constant 0 : index
    %43 = vector.load %arg6[%42, %c0_19, %c0_20] : memref<8x8x256xf32, #tpu.memory_space<vmem>>, vector<1x8x128xf32>
    %44 = vector.shape_cast %43 : vector<1x8x128xf32> to vector<8x128xf32>
    %45 = vector.shape_cast %41 : vector<8x128xf32> to vector<1x8x128xf32>
    tpu.vector_store %arg6[%42, %c0_19, %c0_20], %45 {strides = array<i32>} : memref<8x8x256xf32, #tpu.memory_space<vmem>>, vector<1x8x128xf32>,
    %46 = vector.extract_strided_slice %40 {offsets = [0, 128], sizes = [8, 128], strides = [1, 1]} : vector<8x256xf32> to vector<8x128xf32>
    %c7_i32 = arith.constant 7 : i32
    %47 = arith.subi %c7_i32, %c0_i32 : i32
    %48 = arith.index_cast %47 : i32 to index
    %c0_21 = arith.constant 0 : index
    %c128 = arith.constant 128 : index
    %49 = vector.load %arg6[%48, %c0_21, %c128] : memref<8x8x256xf32, #tpu.memory_space<vmem>>, vector<1x8x128xf32>
    %50 = vector.shape_cast %49 : vector<1x8x128xf32> to vector<8x128xf32>
    %51 = vector.shape_cast %46 : vector<8x128xf32> to vector<1x8x128xf32>
    tpu.vector_store %arg6[%48, %c0_21, %c128], %51 {strides = array<i32>} : memref<8x8x256xf32, #tpu.memory_space<vmem>>, vector<1x8x128xf32>,
    %c1_i32 = arith.constant 1 : i32
    %52 = arith.index_cast %c1_i32 : i32 to index
    %c0_22 = arith.constant 0 : index
    %c0_23 = arith.constant 0 : index
    %53 = vector.load %arg7[%52, %c0_22, %c0_23] : memref<8x8x768xf32, #tpu.memory_space<vmem>>, vector<1x8x768xf32>
    %54 = vector.shape_cast %53 : vector<1x8x768xf32> to vector<8x768xf32>
    %55 = arith.truncf %40 : vector<8x256xf32> to vector<8x256xbf16>
    %cst_24 = arith.constant dense<0.000000e+00> : vector<8x768xf32>
    %56 = tpu.matmul %55, %10, %cst_24 {dimension_numbers = #tpu.dot_dimension_numbers<[1], [0], [0], [1], [0, 0, 1, 1], [], []>} : vector<8x256xbf16>, vector<256x768xbf16>, vector<8x768xf32> -> vector<8x768xf32>
    %57 = vector.extract_strided_slice %54 {offsets = [0, 0], sizes = [8, 512], strides = [1, 1]} : vector<8x768xf32> to vector<8x512xf32>
    %58 = vector.extract_strided_slice %56 {offsets = [0, 0], sizes = [8, 512], strides = [1, 1]} : vector<8x768xf32> to vector<8x512xf32>
    %59 = arith.addf %57, %58 : vector<8x512xf32>
    %60 = arith.negf %59 : vector<8x512xf32>
    %61 = math.exp %60 : vector<8x512xf32>
    %cst_25 = arith.constant 1.000000e+00 : f32
    %62 = vector.broadcast %cst_25 : f32 to vector<8x512xf32>
    %63 = arith.addf %62, %61 : vector<8x512xf32>
    %64 = arith.divf %62, %63 : vector<8x512xf32>
    %65 = vector.extract_strided_slice %64 {offsets = [0, 0], sizes = [8, 256], strides = [1, 1]} : vector<8x512xf32> to vector<8x256xf32>
    %66 = vector.extract_strided_slice %64 {offsets = [0, 256], sizes = [8, 256], strides = [1, 1]} : vector<8x512xf32> to vector<8x256xf32>
    %67 = vector.extract_strided_slice %54 {offsets = [0, 512], sizes = [8, 256], strides = [1, 1]} : vector<8x768xf32> to vector<8x256xf32>
    %68 = vector.extract_strided_slice %56 {offsets = [0, 512], sizes = [8, 256], strides = [1, 1]} : vector<8x768xf32> to vector<8x256xf32>
    %69 = arith.addf %68, %13 : vector<8x256xf32>
    %70 = arith.mulf %65, %69 : vector<8x256xf32>
    %71 = arith.addf %67, %70 : vector<8x256xf32>
    %72 = math.tanh %71 : vector<8x256xf32>
    %cst_26 = arith.constant 1.000000e+00 : f32
    %73 = vector.broadcast %cst_26 : f32 to vector<8x256xf32>
    %74 = arith.subf %73, %66 : vector<8x256xf32>
    %75 = arith.mulf %74, %72 : vector<8x256xf32>
    %76 = arith.mulf %66, %40 : vector<8x256xf32>
    %77 = arith.addf %75, %76 : vector<8x256xf32>
    %78 = vector.extract_strided_slice %77 {offsets = [0, 0], sizes = [8, 128], strides = [1, 1]} : vector<8x256xf32> to vector<8x128xf32>
    %79 = arith.index_cast %c1_i32 : i32 to index
    %c0_27 = arith.constant 0 : index
    %c0_28 = arith.constant 0 : index
    %80 = vector.load %arg6[%79, %c0_27, %c0_28] : memref<8x8x256xf32, #tpu.memory_space<vmem>>, vector<1x8x128xf32>
    %81 = vector.shape_cast %80 : vector<1x8x128xf32> to vector<8x128xf32>
    %82 = vector.shape_cast %78 : vector<8x128xf32> to vector<1x8x128xf32>
    tpu.vector_store %arg6[%79, %c0_27, %c0_28], %82 {strides = array<i32>} : memref<8x8x256xf32, #tpu.memory_space<vmem>>, vector<1x8x128xf32>,
    %83 = vector.extract_strided_slice %77 {offsets = [0, 128], sizes = [8, 128], strides = [1, 1]} : vector<8x256xf32> to vector<8x128xf32>
    %c7_i32_29 = arith.constant 7 : i32
    %84 = arith.subi %c7_i32_29, %c1_i32 : i32
    %85 = arith.index_cast %84 : i32 to index
    %c0_30 = arith.constant 0 : index
    %c128_31 = arith.constant 128 : index
    %86 = vector.load %arg6[%85, %c0_30, %c128_31] : memref<8x8x256xf32, #tpu.memory_space<vmem>>, vector<1x8x128xf32>
    %87 = vector.shape_cast %86 : vector<1x8x128xf32> to vector<8x128xf32>
    %88 = vector.shape_cast %83 : vector<8x128xf32> to vector<1x8x128xf32>
    tpu.vector_store %arg6[%85, %c0_30, %c128_31], %88 {strides = array<i32>} : memref<8x8x256xf32, #tpu.memory_space<vmem>>, vector<1x8x128xf32>,
    %c2_i32 = arith.constant 2 : i32
    %89 = arith.index_cast %c2_i32 : i32 to index
    %c0_32 = arith.constant 0 : index
    %c0_33 = arith.constant 0 : index
    %90 = vector.load %arg7[%89, %c0_32, %c0_33] : memref<8x8x768xf32, #tpu.memory_space<vmem>>, vector<1x8x768xf32>
    %91 = vector.shape_cast %90 : vector<1x8x768xf32> to vector<8x768xf32>
    %92 = arith.truncf %77 : vector<8x256xf32> to vector<8x256xbf16>
    %cst_34 = arith.constant dense<0.000000e+00> : vector<8x768xf32>
    %93 = tpu.matmul %92, %10, %cst_34 {dimension_numbers = #tpu.dot_dimension_numbers<[1], [0], [0], [1], [0, 0, 1, 1], [], []>} : vector<8x256xbf16>, vector<256x768xbf16>, vector<8x768xf32> -> vector<8x768xf32>
    %94 = vector.extract_strided_slice %91 {offsets = [0, 0], sizes = [8, 512], strides = [1, 1]} : vector<8x768xf32> to vector<8x512xf32>
    %95 = vector.extract_strided_slice %93 {offsets = [0, 0], sizes = [8, 512], strides = [1, 1]} : vector<8x768xf32> to vector<8x512xf32>
    %96 = arith.addf %94, %95 : vector<8x512xf32>
    %97 = arith.negf %96 : vector<8x512xf32>
    %98 = math.exp %97 : vector<8x512xf32>
    %cst_35 = arith.constant 1.000000e+00 : f32
    %99 = vector.broadcast %cst_35 : f32 to vector<8x512xf32>
    %100 = arith.addf %99, %98 : vector<8x512xf32>
    %101 = arith.divf %99, %100 : vector<8x512xf32>
    %102 = vector.extract_strided_slice %101 {offsets = [0, 0], sizes = [8, 256], strides = [1, 1]} : vector<8x512xf32> to vector<8x256xf32>
    %103 = vector.extract_strided_slice %101 {offsets = [0, 256], sizes = [8, 256], strides = [1, 1]} : vector<8x512xf32> to vector<8x256xf32>
    %104 = vector.extract_strided_slice %91 {offsets = [0, 512], sizes = [8, 256], strides = [1, 1]} : vector<8x768xf32> to vector<8x256xf32>
    %105 = vector.extract_strided_slice %93 {offsets = [0, 512], sizes = [8, 256], strides = [1, 1]} : vector<8x768xf32> to vector<8x256xf32>
    %106 = arith.addf %105, %13 : vector<8x256xf32>
    %107 = arith.mulf %102, %106 : vector<8x256xf32>
    %108 = arith.addf %104, %107 : vector<8x256xf32>
    %109 = math.tanh %108 : vector<8x256xf32>
    %cst_36 = arith.constant 1.000000e+00 : f32
    %110 = vector.broadcast %cst_36 : f32 to vector<8x256xf32>
    %111 = arith.subf %110, %103 : vector<8x256xf32>
    %112 = arith.mulf %111, %109 : vector<8x256xf32>
    %113 = arith.mulf %103, %77 : vector<8x256xf32>
    %114 = arith.addf %112, %113 : vector<8x256xf32>
    %115 = vector.extract_strided_slice %114 {offsets = [0, 0], sizes = [8, 128], strides = [1, 1]} : vector<8x256xf32> to vector<8x128xf32>
    %116 = arith.index_cast %c2_i32 : i32 to index
    %c0_37 = arith.constant 0 : index
    %c0_38 = arith.constant 0 : index
    %117 = vector.load %arg6[%116, %c0_37, %c0_38] : memref<8x8x256xf32, #tpu.memory_space<vmem>>, vector<1x8x128xf32>
    %118 = vector.shape_cast %117 : vector<1x8x128xf32> to vector<8x128xf32>
    %119 = vector.shape_cast %115 : vector<8x128xf32> to vector<1x8x128xf32>
    tpu.vector_store %arg6[%116, %c0_37, %c0_38], %119 {strides = array<i32>} : memref<8x8x256xf32, #tpu.memory_space<vmem>>, vector<1x8x128xf32>,
    %120 = vector.extract_strided_slice %114 {offsets = [0, 128], sizes = [8, 128], strides = [1, 1]} : vector<8x256xf32> to vector<8x128xf32>
    %c7_i32_39 = arith.constant 7 : i32
    %121 = arith.subi %c7_i32_39, %c2_i32 : i32
    %122 = arith.index_cast %121 : i32 to index
    %c0_40 = arith.constant 0 : index
    %c128_41 = arith.constant 128 : index
    %123 = vector.load %arg6[%122, %c0_40, %c128_41] : memref<8x8x256xf32, #tpu.memory_space<vmem>>, vector<1x8x128xf32>
    %124 = vector.shape_cast %123 : vector<1x8x128xf32> to vector<8x128xf32>
    %125 = vector.shape_cast %120 : vector<8x128xf32> to vector<1x8x128xf32>
    tpu.vector_store %arg6[%122, %c0_40, %c128_41], %125 {strides = array<i32>} : memref<8x8x256xf32, #tpu.memory_space<vmem>>, vector<1x8x128xf32>,
    %c3_i32 = arith.constant 3 : i32
    %126 = arith.index_cast %c3_i32 : i32 to index
    %c0_42 = arith.constant 0 : index
    %c0_43 = arith.constant 0 : index
    %127 = vector.load %arg7[%126, %c0_42, %c0_43] : memref<8x8x768xf32, #tpu.memory_space<vmem>>, vector<1x8x768xf32>
    %128 = vector.shape_cast %127 : vector<1x8x768xf32> to vector<8x768xf32>
    %129 = arith.truncf %114 : vector<8x256xf32> to vector<8x256xbf16>
    %cst_44 = arith.constant dense<0.000000e+00> : vector<8x768xf32>
    %130 = tpu.matmul %129, %10, %cst_44 {dimension_numbers = #tpu.dot_dimension_numbers<[1], [0], [0], [1], [0, 0, 1, 1], [], []>} : vector<8x256xbf16>, vector<256x768xbf16>, vector<8x768xf32> -> vector<8x768xf32>
    %131 = vector.extract_strided_slice %128 {offsets = [0, 0], sizes = [8, 512], strides = [1, 1]} : vector<8x768xf32> to vector<8x512xf32>
    %132 = vector.extract_strided_slice %130 {offsets = [0, 0], sizes = [8, 512], strides = [1, 1]} : vector<8x768xf32> to vector<8x512xf32>
    %133 = arith.addf %131, %132 : vector<8x512xf32>
    %134 = arith.negf %133 : vector<8x512xf32>
    %135 = math.exp %134 : vector<8x512xf32>
    %cst_45 = arith.constant 1.000000e+00 : f32
    %136 = vector.broadcast %cst_45 : f32 to vector<8x512xf32>
    %137 = arith.addf %136, %135 : vector<8x512xf32>
    %138 = arith.divf %136, %137 : vector<8x512xf32>
    %139 = vector.extract_strided_slice %138 {offsets = [0, 0], sizes = [8, 256], strides = [1, 1]} : vector<8x512xf32> to vector<8x256xf32>
    %140 = vector.extract_strided_slice %138 {offsets = [0, 256], sizes = [8, 256], strides = [1, 1]} : vector<8x512xf32> to vector<8x256xf32>
    %141 = vector.extract_strided_slice %128 {offsets = [0, 512], sizes = [8, 256], strides = [1, 1]} : vector<8x768xf32> to vector<8x256xf32>
    %142 = vector.extract_strided_slice %130 {offsets = [0, 512], sizes = [8, 256], strides = [1, 1]} : vector<8x768xf32> to vector<8x256xf32>
    %143 = arith.addf %142, %13 : vector<8x256xf32>
    %144 = arith.mulf %139, %143 : vector<8x256xf32>
    %145 = arith.addf %141, %144 : vector<8x256xf32>
    %146 = math.tanh %145 : vector<8x256xf32>
    %cst_46 = arith.constant 1.000000e+00 : f32
    %147 = vector.broadcast %cst_46 : f32 to vector<8x256xf32>
    %148 = arith.subf %147, %140 : vector<8x256xf32>
    %149 = arith.mulf %148, %146 : vector<8x256xf32>
    %150 = arith.mulf %140, %114 : vector<8x256xf32>
    %151 = arith.addf %149, %150 : vector<8x256xf32>
    %152 = vector.extract_strided_slice %151 {offsets = [0, 0], sizes = [8, 128], strides = [1, 1]} : vector<8x256xf32> to vector<8x128xf32>
    %153 = arith.index_cast %c3_i32 : i32 to index
    %c0_47 = arith.constant 0 : index
    %c0_48 = arith.constant 0 : index
    %154 = vector.load %arg6[%153, %c0_47, %c0_48] : memref<8x8x256xf32, #tpu.memory_space<vmem>>, vector<1x8x128xf32>
    %155 = vector.shape_cast %154 : vector<1x8x128xf32> to vector<8x128xf32>
    %156 = vector.shape_cast %152 : vector<8x128xf32> to vector<1x8x128xf32>
    tpu.vector_store %arg6[%153, %c0_47, %c0_48], %156 {strides = array<i32>} : memref<8x8x256xf32, #tpu.memory_space<vmem>>, vector<1x8x128xf32>,
    %157 = vector.extract_strided_slice %151 {offsets = [0, 128], sizes = [8, 128], strides = [1, 1]} : vector<8x256xf32> to vector<8x128xf32>
    %c7_i32_49 = arith.constant 7 : i32
    %158 = arith.subi %c7_i32_49, %c3_i32 : i32
    %159 = arith.index_cast %158 : i32 to index
    %c0_50 = arith.constant 0 : index
    %c128_51 = arith.constant 128 : index
    %160 = vector.load %arg6[%159, %c0_50, %c128_51] : memref<8x8x256xf32, #tpu.memory_space<vmem>>, vector<1x8x128xf32>
    %161 = vector.shape_cast %160 : vector<1x8x128xf32> to vector<8x128xf32>
    %162 = vector.shape_cast %157 : vector<8x128xf32> to vector<1x8x128xf32>
    tpu.vector_store %arg6[%159, %c0_50, %c128_51], %162 {strides = array<i32>} : memref<8x8x256xf32, #tpu.memory_space<vmem>>, vector<1x8x128xf32>,
    %c4_i32 = arith.constant 4 : i32
    %163 = arith.index_cast %c4_i32 : i32 to index
    %c0_52 = arith.constant 0 : index
    %c0_53 = arith.constant 0 : index
    %164 = vector.load %arg7[%163, %c0_52, %c0_53] : memref<8x8x768xf32, #tpu.memory_space<vmem>>, vector<1x8x768xf32>
    %165 = vector.shape_cast %164 : vector<1x8x768xf32> to vector<8x768xf32>
    %166 = arith.truncf %151 : vector<8x256xf32> to vector<8x256xbf16>
    %cst_54 = arith.constant dense<0.000000e+00> : vector<8x768xf32>
    %167 = tpu.matmul %166, %10, %cst_54 {dimension_numbers = #tpu.dot_dimension_numbers<[1], [0], [0], [1], [0, 0, 1, 1], [], []>} : vector<8x256xbf16>, vector<256x768xbf16>, vector<8x768xf32> -> vector<8x768xf32>
    %168 = vector.extract_strided_slice %165 {offsets = [0, 0], sizes = [8, 512], strides = [1, 1]} : vector<8x768xf32> to vector<8x512xf32>
    %169 = vector.extract_strided_slice %167 {offsets = [0, 0], sizes = [8, 512], strides = [1, 1]} : vector<8x768xf32> to vector<8x512xf32>
    %170 = arith.addf %168, %169 : vector<8x512xf32>
    %171 = arith.negf %170 : vector<8x512xf32>
    %172 = math.exp %171 : vector<8x512xf32>
    %cst_55 = arith.constant 1.000000e+00 : f32
    %173 = vector.broadcast %cst_55 : f32 to vector<8x512xf32>
    %174 = arith.addf %173, %172 : vector<8x512xf32>
    %175 = arith.divf %173, %174 : vector<8x512xf32>
    %176 = vector.extract_strided_slice %175 {offsets = [0, 0], sizes = [8, 256], strides = [1, 1]} : vector<8x512xf32> to vector<8x256xf32>
    %177 = vector.extract_strided_slice %175 {offsets = [0, 256], sizes = [8, 256], strides = [1, 1]} : vector<8x512xf32> to vector<8x256xf32>
    %178 = vector.extract_strided_slice %165 {offsets = [0, 512], sizes = [8, 256], strides = [1, 1]} : vector<8x768xf32> to vector<8x256xf32>
    %179 = vector.extract_strided_slice %167 {offsets = [0, 512], sizes = [8, 256], strides = [1, 1]} : vector<8x768xf32> to vector<8x256xf32>
    %180 = arith.addf %179, %13 : vector<8x256xf32>
    %181 = arith.mulf %176, %180 : vector<8x256xf32>
    %182 = arith.addf %178, %181 : vector<8x256xf32>
    %183 = math.tanh %182 : vector<8x256xf32>
    %cst_56 = arith.constant 1.000000e+00 : f32
    %184 = vector.broadcast %cst_56 : f32 to vector<8x256xf32>
    %185 = arith.subf %184, %177 : vector<8x256xf32>
    %186 = arith.mulf %185, %183 : vector<8x256xf32>
    %187 = arith.mulf %177, %151 : vector<8x256xf32>
    %188 = arith.addf %186, %187 : vector<8x256xf32>
    %189 = vector.extract_strided_slice %188 {offsets = [0, 0], sizes = [8, 128], strides = [1, 1]} : vector<8x256xf32> to vector<8x128xf32>
    %190 = arith.index_cast %c4_i32 : i32 to index
    %c0_57 = arith.constant 0 : index
    %c0_58 = arith.constant 0 : index
    %191 = vector.load %arg6[%190, %c0_57, %c0_58] : memref<8x8x256xf32, #tpu.memory_space<vmem>>, vector<1x8x128xf32>
    %192 = vector.shape_cast %191 : vector<1x8x128xf32> to vector<8x128xf32>
    %193 = vector.shape_cast %189 : vector<8x128xf32> to vector<1x8x128xf32>
    tpu.vector_store %arg6[%190, %c0_57, %c0_58], %193 {strides = array<i32>} : memref<8x8x256xf32, #tpu.memory_space<vmem>>, vector<1x8x128xf32>,
    %194 = vector.extract_strided_slice %188 {offsets = [0, 128], sizes = [8, 128], strides = [1, 1]} : vector<8x256xf32> to vector<8x128xf32>
    %c7_i32_59 = arith.constant 7 : i32
    %195 = arith.subi %c7_i32_59, %c4_i32 : i32
    %196 = arith.index_cast %195 : i32 to index
    %c0_60 = arith.constant 0 : index
    %c128_61 = arith.constant 128 : index
    %197 = vector.load %arg6[%196, %c0_60, %c128_61] : memref<8x8x256xf32, #tpu.memory_space<vmem>>, vector<1x8x128xf32>
    %198 = vector.shape_cast %197 : vector<1x8x128xf32> to vector<8x128xf32>
    %199 = vector.shape_cast %194 : vector<8x128xf32> to vector<1x8x128xf32>
    tpu.vector_store %arg6[%196, %c0_60, %c128_61], %199 {strides = array<i32>} : memref<8x8x256xf32, #tpu.memory_space<vmem>>, vector<1x8x128xf32>,
    %c5_i32 = arith.constant 5 : i32
    %200 = arith.index_cast %c5_i32 : i32 to index
    %c0_62 = arith.constant 0 : index
    %c0_63 = arith.constant 0 : index
    %201 = vector.load %arg7[%200, %c0_62, %c0_63] : memref<8x8x768xf32, #tpu.memory_space<vmem>>, vector<1x8x768xf32>
    %202 = vector.shape_cast %201 : vector<1x8x768xf32> to vector<8x768xf32>
    %203 = arith.truncf %188 : vector<8x256xf32> to vector<8x256xbf16>
    %cst_64 = arith.constant dense<0.000000e+00> : vector<8x768xf32>
    %204 = tpu.matmul %203, %10, %cst_64 {dimension_numbers = #tpu.dot_dimension_numbers<[1], [0], [0], [1], [0, 0, 1, 1], [], []>} : vector<8x256xbf16>, vector<256x768xbf16>, vector<8x768xf32> -> vector<8x768xf32>
    %205 = vector.extract_strided_slice %202 {offsets = [0, 0], sizes = [8, 512], strides = [1, 1]} : vector<8x768xf32> to vector<8x512xf32>
    %206 = vector.extract_strided_slice %204 {offsets = [0, 0], sizes = [8, 512], strides = [1, 1]} : vector<8x768xf32> to vector<8x512xf32>
    %207 = arith.addf %205, %206 : vector<8x512xf32>
    %208 = arith.negf %207 : vector<8x512xf32>
    %209 = math.exp %208 : vector<8x512xf32>
    %cst_65 = arith.constant 1.000000e+00 : f32
    %210 = vector.broadcast %cst_65 : f32 to vector<8x512xf32>
    %211 = arith.addf %210, %209 : vector<8x512xf32>
    %212 = arith.divf %210, %211 : vector<8x512xf32>
    %213 = vector.extract_strided_slice %212 {offsets = [0, 0], sizes = [8, 256], strides = [1, 1]} : vector<8x512xf32> to vector<8x256xf32>
    %214 = vector.extract_strided_slice %212 {offsets = [0, 256], sizes = [8, 256], strides = [1, 1]} : vector<8x512xf32> to vector<8x256xf32>
    %215 = vector.extract_strided_slice %202 {offsets = [0, 512], sizes = [8, 256], strides = [1, 1]} : vector<8x768xf32> to vector<8x256xf32>
    %216 = vector.extract_strided_slice %204 {offsets = [0, 512], sizes = [8, 256], strides = [1, 1]} : vector<8x768xf32> to vector<8x256xf32>
    %217 = arith.addf %216, %13 : vector<8x256xf32>
    %218 = arith.mulf %213, %217 : vector<8x256xf32>
    %219 = arith.addf %215, %218 : vector<8x256xf32>
    %220 = math.tanh %219 : vector<8x256xf32>
    %cst_66 = arith.constant 1.000000e+00 : f32
    %221 = vector.broadcast %cst_66 : f32 to vector<8x256xf32>
    %222 = arith.subf %221, %214 : vector<8x256xf32>
    %223 = arith.mulf %222, %220 : vector<8x256xf32>
    %224 = arith.mulf %214, %188 : vector<8x256xf32>
    %225 = arith.addf %223, %224 : vector<8x256xf32>
    %226 = vector.extract_strided_slice %225 {offsets = [0, 0], sizes = [8, 128], strides = [1, 1]} : vector<8x256xf32> to vector<8x128xf32>
    %227 = arith.index_cast %c5_i32 : i32 to index
    %c0_67 = arith.constant 0 : index
    %c0_68 = arith.constant 0 : index
    %228 = vector.load %arg6[%227, %c0_67, %c0_68] : memref<8x8x256xf32, #tpu.memory_space<vmem>>, vector<1x8x128xf32>
    %229 = vector.shape_cast %228 : vector<1x8x128xf32> to vector<8x128xf32>
    %230 = vector.shape_cast %226 : vector<8x128xf32> to vector<1x8x128xf32>
    tpu.vector_store %arg6[%227, %c0_67, %c0_68], %230 {strides = array<i32>} : memref<8x8x256xf32, #tpu.memory_space<vmem>>, vector<1x8x128xf32>,
    %231 = vector.extract_strided_slice %225 {offsets = [0, 128], sizes = [8, 128], strides = [1, 1]} : vector<8x256xf32> to vector<8x128xf32>
    %c7_i32_69 = arith.constant 7 : i32
    %232 = arith.subi %c7_i32_69, %c5_i32 : i32
    %233 = arith.index_cast %232 : i32 to index
    %c0_70 = arith.constant 0 : index
    %c128_71 = arith.constant 128 : index
    %234 = vector.load %arg6[%233, %c0_70, %c128_71] : memref<8x8x256xf32, #tpu.memory_space<vmem>>, vector<1x8x128xf32>
    %235 = vector.shape_cast %234 : vector<1x8x128xf32> to vector<8x128xf32>
    %236 = vector.shape_cast %231 : vector<8x128xf32> to vector<1x8x128xf32>
    tpu.vector_store %arg6[%233, %c0_70, %c128_71], %236 {strides = array<i32>} : memref<8x8x256xf32, #tpu.memory_space<vmem>>, vector<1x8x128xf32>,
    %c6_i32 = arith.constant 6 : i32
    %237 = arith.index_cast %c6_i32 : i32 to index
    %c0_72 = arith.constant 0 : index
    %c0_73 = arith.constant 0 : index
    %238 = vector.load %arg7[%237, %c0_72, %c0_73] : memref<8x8x768xf32, #tpu.memory_space<vmem>>, vector<1x8x768xf32>
    %239 = vector.shape_cast %238 : vector<1x8x768xf32> to vector<8x768xf32>
    %240 = arith.truncf %225 : vector<8x256xf32> to vector<8x256xbf16>
    %cst_74 = arith.constant dense<0.000000e+00> : vector<8x768xf32>
    %241 = tpu.matmul %240, %10, %cst_74 {dimension_numbers = #tpu.dot_dimension_numbers<[1], [0], [0], [1], [0, 0, 1, 1], [], []>} : vector<8x256xbf16>, vector<256x768xbf16>, vector<8x768xf32> -> vector<8x768xf32>
    %242 = vector.extract_strided_slice %239 {offsets = [0, 0], sizes = [8, 512], strides = [1, 1]} : vector<8x768xf32> to vector<8x512xf32>
    %243 = vector.extract_strided_slice %241 {offsets = [0, 0], sizes = [8, 512], strides = [1, 1]} : vector<8x768xf32> to vector<8x512xf32>
    %244 = arith.addf %242, %243 : vector<8x512xf32>
    %245 = arith.negf %244 : vector<8x512xf32>
    %246 = math.exp %245 : vector<8x512xf32>
    %cst_75 = arith.constant 1.000000e+00 : f32
    %247 = vector.broadcast %cst_75 : f32 to vector<8x512xf32>
    %248 = arith.addf %247, %246 : vector<8x512xf32>
    %249 = arith.divf %247, %248 : vector<8x512xf32>
    %250 = vector.extract_strided_slice %249 {offsets = [0, 0], sizes = [8, 256], strides = [1, 1]} : vector<8x512xf32> to vector<8x256xf32>
    %251 = vector.extract_strided_slice %249 {offsets = [0, 256], sizes = [8, 256], strides = [1, 1]} : vector<8x512xf32> to vector<8x256xf32>
    %252 = vector.extract_strided_slice %239 {offsets = [0, 512], sizes = [8, 256], strides = [1, 1]} : vector<8x768xf32> to vector<8x256xf32>
    %253 = vector.extract_strided_slice %241 {offsets = [0, 512], sizes = [8, 256], strides = [1, 1]} : vector<8x768xf32> to vector<8x256xf32>
    %254 = arith.addf %253, %13 : vector<8x256xf32>
    %255 = arith.mulf %250, %254 : vector<8x256xf32>
    %256 = arith.addf %252, %255 : vector<8x256xf32>
    %257 = math.tanh %256 : vector<8x256xf32>
    %cst_76 = arith.constant 1.000000e+00 : f32
    %258 = vector.broadcast %cst_76 : f32 to vector<8x256xf32>
    %259 = arith.subf %258, %251 : vector<8x256xf32>
    %260 = arith.mulf %259, %257 : vector<8x256xf32>
    %261 = arith.mulf %251, %225 : vector<8x256xf32>
    %262 = arith.addf %260, %261 : vector<8x256xf32>
    %263 = vector.extract_strided_slice %262 {offsets = [0, 0], sizes = [8, 128], strides = [1, 1]} : vector<8x256xf32> to vector<8x128xf32>
    %264 = arith.index_cast %c6_i32 : i32 to index
    %c0_77 = arith.constant 0 : index
    %c0_78 = arith.constant 0 : index
    %265 = vector.load %arg6[%264, %c0_77, %c0_78] : memref<8x8x256xf32, #tpu.memory_space<vmem>>, vector<1x8x128xf32>
    %266 = vector.shape_cast %265 : vector<1x8x128xf32> to vector<8x128xf32>
    %267 = vector.shape_cast %263 : vector<8x128xf32> to vector<1x8x128xf32>
    tpu.vector_store %arg6[%264, %c0_77, %c0_78], %267 {strides = array<i32>} : memref<8x8x256xf32, #tpu.memory_space<vmem>>, vector<1x8x128xf32>,
    %268 = vector.extract_strided_slice %262 {offsets = [0, 128], sizes = [8, 128], strides = [1, 1]} : vector<8x256xf32> to vector<8x128xf32>
    %c7_i32_79 = arith.constant 7 : i32
    %269 = arith.subi %c7_i32_79, %c6_i32 : i32
    %270 = arith.index_cast %269 : i32 to index
    %c0_80 = arith.constant 0 : index
    %c128_81 = arith.constant 128 : index
    %271 = vector.load %arg6[%270, %c0_80, %c128_81] : memref<8x8x256xf32, #tpu.memory_space<vmem>>, vector<1x8x128xf32>
    %272 = vector.shape_cast %271 : vector<1x8x128xf32> to vector<8x128xf32>
    %273 = vector.shape_cast %268 : vector<8x128xf32> to vector<1x8x128xf32>
    tpu.vector_store %arg6[%270, %c0_80, %c128_81], %273 {strides = array<i32>} : memref<8x8x256xf32, #tpu.memory_space<vmem>>, vector<1x8x128xf32>,
    %c7_i32_82 = arith.constant 7 : i32
    %274 = arith.index_cast %c7_i32_82 : i32 to index
    %c0_83 = arith.constant 0 : index
    %c0_84 = arith.constant 0 : index
    %275 = vector.load %arg7[%274, %c0_83, %c0_84] : memref<8x8x768xf32, #tpu.memory_space<vmem>>, vector<1x8x768xf32>
    %276 = vector.shape_cast %275 : vector<1x8x768xf32> to vector<8x768xf32>
    %277 = arith.truncf %262 : vector<8x256xf32> to vector<8x256xbf16>
    %cst_85 = arith.constant dense<0.000000e+00> : vector<8x768xf32>
    %278 = tpu.matmul %277, %10, %cst_85 {dimension_numbers = #tpu.dot_dimension_numbers<[1], [0], [0], [1], [0, 0, 1, 1], [], []>} : vector<8x256xbf16>, vector<256x768xbf16>, vector<8x768xf32> -> vector<8x768xf32>
    %279 = vector.extract_strided_slice %276 {offsets = [0, 0], sizes = [8, 512], strides = [1, 1]} : vector<8x768xf32> to vector<8x512xf32>
    %280 = vector.extract_strided_slice %278 {offsets = [0, 0], sizes = [8, 512], strides = [1, 1]} : vector<8x768xf32> to vector<8x512xf32>
    %281 = arith.addf %279, %280 : vector<8x512xf32>
    %282 = arith.negf %281 : vector<8x512xf32>
    %283 = math.exp %282 : vector<8x512xf32>
    %cst_86 = arith.constant 1.000000e+00 : f32
    %284 = vector.broadcast %cst_86 : f32 to vector<8x512xf32>
    %285 = arith.addf %284, %283 : vector<8x512xf32>
    %286 = arith.divf %284, %285 : vector<8x512xf32>
    %287 = vector.extract_strided_slice %286 {offsets = [0, 0], sizes = [8, 256], strides = [1, 1]} : vector<8x512xf32> to vector<8x256xf32>
    %288 = vector.extract_strided_slice %286 {offsets = [0, 256], sizes = [8, 256], strides = [1, 1]} : vector<8x512xf32> to vector<8x256xf32>
    %289 = vector.extract_strided_slice %276 {offsets = [0, 512], sizes = [8, 256], strides = [1, 1]} : vector<8x768xf32> to vector<8x256xf32>
    %290 = vector.extract_strided_slice %278 {offsets = [0, 512], sizes = [8, 256], strides = [1, 1]} : vector<8x768xf32> to vector<8x256xf32>
    %291 = arith.addf %290, %13 : vector<8x256xf32>
    %292 = arith.mulf %287, %291 : vector<8x256xf32>
    %293 = arith.addf %289, %292 : vector<8x256xf32>
    %294 = math.tanh %293 : vector<8x256xf32>
    %cst_87 = arith.constant 1.000000e+00 : f32
    %295 = vector.broadcast %cst_87 : f32 to vector<8x256xf32>
    %296 = arith.subf %295, %288 : vector<8x256xf32>
    %297 = arith.mulf %296, %294 : vector<8x256xf32>
    %298 = arith.mulf %288, %262 : vector<8x256xf32>
    %299 = arith.addf %297, %298 : vector<8x256xf32>
    %300 = vector.extract_strided_slice %299 {offsets = [0, 0], sizes = [8, 128], strides = [1, 1]} : vector<8x256xf32> to vector<8x128xf32>
    %301 = arith.index_cast %c7_i32_82 : i32 to index
    %c0_88 = arith.constant 0 : index
    %c0_89 = arith.constant 0 : index
    %302 = vector.load %arg6[%301, %c0_88, %c0_89] : memref<8x8x256xf32, #tpu.memory_space<vmem>>, vector<1x8x128xf32>
    %303 = vector.shape_cast %302 : vector<1x8x128xf32> to vector<8x128xf32>
    %304 = vector.shape_cast %300 : vector<8x128xf32> to vector<1x8x128xf32>
    tpu.vector_store %arg6[%301, %c0_88, %c0_89], %304 {strides = array<i32>} : memref<8x8x256xf32, #tpu.memory_space<vmem>>, vector<1x8x128xf32>,
    %305 = vector.extract_strided_slice %299 {offsets = [0, 128], sizes = [8, 128], strides = [1, 1]} : vector<8x256xf32> to vector<8x128xf32>
    %c7_i32_90 = arith.constant 7 : i32
    %306 = arith.subi %c7_i32_90, %c7_i32_82 : i32
    %307 = arith.index_cast %306 : i32 to index
    %c0_91 = arith.constant 0 : index
    %c128_92 = arith.constant 128 : index
    %308 = vector.load %arg6[%307, %c0_91, %c128_92] : memref<8x8x256xf32, #tpu.memory_space<vmem>>, vector<1x8x128xf32>
    %309 = vector.shape_cast %308 : vector<1x8x128xf32> to vector<8x128xf32>
    %310 = vector.shape_cast %305 : vector<8x128xf32> to vector<1x8x128xf32>
    tpu.vector_store %arg6[%307, %c0_91, %c128_92], %310 {strides = array<i32>} : memref<8x8x256xf32, #tpu.memory_space<vmem>>, vector<1x8x128xf32>,
    %c8_i32 = arith.constant 8 : i32
    return
  }
  func.func @transform_0(%arg0: i32) -> (i32, i32, i32) {
    %c0_i32 = arith.constant 0 : i32
    %c0_i32_0 = arith.constant 0 : i32
    %c0_i32_1 = arith.constant 0 : i32
    return %c0_i32, %arg0, %c0_i32_0 : i32, i32, i32
  }
  func.func @transform_1(%arg0: i32) -> (i32, i32) {
    %c0_i32 = arith.constant 0 : i32
    %c0_i32_0 = arith.constant 0 : i32
    %c0_i32_1 = arith.constant 0 : i32
    return %c0_i32, %c0_i32_0 : i32, i32
  }
  func.func @transform_2(%arg0: i32) -> (i32, i32) {
    %c0_i32 = arith.constant 0 : i32
    %c0_i32_0 = arith.constant 0 : i32
    %c0_i32_1 = arith.constant 0 : i32
    return %c0_i32, %c0_i32_0 : i32, i32
  }
  func.func @transform_3(%arg0: i32) -> (i32, i32) {
    %c0_i32 = arith.constant 0 : i32
    %c0_i32_0 = arith.constant 0 : i32
    %c0_i32_1 = arith.constant 0 : i32
    return %c0_i32, %c0_i32_0 : i32, i32
  }
  func.func @transform_4(%arg0: i32) -> (i32, i32) {
    %c0_i32 = arith.constant 0 : i32
    %c0_i32_0 = arith.constant 0 : i32
    %c0_i32_1 = arith.constant 0 : i32
    return %c0_i32, %c0_i32_0 : i32, i32
  }
  func.func @transform_5(%arg0: i32) -> (i32, i32, i32) {
    %c0_i32 = arith.constant 0 : i32
    %c0_i32_0 = arith.constant 0 : i32
    %c0_i32_1 = arith.constant 0 : i32
    return %c0_i32, %arg0, %c0_i32_0 : i32, i32, i32
  }
}

</mosaic_0001>

<llo_original>
// kernel: word_encoder_forward.1
$region0: #{word_encoder_forward.1}
  #allocation0 [shape = 'u32[]', space=smem, size = 0x4, offset = 0x4, fixed_abs, tag = 'smem constant byte address 0x4 - core index']
  #allocation1 [shape = 'u32[72,128]{1,0:T(1,128)}', space=vmem, size = 0x9000, scoped, tag = 'internal scratch']
  #allocation2 [shape = 'f32[8,8,768]{2,1,0:T(8,128)}', space=vmem, size = 0x30000, scoped, tag = 'scratch operand']
  %s0 = inlined_call_operand.vmem [shape: f32[8,8,256], index: 0, kind: input, shape index: {}]
  %s1 = inlined_call_operand.vmem [shape: bf16[256,768], index: 1, kind: input, shape index: {}]
  %s2 = inlined_call_operand.vmem [shape: bf16[256,768], index: 2, kind: input, shape index: {}]
  %s3 = inlined_call_operand.vmem [shape: f32[1,768], index: 3, kind: input, shape index: {}]
  %s4 = inlined_call_operand.vmem [shape: f32[1,256], index: 4, kind: input, shape index: {}]
  %s5 = inlined_call_operand.vmem [shape: f32[8,8,256], index: 5, kind: output, shape index: {}]
  %s6 = sld [smem:[#allocation0]]
  $region30: #{word_encoder_forward.1} parent=0
    _
  %s8 = ssub.s32 1, %s6
  %s9 = scalar_select 0, %s8, %s6
  // Predicated region
  $region2: #{word_encoder_forward.1} parent=0 // pred_check
    _
  $region3: #{word_encoder_forward.1} parent=0 // pred_check_branch
    %11 = sbr.rel (0) target = $region5
  $region4: #{word_encoder_forward.1} parent=0 // pred_region
    _
  $region5: #{word_encoder_forward.1} parent=0 // pred_fallthru
    _
  // Predicated region
  $region6: #{word_encoder_forward.1} parent=0 // pred_check
    _
  $region7: #{word_encoder_forward.1} parent=0 // pred_check_branch
    %13 = sbr.rel (0) target = $region9
  $region8: #{word_encoder_forward.1} parent=0 // pred_region
    _
  $region9: #{word_encoder_forward.1} parent=0 // pred_fallthru
    _
  // Predicated region
  $region10: #{word_encoder_forward.1} parent=0 // pred_check
    _
  $region11: #{word_encoder_forward.1} parent=0 // pred_check_branch
    %15 = sbr.rel (0) target = $region13
  $region12: #{word_encoder_forward.1} parent=0 // pred_region
    _
  $region13: #{word_encoder_forward.1} parent=0 // pred_fallthru
    _
  // Predicated region
  $region14: #{word_encoder_forward.1} parent=0 // pred_check
    _
  $region15: #{word_encoder_forward.1} parent=0 // pred_check_branch
    %17 = sbr.rel (0) target = $region17
  $region16: #{word_encoder_forward.1} parent=0 // pred_region
    _
  $region17: #{word_encoder_forward.1} parent=0 // pred_fallthru
    _
  // Predicated region
  $region18: #{word_encoder_forward.1} parent=0 // pred_check
    _
  $region19: #{word_encoder_forward.1} parent=0 // pred_check_branch
    %19 = sbr.rel (0) target = $region21
  $region20: #{word_encoder_forward.1} parent=0 // pred_region
    _
  $region21: #{word_encoder_forward.1} parent=0 // pred_fallthru
    _
  %v21 = vld [vmem:[%s0] sm:$0xff]
  %v22 = vld [vmem:[%s0 + $0x8] sm:$0xff]
  %v23 = vld [vmem:[%s0 + $0x10] sm:$0xff]
  %v24 = vld [vmem:[%s0 + $0x18] sm:$0xff]
  %v25 = vld [vmem:[%s0 + $0x20] sm:$0xff]
  %v26 = vld [vmem:[%s0 + $0x28] sm:$0xff]
  %v27 = vld [vmem:[%s0 + $0x30] sm:$0xff]
  %v28 = vld [vmem:[%s0 + $0x38] sm:$0xff]
  %v29 = vld [vmem:[%s0 + $0x40] sm:$0xff]
  %v30 = vld [vmem:[%s0 + $0x48] sm:$0xff]
  %v31 = vld [vmem:[%s0 + $0x50] sm:$0xff]
  %v32 = vld [vmem:[%s0 + $0x58] sm:$0xff]
  %v33 = vld [vmem:[%s0 + $0x60] sm:$0xff]
  %v34 = vld [vmem:[%s0 + $0x68] sm:$0xff]
  %v35 = vld [vmem:[%s0 + $0x70] sm:$0xff]
  %v36 = vld [vmem:[%s0 + $0x78] sm:$0xff]
  %v37 = vpack.c.bf16 %v23, %v21
  %v38 = vpack.c.bf16 %v24, %v22
  %v39 = vpack.c.bf16 %v27, %v25
  %v40 = vpack.c.bf16 %v28, %v26
  %v41 = vpack.c.bf16 %v31, %v29
  %v42 = vpack.c.bf16 %v32, %v30
  %v43 = vpack.c.bf16 %v35, %v33
  %v44 = vpack.c.bf16 %v36, %v34
  %v45 = vld [vmem:[%s1] sm:$0xff]
  %v46 = vld [vmem:[%s1 + $0x8] sm:$0xff]
  %v47 = vld [vmem:[%s1 + $0x10] sm:$0xff]
  %v48 = vld [vmem:[%s1 + $0x18] sm:$0xff]
  %v49 = vld [vmem:[%s1 + $0x20] sm:$0xff]
  %v50 = vld [vmem:[%s1 + $0x28] sm:$0xff]
  %v51 = vld [vmem:[%s1 + $0x30] sm:$0xff]
  %v52 = vld [vmem:[%s1 + $0x38] sm:$0xff]
  %v53 = vld [vmem:[%s1 + $0x40] sm:$0xff]
  %v54 = vld [vmem:[%s1 + $0x48] sm:$0xff]
  %v55 = vld [vmem:[%s1 + $0x50] sm:$0xff]
  %v56 = vld [vmem:[%s1 + $0x58] sm:$0xff]
  %v57 = vld [vmem:[%s1 + $0x60] sm:$0xff]
  %v58 = vld [vmem:[%s1 + $0x68] sm:$0xff]
  %v59 = vld [vmem:[%s1 + $0x70] sm:$0xff]
  %v60 = vld [vmem:[%s1 + $0x78] sm:$0xff]
  %v61 = vld [vmem:[%s1 + $0x80] sm:$0xff]
  %v62 = vld [vmem:[%s1 + $0x88] sm:$0xff]
  %v63 = vld [vmem:[%s1 + $0x90] sm:$0xff]
  %v64 = vld [vmem:[%s1 + $0x98] sm:$0xff]
  %v65 = vld [vmem:[%s1 + $0xa0] sm:$0xff]
  %v66 = vld [vmem:[%s1 + $0xa8] sm:$0xff]
  %v67 = vld [vmem:[%s1 + $0xb0] sm:$0xff]
  %v68 = vld [vmem:[%s1 + $0xb8] sm:$0xff]
  %v69 = vld [vmem:[%s1 + $0xc0] sm:$0xff]
  %v70 = vld [vmem:[%s1 + $0xc8] sm:$0xff]
  %v71 = vld [vmem:[%s1 + $0xd0] sm:$0xff]
  %v72 = vld [vmem:[%s1 + $0xd8] sm:$0xff]
  %v73 = vld [vmem:[%s1 + $0xe0] sm:$0xff]
  %v74 = vld [vmem:[%s1 + $0xe8] sm:$0xff]
  %v75 = vld [vmem:[%s1 + $0xf0] sm:$0xff]
  %v76 = vld [vmem:[%s1 + $0xf8] sm:$0xff]
  %v77 = vld [vmem:[%s1 + $0x100] sm:$0xff]
  %v78 = vld [vmem:[%s1 + $0x108] sm:$0xff]
  %v79 = vld [vmem:[%s1 + $0x110] sm:$0xff]
  %v80 = vld [vmem:[%s1 + $0x118] sm:$0xff]
  %v81 = vld [vmem:[%s1 + $0x120] sm:$0xff]
  %v82 = vld [vmem:[%s1 + $0x128] sm:$0xff]
  %v83 = vld [vmem:[%s1 + $0x130] sm:$0xff]
  %v84 = vld [vmem:[%s1 + $0x138] sm:$0xff]
  %v85 = vld [vmem:[%s1 + $0x140] sm:$0xff]
  %v86 = vld [vmem:[%s1 + $0x148] sm:$0xff]
  %v87 = vld [vmem:[%s1 + $0x150] sm:$0xff]
  %v88 = vld [vmem:[%s1 + $0x158] sm:$0xff]
  %v89 = vld [vmem:[%s1 + $0x160] sm:$0xff]
  %v90 = vld [vmem:[%s1 + $0x168] sm:$0xff]
  %v91 = vld [vmem:[%s1 + $0x170] sm:$0xff]
  %v92 = vld [vmem:[%s1 + $0x178] sm:$0xff]
  %v93 = vld [vmem:[%s1 + $0x180] sm:$0xff]
  %v94 = vld [vmem:[%s1 + $0x188] sm:$0xff]
  %v95 = vld [vmem:[%s1 + $0x190] sm:$0xff]
  %v96 = vld [vmem:[%s1 + $0x198] sm:$0xff]
  %v97 = vld [vmem:[%s1 + $0x1a0] sm:$0xff]
  %v98 = vld [vmem:[%s1 + $0x1a8] sm:$0xff]
  %v99 = vld [vmem:[%s1 + $0x1b0] sm:$0xff]
  %v100 = vld [vmem:[%s1 + $0x1b8] sm:$0xff]
  %v101 = vld [vmem:[%s1 + $0x1c0] sm:$0xff]
  %v102 = vld [vmem:[%s1 + $0x1c8] sm:$0xff]
  %v103 = vld [vmem:[%s1 + $0x1d0] sm:$0xff]
  %v104 = vld [vmem:[%s1 + $0x1d8] sm:$0xff]
  %v105 = vld [vmem:[%s1 + $0x1e0] sm:$0xff]
  %v106 = vld [vmem:[%s1 + $0x1e8] sm:$0xff]
  %v107 = vld [vmem:[%s1 + $0x1f0] sm:$0xff]
  %v108 = vld [vmem:[%s1 + $0x1f8] sm:$0xff]
  %v109 = vld [vmem:[%s1 + $0x200] sm:$0xff]
  %v110 = vld [vmem:[%s1 + $0x208] sm:$0xff]
  %v111 = vld [vmem:[%s1 + $0x210] sm:$0xff]
  %v112 = vld [vmem:[%s1 + $0x218] sm:$0xff]
  %v113 = vld [vmem:[%s1 + $0x220] sm:$0xff]
  %v114 = vld [vmem:[%s1 + $0x228] sm:$0xff]
  %v115 = vld [vmem:[%s1 + $0x230] sm:$0xff]
  %v116 = vld [vmem:[%s1 + $0x238] sm:$0xff]
  %v117 = vld [vmem:[%s1 + $0x240] sm:$0xff]
  %v118 = vld [vmem:[%s1 + $0x248] sm:$0xff]
  %v119 = vld [vmem:[%s1 + $0x250] sm:$0xff]
  %v120 = vld [vmem:[%s1 + $0x258] sm:$0xff]
  %v121 = vld [vmem:[%s1 + $0x260] sm:$0xff]
  %v122 = vld [vmem:[%s1 + $0x268] sm:$0xff]
  %v123 = vld [vmem:[%s1 + $0x270] sm:$0xff]
  %v124 = vld [vmem:[%s1 + $0x278] sm:$0xff]
  %v125 = vld [vmem:[%s1 + $0x280] sm:$0xff]
  %v126 = vld [vmem:[%s1 + $0x288] sm:$0xff]
  %v127 = vld [vmem:[%s1 + $0x290] sm:$0xff]
  %v128 = vld [vmem:[%s1 + $0x298] sm:$0xff]
  %v129 = vld [vmem:[%s1 + $0x2a0] sm:$0xff]
  %v130 = vld [vmem:[%s1 + $0x2a8] sm:$0xff]
  %v131 = vld [vmem:[%s1 + $0x2b0] sm:$0xff]
  %v132 = vld [vmem:[%s1 + $0x2b8] sm:$0xff]
  %v133 = vld [vmem:[%s1 + $0x2c0] sm:$0xff]
  %v134 = vld [vmem:[%s1 + $0x2c8] sm:$0xff]
  %v135 = vld [vmem:[%s1 + $0x2d0] sm:$0xff]
  %v136 = vld [vmem:[%s1 + $0x2d8] sm:$0xff]
  %v137 = vld [vmem:[%s1 + $0x2e0] sm:$0xff]
  %v138 = vld [vmem:[%s1 + $0x2e8] sm:$0xff]
  %v139 = vld [vmem:[%s1 + $0x2f0] sm:$0xff]
  %v140 = vld [vmem:[%s1 + $0x2f8] sm:$0xff]
  %v141 = vld [vmem:[%s3] sm:$0x3f]
  %v143 = vperm.slane %v141, 0
  %v144 = vperm.slane %v141, 1
  %v145 = vperm.slane %v141, 2
  %v146 = vperm.slane %v141, 3
  %v147 = vperm.slane %v141, 4
  %v148 = vperm.slane %v141, 5
  %v251 = vunpack.c.l.b16 %v45
  %v252 = vunpack.c.h.b16 %v45
  %v253 = vunpack.c.l.b16 %v46
  %v254 = vunpack.c.h.b16 %v46
  %v255 = vunpack.c.l.b16 %v47
  %v256 = vunpack.c.h.b16 %v47
  %v257 = vunpack.c.l.b16 %v48
  %v258 = vunpack.c.h.b16 %v48
  %v259 = vunpack.c.l.b16 %v49
  %v260 = vunpack.c.h.b16 %v49
  %v261 = vunpack.c.l.b16 %v50
  %v262 = vunpack.c.h.b16 %v50
  %v263 = vunpack.c.l.b16 %v51
  %v264 = vunpack.c.h.b16 %v51
  %v265 = vunpack.c.l.b16 %v52
  %v266 = vunpack.c.h.b16 %v52
  %v267 = vunpack.c.l.b16 %v53
  %v268 = vunpack.c.h.b16 %v53
  %v269 = vunpack.c.l.b16 %v54
  %v270 = vunpack.c.h.b16 %v54
  %v271 = vunpack.c.l.b16 %v55
  %v272 = vunpack.c.h.b16 %v55
  %v273 = vunpack.c.l.b16 %v56
  %v274 = vunpack.c.h.b16 %v56
  %v275 = vunpack.c.l.b16 %v57
  %v276 = vunpack.c.h.b16 %v57
  %v277 = vunpack.c.l.b16 %v58
  %v278 = vunpack.c.h.b16 %v58
  %v279 = vunpack.c.l.b16 %v59
  %v280 = vunpack.c.h.b16 %v59
  %v281 = vunpack.c.l.b16 %v60
  %v282 = vunpack.c.h.b16 %v60
  %v283 = vunpack.c.l.b16 %v61
  %v284 = vunpack.c.h.b16 %v61
  %v285 = vunpack.c.l.b16 %v62
  %v286 = vunpack.c.h.b16 %v62
  %v287 = vunpack.c.l.b16 %v63
  %v288 = vunpack.c.h.b16 %v63
  %v289 = vunpack.c.l.b16 %v64
  %v290 = vunpack.c.h.b16 %v64
  %v291 = vunpack.c.l.b16 %v65
  %v292 = vunpack.c.h.b16 %v65
  %v293 = vunpack.c.l.b16 %v66
  %v294 = vunpack.c.h.b16 %v66
  %v295 = vunpack.c.l.b16 %v67
  %v296 = vunpack.c.h.b16 %v67
  %v297 = vunpack.c.l.b16 %v68
  %v298 = vunpack.c.h.b16 %v68
  %v299 = vunpack.c.l.b16 %v69
  %v300 = vunpack.c.h.b16 %v69
  %v301 = vunpack.c.l.b16 %v70
  %v302 = vunpack.c.h.b16 %v70
  %v303 = vunpack.c.l.b16 %v71
  %v304 = vunpack.c.h.b16 %v71
  %v305 = vunpack.c.l.b16 %v72
  %v306 = vunpack.c.h.b16 %v72
  %v307 = vunpack.c.l.b16 %v73
  %v308 = vunpack.c.h.b16 %v73
  %v309 = vunpack.c.l.b16 %v74
  %v310 = vunpack.c.h.b16 %v74
  %v311 = vunpack.c.l.b16 %v75
  %v312 = vunpack.c.h.b16 %v75
  %v313 = vunpack.c.l.b16 %v76
  %v314 = vunpack.c.h.b16 %v76
  %v315 = vunpack.c.l.b16 %v77
  %v316 = vunpack.c.h.b16 %v77
  %v317 = vunpack.c.l.b16 %v78
  %v318 = vunpack.c.h.b16 %v78
  %v319 = vunpack.c.l.b16 %v79
  %v320 = vunpack.c.h.b16 %v79
  %v321 = vunpack.c.l.b16 %v80
  %v322 = vunpack.c.h.b16 %v80
  %v323 = vunpack.c.l.b16 %v81
  %v324 = vunpack.c.h.b16 %v81
  %v325 = vunpack.c.l.b16 %v82
  %v326 = vunpack.c.h.b16 %v82
  %v327 = vunpack.c.l.b16 %v83
  %v328 = vunpack.c.h.b16 %v83
  %v329 = vunpack.c.l.b16 %v84
  %v330 = vunpack.c.h.b16 %v84
  %v331 = vunpack.c.l.b16 %v85
  %v332 = vunpack.c.h.b16 %v85
  %v333 = vunpack.c.l.b16 %v86
  %v334 = vunpack.c.h.b16 %v86
  %v335 = vunpack.c.l.b16 %v87
  %v336 = vunpack.c.h.b16 %v87
  %v337 = vunpack.c.l.b16 %v88
  %v338 = vunpack.c.h.b16 %v88
  %v339 = vunpack.c.l.b16 %v89
  %v340 = vunpack.c.h.b16 %v89
  %v341 = vunpack.c.l.b16 %v90
  %v342 = vunpack.c.h.b16 %v90
  %v343 = vunpack.c.l.b16 %v91
  %v344 = vunpack.c.h.b16 %v91
  %v345 = vunpack.c.l.b16 %v92
  %v346 = vunpack.c.h.b16 %v92
  %v347 = vunpack.c.l.b16 %v93
  %v348 = vunpack.c.h.b16 %v93
  %v349 = vunpack.c.l.b16 %v94
  %v350 = vunpack.c.h.b16 %v94
  %v351 = vunpack.c.l.b16 %v95
  %v352 = vunpack.c.h.b16 %v95
  %v353 = vunpack.c.l.b16 %v96
  %v354 = vunpack.c.h.b16 %v96
  %v355 = vunpack.c.l.b16 %v97
  %v356 = vunpack.c.h.b16 %v97
  %v357 = vunpack.c.l.b16 %v98
  %v358 = vunpack.c.h.b16 %v98
  %v359 = vunpack.c.l.b16 %v99
  %v360 = vunpack.c.h.b16 %v99
  %v361 = vunpack.c.l.b16 %v100
  %v362 = vunpack.c.h.b16 %v100
  %v363 = vunpack.c.l.b16 %v101
  %v364 = vunpack.c.h.b16 %v101
  %v365 = vunpack.c.l.b16 %v102
  %v366 = vunpack.c.h.b16 %v102
  %v367 = vunpack.c.l.b16 %v103
  %v368 = vunpack.c.h.b16 %v103
  %v369 = vunpack.c.l.b16 %v104
  %v370 = vunpack.c.h.b16 %v104
  %v371 = vunpack.c.l.b16 %v105
  %v372 = vunpack.c.h.b16 %v105
  %v373 = vunpack.c.l.b16 %v106
  %v374 = vunpack.c.h.b16 %v106
  %v375 = vunpack.c.l.b16 %v107
  %v376 = vunpack.c.h.b16 %v107
  %v377 = vunpack.c.l.b16 %v108
  %v378 = vunpack.c.h.b16 %v108
  %v379 = vunpack.c.l.b16 %v109
  %v380 = vunpack.c.h.b16 %v109
  %v381 = vunpack.c.l.b16 %v110
  %v382 = vunpack.c.h.b16 %v110
  %v383 = vunpack.c.l.b16 %v111
  %v384 = vunpack.c.h.b16 %v111
  %v385 = vunpack.c.l.b16 %v112
  %v386 = vunpack.c.h.b16 %v112
  %v387 = vunpack.c.l.b16 %v113
  %v388 = vunpack.c.h.b16 %v113
  %v389 = vunpack.c.l.b16 %v114
  %v390 = vunpack.c.h.b16 %v114
  %v391 = vunpack.c.l.b16 %v115
  %v392 = vunpack.c.h.b16 %v115
  %v393 = vunpack.c.l.b16 %v116
  %v394 = vunpack.c.h.b16 %v116
  %v395 = vunpack.c.l.b16 %v117
  %v396 = vunpack.c.h.b16 %v117
  %v397 = vunpack.c.l.b16 %v118
  %v398 = vunpack.c.h.b16 %v118
  %v399 = vunpack.c.l.b16 %v119
  %v400 = vunpack.c.h.b16 %v119
  %v401 = vunpack.c.l.b16 %v120
  %v402 = vunpack.c.h.b16 %v120
  %v403 = vunpack.c.l.b16 %v121
  %v404 = vunpack.c.h.b16 %v121
  %v405 = vunpack.c.l.b16 %v122
  %v406 = vunpack.c.h.b16 %v122
  %v407 = vunpack.c.l.b16 %v123
  %v408 = vunpack.c.h.b16 %v123
  %v409 = vunpack.c.l.b16 %v124
  %v410 = vunpack.c.h.b16 %v124
  %v411 = vunpack.c.l.b16 %v125
  %v412 = vunpack.c.h.b16 %v125
  %v413 = vunpack.c.l.b16 %v126
  %v414 = vunpack.c.h.b16 %v126
  %v415 = vunpack.c.l.b16 %v127
  %v416 = vunpack.c.h.b16 %v127
  %v417 = vunpack.c.l.b16 %v128
  %v418 = vunpack.c.h.b16 %v128
  %v419 = vunpack.c.l.b16 %v129
  %v420 = vunpack.c.h.b16 %v129
  %v421 = vunpack.c.l.b16 %v130
  %v422 = vunpack.c.h.b16 %v130
  %v423 = vunpack.c.l.b16 %v131
  %v424 = vunpack.c.h.b16 %v131
  %v425 = vunpack.c.l.b16 %v132
  %v426 = vunpack.c.h.b16 %v132
  %v427 = vunpack.c.l.b16 %v133
  %v428 = vunpack.c.h.b16 %v133
  %v429 = vunpack.c.l.b16 %v134
  %v430 = vunpack.c.h.b16 %v134
  %v431 = vunpack.c.l.b16 %v135
  %v432 = vunpack.c.h.b16 %v135
  %v433 = vunpack.c.l.b16 %v136
  %v434 = vunpack.c.h.b16 %v136
  %v435 = vunpack.c.l.b16 %v137
  %v436 = vunpack.c.h.b16 %v137
  %v437 = vunpack.c.l.b16 %v138
  %v438 = vunpack.c.h.b16 %v138
  %v439 = vunpack.c.l.b16 %v139
  %v440 = vunpack.c.h.b16 %v139
  %v441 = vunpack.c.l.b16 %v140
  %v442 = vunpack.c.h.b16 %v140
  %v443 = vpack.c.b16 %v257, %v251
  %v444 = vpack.c.b16 %v258, %v252
  %v445 = vpack.c.b16 %v259, %v253
  %v446 = vpack.c.b16 %v260, %v254
  %v447 = vpack.c.b16 %v261, %v255
  %v448 = vpack.c.b16 %v262, %v256
  %v449 = vpack.c.b16 %v269, %v263
  %v450 = vpack.c.b16 %v270, %v264
  %v451 = vpack.c.b16 %v271, %v265
  %v452 = vpack.c.b16 %v272, %v266
  %v453 = vpack.c.b16 %v273, %v267
  %v454 = vpack.c.b16 %v274, %v268
  %v455 = vpack.c.b16 %v281, %v275
  %v456 = vpack.c.b16 %v282, %v276
  %v457 = vpack.c.b16 %v283, %v277
  %v458 = vpack.c.b16 %v284, %v278
  %v459 = vpack.c.b16 %v285, %v279
  %v460 = vpack.c.b16 %v286, %v280
  %v461 = vpack.c.b16 %v293, %v287
  %v462 = vpack.c.b16 %v294, %v288
  %v463 = vpack.c.b16 %v295, %v289
  %v464 = vpack.c.b16 %v296, %v290
  %v465 = vpack.c.b16 %v297, %v291
  %v466 = vpack.c.b16 %v298, %v292
  %v467 = vpack.c.b16 %v305, %v299
  %v468 = vpack.c.b16 %v306, %v300
  %v469 = vpack.c.b16 %v307, %v301
  %v470 = vpack.c.b16 %v308, %v302
  %v471 = vpack.c.b16 %v309, %v303
  %v472 = vpack.c.b16 %v310, %v304
  %v473 = vpack.c.b16 %v317, %v311
  %v474 = vpack.c.b16 %v318, %v312
  %v475 = vpack.c.b16 %v319, %v313
  %v476 = vpack.c.b16 %v320, %v314
  %v477 = vpack.c.b16 %v321, %v315
  %v478 = vpack.c.b16 %v322, %v316
  %v479 = vpack.c.b16 %v329, %v323
  %v480 = vpack.c.b16 %v330, %v324
  %v481 = vpack.c.b16 %v331, %v325
  %v482 = vpack.c.b16 %v332, %v326
  %v483 = vpack.c.b16 %v333, %v327
  %v484 = vpack.c.b16 %v334, %v328
  %v485 = vpack.c.b16 %v341, %v335
  %v486 = vpack.c.b16 %v342, %v336
  %v487 = vpack.c.b16 %v343, %v337
  %v488 = vpack.c.b16 %v344, %v338
  %v489 = vpack.c.b16 %v345, %v339
  %v490 = vpack.c.b16 %v346, %v340
  %v491 = vpack.c.b16 %v353, %v347
  %v492 = vpack.c.b16 %v354, %v348
  %v493 = vpack.c.b16 %v355, %v349
  %v494 = vpack.c.b16 %v356, %v350
  %v495 = vpack.c.b16 %v357, %v351
  %v496 = vpack.c.b16 %v358, %v352
  %v497 = vpack.c.b16 %v365, %v359
  %v498 = vpack.c.b16 %v366, %v360
  %v499 = vpack.c.b16 %v367, %v361
  %v500 = vpack.c.b16 %v368, %v362
  %v501 = vpack.c.b16 %v369, %v363
  %v502 = vpack.c.b16 %v370, %v364
  %v503 = vpack.c.b16 %v377, %v371
  %v504 = vpack.c.b16 %v378, %v372
  %v505 = vpack.c.b16 %v379, %v373
  %v506 = vpack.c.b16 %v380, %v374
  %v507 = vpack.c.b16 %v381, %v375
  %v508 = vpack.c.b16 %v382, %v376
  %v509 = vpack.c.b16 %v389, %v383
  %v510 = vpack.c.b16 %v390, %v384
  %v511 = vpack.c.b16 %v391, %v385
  %v512 = vpack.c.b16 %v392, %v386
  %v513 = vpack.c.b16 %v393, %v387
  %v514 = vpack.c.b16 %v394, %v388
  %v515 = vpack.c.b16 %v401, %v395
  %v516 = vpack.c.b16 %v402, %v396
  %v517 = vpack.c.b16 %v403, %v397
  %v518 = vpack.c.b16 %v404, %v398
  %v519 = vpack.c.b16 %v405, %v399
  %v520 = vpack.c.b16 %v406, %v400
  %v521 = vpack.c.b16 %v413, %v407
  %v522 = vpack.c.b16 %v414, %v408
  %v523 = vpack.c.b16 %v415, %v409
  %v524 = vpack.c.b16 %v416, %v410
  %v525 = vpack.c.b16 %v417, %v411
  %v526 = vpack.c.b16 %v418, %v412
  %v527 = vpack.c.b16 %v425, %v419
  %v528 = vpack.c.b16 %v426, %v420
  %v529 = vpack.c.b16 %v427, %v421
  %v530 = vpack.c.b16 %v428, %v422
  %v531 = vpack.c.b16 %v429, %v423
  %v532 = vpack.c.b16 %v430, %v424
  %v533 = vpack.c.b16 %v437, %v431
  %v534 = vpack.c.b16 %v438, %v432
  %v535 = vpack.c.b16 %v439, %v433
  %v536 = vpack.c.b16 %v440, %v434
  %v537 = vpack.c.b16 %v441, %v435
  %v538 = vpack.c.b16 %v442, %v436
  %635 = vmatpush.bf16.msra.mxu0 %v485
  %636 = vmatpush.bf16.msra.mxu0 %v479
  %637 = vmatpush.bf16.msra.mxu0 %v473
  %638 = vmatpush.bf16.msra.mxu0 %v467
  %639 = vmatpush.bf16.msra.mxu0 %v461
  %640 = vmatpush.bf16.msra.mxu0 %v455
  %641 = vmatpush.bf16.msra.mxu0 %v449
  %642 = vmatpush.bf16.msra.mxu0 %v443
  %643 = vmatmul.bf16.gmra.mxu0 %v37
  %v644 = vpop.f32.mrf.mxu0
  %v645 = vadd.f32 %v143, %v644
  %v646 = vpop.f32.mrf.mxu0
  %v647 = vadd.f32 %v143, %v646
  %648 = vmatmul.bf16.gmra.mxu0 %v39
  %v649 = vpop.f32.mrf.mxu0
  %v650 = vadd.f32 %v143, %v649
  %v651 = vpop.f32.mrf.mxu0
  %v652 = vadd.f32 %v143, %v651
  %653 = vmatmul.bf16.gmra.mxu0 %v41
  %v654 = vpop.f32.mrf.mxu0
  %v655 = vadd.f32 %v143, %v654
  %v656 = vpop.f32.mrf.mxu0
  %v657 = vadd.f32 %v143, %v656
  %658 = vmatmul.bf16.gmra.mxu0 %v43
  %v659 = vpop.f32.mrf.mxu0
  %v660 = vadd.f32 %v143, %v659
  %v661 = vpop.f32.mrf.mxu0
  %v662 = vadd.f32 %v143, %v661
  %663 = vdwg.mxu0
  %664 = vmatpush.bf16.msra.mxu0 %v533
  %665 = vmatpush.bf16.msra.mxu0 %v527
  %666 = vmatpush.bf16.msra.mxu0 %v521
  %667 = vmatpush.bf16.msra.mxu0 %v515
  %668 = vmatpush.bf16.msra.mxu0 %v509
  %669 = vmatpush.bf16.msra.mxu0 %v503
  %670 = vmatpush.bf16.msra.mxu0 %v497
  %671 = vmatpush.bf16.msra.mxu0 %v491
  %672 = vmatmul.bf16.gmra.mxu0 %v38
  %v673 = vpop.f32.mrf.mxu0
  %v674 = vadd.f32 %v645, %v673
  %v675 = vpop.f32.mrf.mxu0
  %v676 = vadd.f32 %v647, %v675
  %677 = vmatmul.bf16.gmra.mxu0 %v40
  %v678 = vpop.f32.mrf.mxu0
  %v679 = vadd.f32 %v650, %v678
  %v680 = vpop.f32.mrf.mxu0
  %v681 = vadd.f32 %v652, %v680
  %682 = vmatmul.bf16.gmra.mxu0 %v42
  %v683 = vpop.f32.mrf.mxu0
  %v684 = vadd.f32 %v655, %v683
  %v685 = vpop.f32.mrf.mxu0
  %v686 = vadd.f32 %v657, %v685
  %687 = vmatmul.bf16.gmra.mxu0 %v44
  %v688 = vpop.f32.mrf.mxu0
  %v689 = vadd.f32 %v660, %v688
  %v690 = vpop.f32.mrf.mxu0
  %v691 = vadd.f32 %v662, %v690
  %692 = vdwg.mxu0
  %693 = vmatpush.bf16.msra.mxu0 %v486
  %694 = vmatpush.bf16.msra.mxu0 %v480
  %695 = vmatpush.bf16.msra.mxu0 %v474
  %696 = vmatpush.bf16.msra.mxu0 %v468
  %697 = vmatpush.bf16.msra.mxu0 %v462
  %698 = vmatpush.bf16.msra.mxu0 %v456
  %699 = vmatpush.bf16.msra.mxu0 %v450
  %700 = vmatpush.bf16.msra.mxu0 %v444
  %701 = vmatmul.bf16.gmra.mxu0 %v37
  %v702 = vpop.f32.mrf.mxu0
  %v703 = vadd.f32 %v144, %v702
  %v704 = vpop.f32.mrf.mxu0
  %v705 = vadd.f32 %v144, %v704
  %706 = vmatmul.bf16.gmra.mxu0 %v39
  %v707 = vpop.f32.mrf.mxu0
  %v708 = vadd.f32 %v144, %v707
  %v709 = vpop.f32.mrf.mxu0
  %v710 = vadd.f32 %v144, %v709
  %711 = vmatmul.bf16.gmra.mxu0 %v41
  %v712 = vpop.f32.mrf.mxu0
  %v713 = vadd.f32 %v144, %v712
  %v714 = vpop.f32.mrf.mxu0
  %v715 = vadd.f32 %v144, %v714
  %716 = vmatmul.bf16.gmra.mxu0 %v43
  %v717 = vpop.f32.mrf.mxu0
  %v718 = vadd.f32 %v144, %v717
  %v719 = vpop.f32.mrf.mxu0
  %v720 = vadd.f32 %v144, %v719
  %721 = vdwg.mxu0
  %722 = vmatpush.bf16.msra.mxu0 %v534
  %723 = vmatpush.bf16.msra.mxu0 %v528
  %724 = vmatpush.bf16.msra.mxu0 %v522
  %725 = vmatpush.bf16.msra.mxu0 %v516
  %726 = vmatpush.bf16.msra.mxu0 %v510
  %727 = vmatpush.bf16.msra.mxu0 %v504
  %728 = vmatpush.bf16.msra.mxu0 %v498
  %729 = vmatpush.bf16.msra.mxu0 %v492
  %730 = vmatmul.bf16.gmra.mxu0 %v38
  %v731 = vpop.f32.mrf.mxu0
  %v732 = vadd.f32 %v703, %v731
  %v733 = vpop.f32.mrf.mxu0
  %v734 = vadd.f32 %v705, %v733
  %735 = vmatmul.bf16.gmra.mxu0 %v40
  %v736 = vpop.f32.mrf.mxu0
  %v737 = vadd.f32 %v708, %v736
  %v738 = vpop.f32.mrf.mxu0
  %v739 = vadd.f32 %v710, %v738
  %740 = vmatmul.bf16.gmra.mxu0 %v42
  %v741 = vpop.f32.mrf.mxu0
  %v742 = vadd.f32 %v713, %v741
  %v743 = vpop.f32.mrf.mxu0
  %v744 = vadd.f32 %v715, %v743
  %745 = vmatmul.bf16.gmra.mxu0 %v44
  %v746 = vpop.f32.mrf.mxu0
  %v747 = vadd.f32 %v718, %v746
  %v748 = vpop.f32.mrf.mxu0
  %v749 = vadd.f32 %v720, %v748
  %750 = vdwg.mxu0
  %751 = vmatpush.bf16.msra.mxu0 %v487
  %752 = vmatpush.bf16.msra.mxu0 %v481
  %753 = vmatpush.bf16.msra.mxu0 %v475
  %754 = vmatpush.bf16.msra.mxu0 %v469
  %755 = vmatpush.bf16.msra.mxu0 %v463
  %756 = vmatpush.bf16.msra.mxu0 %v457
  %757 = vmatpush.bf16.msra.mxu0 %v451
  %758 = vmatpush.bf16.msra.mxu0 %v445
  %759 = vmatmul.bf16.gmra.mxu0 %v37
  %v760 = vpop.f32.mrf.mxu0
  %v761 = vadd.f32 %v145, %v760
  %v762 = vpop.f32.mrf.mxu0
  %v763 = vadd.f32 %v145, %v762
  %764 = vmatmul.bf16.gmra.mxu0 %v39
  %v765 = vpop.f32.mrf.mxu0
  %v766 = vadd.f32 %v145, %v765
  %v767 = vpop.f32.mrf.mxu0
  %v768 = vadd.f32 %v145, %v767
  %769 = vmatmul.bf16.gmra.mxu0 %v41
  %v770 = vpop.f32.mrf.mxu0
  %v771 = vadd.f32 %v145, %v770
  %v772 = vpop.f32.mrf.mxu0
  %v773 = vadd.f32 %v145, %v772
  %774 = vmatmul.bf16.gmra.mxu0 %v43
  %v775 = vpop.f32.mrf.mxu0
  %v776 = vadd.f32 %v145, %v775
  %v777 = vpop.f32.mrf.mxu0
  %v778 = vadd.f32 %v145, %v777
  %779 = vdwg.mxu0
  %780 = vmatpush.bf16.msra.mxu0 %v535
  %781 = vmatpush.bf16.msra.mxu0 %v529
  %782 = vmatpush.bf16.msra.mxu0 %v523
  %783 = vmatpush.bf16.msra.mxu0 %v517
  %784 = vmatpush.bf16.msra.mxu0 %v511
  %785 = vmatpush.bf16.msra.mxu0 %v505
  %786 = vmatpush.bf16.msra.mxu0 %v499
  %787 = vmatpush.bf16.msra.mxu0 %v493
  %788 = vmatmul.bf16.gmra.mxu0 %v38
  %v789 = vpop.f32.mrf.mxu0
  %v790 = vadd.f32 %v761, %v789
  %v791 = vpop.f32.mrf.mxu0
  %v792 = vadd.f32 %v763, %v791
  %793 = vmatmul.bf16.gmra.mxu0 %v40
  %v794 = vpop.f32.mrf.mxu0
  %v795 = vadd.f32 %v766, %v794
  %v796 = vpop.f32.mrf.mxu0
  %v797 = vadd.f32 %v768, %v796
  %798 = vmatmul.bf16.gmra.mxu0 %v42
  %v799 = vpop.f32.mrf.mxu0
  %v800 = vadd.f32 %v771, %v799
  %v801 = vpop.f32.mrf.mxu0
  %v802 = vadd.f32 %v773, %v801
  %803 = vmatmul.bf16.gmra.mxu0 %v44
  %v804 = vpop.f32.mrf.mxu0
  %v805 = vadd.f32 %v776, %v804
  %v806 = vpop.f32.mrf.mxu0
  %v807 = vadd.f32 %v778, %v806
  %808 = vdwg.mxu0
  %809 = vmatpush.bf16.msra.mxu0 %v488
  %810 = vmatpush.bf16.msra.mxu0 %v482
  %811 = vmatpush.bf16.msra.mxu0 %v476
  %812 = vmatpush.bf16.msra.mxu0 %v470
  %813 = vmatpush.bf16.msra.mxu0 %v464
  %814 = vmatpush.bf16.msra.mxu0 %v458
  %815 = vmatpush.bf16.msra.mxu0 %v452
  %816 = vmatpush.bf16.msra.mxu0 %v446
  %817 = vmatmul.bf16.gmra.mxu0 %v37
  %v818 = vpop.f32.mrf.mxu0
  %v819 = vadd.f32 %v146, %v818
  %v820 = vpop.f32.mrf.mxu0
  %v821 = vadd.f32 %v146, %v820
  %822 = vmatmul.bf16.gmra.mxu0 %v39
  %v823 = vpop.f32.mrf.mxu0
  %v824 = vadd.f32 %v146, %v823
  %v825 = vpop.f32.mrf.mxu0
  %v826 = vadd.f32 %v146, %v825
  %827 = vmatmul.bf16.gmra.mxu0 %v41
  %v828 = vpop.f32.mrf.mxu0
  %v829 = vadd.f32 %v146, %v828
  %v830 = vpop.f32.mrf.mxu0
  %v831 = vadd.f32 %v146, %v830
  %832 = vmatmul.bf16.gmra.mxu0 %v43
  %v833 = vpop.f32.mrf.mxu0
  %v834 = vadd.f32 %v146, %v833
  %v835 = vpop.f32.mrf.mxu0
  %v836 = vadd.f32 %v146, %v835
  %837 = vdwg.mxu0
  %838 = vmatpush.bf16.msra.mxu0 %v536
  %839 = vmatpush.bf16.msra.mxu0 %v530
  %840 = vmatpush.bf16.msra.mxu0 %v524
  %841 = vmatpush.bf16.msra.mxu0 %v518
  %842 = vmatpush.bf16.msra.mxu0 %v512
  %843 = vmatpush.bf16.msra.mxu0 %v506
  %844 = vmatpush.bf16.msra.mxu0 %v500
  %845 = vmatpush.bf16.msra.mxu0 %v494
  %846 = vmatmul.bf16.gmra.mxu0 %v38
  %v847 = vpop.f32.mrf.mxu0
  %v848 = vadd.f32 %v819, %v847
  %v849 = vpop.f32.mrf.mxu0
  %v850 = vadd.f32 %v821, %v849
  %851 = vmatmul.bf16.gmra.mxu0 %v40
  %v852 = vpop.f32.mrf.mxu0
  %v853 = vadd.f32 %v824, %v852
  %v854 = vpop.f32.mrf.mxu0
  %v855 = vadd.f32 %v826, %v854
  %856 = vmatmul.bf16.gmra.mxu0 %v42
  %v857 = vpop.f32.mrf.mxu0
  %v858 = vadd.f32 %v829, %v857
  %v859 = vpop.f32.mrf.mxu0
  %v860 = vadd.f32 %v831, %v859
  %861 = vmatmul.bf16.gmra.mxu0 %v44
  %v862 = vpop.f32.mrf.mxu0
  %v863 = vadd.f32 %v834, %v862
  %v864 = vpop.f32.mrf.mxu0
  %v865 = vadd.f32 %v836, %v864
  %866 = vdwg.mxu0
  %867 = vmatpush.bf16.msra.mxu0 %v489
  %868 = vmatpush.bf16.msra.mxu0 %v483
  %869 = vmatpush.bf16.msra.mxu0 %v477
  %870 = vmatpush.bf16.msra.mxu0 %v471
  %871 = vmatpush.bf16.msra.mxu0 %v465
  %872 = vmatpush.bf16.msra.mxu0 %v459
  %873 = vmatpush.bf16.msra.mxu0 %v453
  %874 = vmatpush.bf16.msra.mxu0 %v447
  %875 = vmatmul.bf16.gmra.mxu0 %v37
  %v876 = vpop.f32.mrf.mxu0
  %v877 = vadd.f32 %v147, %v876
  %v878 = vpop.f32.mrf.mxu0
  %v879 = vadd.f32 %v147, %v878
  %880 = vmatmul.bf16.gmra.mxu0 %v39
  %v881 = vpop.f32.mrf.mxu0
  %v882 = vadd.f32 %v147, %v881
  %v883 = vpop.f32.mrf.mxu0
  %v884 = vadd.f32 %v147, %v883
  %885 = vmatmul.bf16.gmra.mxu0 %v41
  %v886 = vpop.f32.mrf.mxu0
  %v887 = vadd.f32 %v147, %v886
  %v888 = vpop.f32.mrf.mxu0
  %v889 = vadd.f32 %v147, %v888
  %890 = vmatmul.bf16.gmra.mxu0 %v43
  %v891 = vpop.f32.mrf.mxu0
  %v892 = vadd.f32 %v147, %v891
  %v893 = vpop.f32.mrf.mxu0
  %v894 = vadd.f32 %v147, %v893
  %895 = vdwg.mxu0
  %896 = vmatpush.bf16.msra.mxu0 %v537
  %897 = vmatpush.bf16.msra.mxu0 %v531
  %898 = vmatpush.bf16.msra.mxu0 %v525
  %899 = vmatpush.bf16.msra.mxu0 %v519
  %900 = vmatpush.bf16.msra.mxu0 %v513
  %901 = vmatpush.bf16.msra.mxu0 %v507
  %902 = vmatpush.bf16.msra.mxu0 %v501
  %903 = vmatpush.bf16.msra.mxu0 %v495
  %904 = vmatmul.bf16.gmra.mxu0 %v38
  %v905 = vpop.f32.mrf.mxu0
  %v906 = vadd.f32 %v877, %v905
  %v907 = vpop.f32.mrf.mxu0
  %v908 = vadd.f32 %v879, %v907
  %909 = vmatmul.bf16.gmra.mxu0 %v40
  %v910 = vpop.f32.mrf.mxu0
  %v911 = vadd.f32 %v882, %v910
  %v912 = vpop.f32.mrf.mxu0
  %v913 = vadd.f32 %v884, %v912
  %914 = vmatmul.bf16.gmra.mxu0 %v42
  %v915 = vpop.f32.mrf.mxu0
  %v916 = vadd.f32 %v887, %v915
  %v917 = vpop.f32.mrf.mxu0
  %v918 = vadd.f32 %v889, %v917
  %919 = vmatmul.bf16.gmra.mxu0 %v44
  %v920 = vpop.f32.mrf.mxu0
  %v921 = vadd.f32 %v892, %v920
  %v922 = vpop.f32.mrf.mxu0
  %v923 = vadd.f32 %v894, %v922
  %924 = vdwg.mxu0
  %925 = vmatpush.bf16.msra.mxu0 %v490
  %926 = vmatpush.bf16.msra.mxu0 %v484
  %927 = vmatpush.bf16.msra.mxu0 %v478
  %928 = vmatpush.bf16.msra.mxu0 %v472
  %929 = vmatpush.bf16.msra.mxu0 %v466
  %930 = vmatpush.bf16.msra.mxu0 %v460
  %931 = vmatpush.bf16.msra.mxu0 %v454
  %932 = vmatpush.bf16.msra.mxu0 %v448
  %933 = vmatmul.bf16.gmra.mxu0 %v37
  %v934 = vpop.f32.mrf.mxu0
  %v935 = vadd.f32 %v148, %v934
  %v936 = vpop.f32.mrf.mxu0
  %v937 = vadd.f32 %v148, %v936
  %938 = vmatmul.bf16.gmra.mxu0 %v39
  %v939 = vpop.f32.mrf.mxu0
  %v940 = vadd.f32 %v148, %v939
  %v941 = vpop.f32.mrf.mxu0
  %v942 = vadd.f32 %v148, %v941
  %943 = vmatmul.bf16.gmra.mxu0 %v41
  %v944 = vpop.f32.mrf.mxu0
  %v945 = vadd.f32 %v148, %v944
  %v946 = vpop.f32.mrf.mxu0
  %v947 = vadd.f32 %v148, %v946
  %948 = vmatmul.bf16.gmra.mxu0 %v43
  %v949 = vpop.f32.mrf.mxu0
  %v950 = vadd.f32 %v148, %v949
  %v951 = vpop.f32.mrf.mxu0
  %v952 = vadd.f32 %v148, %v951
  %953 = vdwg.mxu0
  %954 = vmatpush.bf16.msra.mxu0 %v538
  %955 = vmatpush.bf16.msra.mxu0 %v532
  %956 = vmatpush.bf16.msra.mxu0 %v526
  %957 = vmatpush.bf16.msra.mxu0 %v520
  %958 = vmatpush.bf16.msra.mxu0 %v514
  %959 = vmatpush.bf16.msra.mxu0 %v508
  %960 = vmatpush.bf16.msra.mxu0 %v502
  %961 = vmatpush.bf16.msra.mxu0 %v496
  %962 = vmatmul.bf16.gmra.mxu0 %v38
  %v963 = vpop.f32.mrf.mxu0
  %v964 = vadd.f32 %v935, %v963
  %v965 = vpop.f32.mrf.mxu0
  %v966 = vadd.f32 %v937, %v965
  %967 = vmatmul.bf16.gmra.mxu0 %v40
  %v968 = vpop.f32.mrf.mxu0
  %v969 = vadd.f32 %v940, %v968
  %v970 = vpop.f32.mrf.mxu0
  %v971 = vadd.f32 %v942, %v970
  %972 = vmatmul.bf16.gmra.mxu0 %v42
  %v973 = vpop.f32.mrf.mxu0
  %v974 = vadd.f32 %v945, %v973
  %v975 = vpop.f32.mrf.mxu0
  %v976 = vadd.f32 %v947, %v975
  %977 = vmatmul.bf16.gmra.mxu0 %v44
  %v978 = vpop.f32.mrf.mxu0
  %v979 = vadd.f32 %v950, %v978
  %v980 = vpop.f32.mrf.mxu0
  %v981 = vadd.f32 %v952, %v980
  %982 = vdwg.mxu0
  %983 = vst [vmem:[#allocation2] sm:$0xff] %v674
  %984 = vst [vmem:[#allocation2 + $0x8] sm:$0xff] %v732
  %985 = vst [vmem:[#allocation2 + $0x10] sm:$0xff] %v790
  %986 = vst [vmem:[#allocation2 + $0x18] sm:$0xff] %v848
  %987 = vst [vmem:[#allocation2 + $0x20] sm:$0xff] %v906
  %988 = vst [vmem:[#allocation2 + $0x28] sm:$0xff] %v964
  %989 = vst [vmem:[#allocation2 + $0x30] sm:$0xff] %v676
  %990 = vst [vmem:[#allocation2 + $0x38] sm:$0xff] %v734
  %991 = vst [vmem:[#allocation2 + $0x40] sm:$0xff] %v792
  %992 = vst [vmem:[#allocation2 + $0x48] sm:$0xff] %v850
  %993 = vst [vmem:[#allocation2 + $0x50] sm:$0xff] %v908
  %994 = vst [vmem:[#allocation2 + $0x58] sm:$0xff] %v966
  %995 = vst [vmem:[#allocation2 + $0x60] sm:$0xff] %v679
  %996 = vst [vmem:[#allocation2 + $0x68] sm:$0xff] %v737
  %997 = vst [vmem:[#allocation2 + $0x70] sm:$0xff] %v795
  %998 = vst [vmem:[#allocation2 + $0x78] sm:$0xff] %v853
  %999 = vst [vmem:[#allocation2 + $0x80] sm:$0xff] %v911
  %1000 = vst [vmem:[#allocation2 + $0x88] sm:$0xff] %v969
  %1001 = vst [vmem:[#allocation2 + $0x90] sm:$0xff] %v681
  %1002 = vst [vmem:[#allocation2 + $0x98] sm:$0xff] %v739
  %1003 = vst [vmem:[#allocation2 + $0xa0] sm:$0xff] %v797
  %1004 = vst [vmem:[#allocation2 + $0xa8] sm:$0xff] %v855
  %1005 = vst [vmem:[#allocation2 + $0xb0] sm:$0xff] %v913
  %1006 = vst [vmem:[#allocation2 + $0xb8] sm:$0xff] %v971
  %1007 = vst [vmem:[#allocation2 + $0xc0] sm:$0xff] %v684
  %1008 = vst [vmem:[#allocation2 + $0xc8] sm:$0xff] %v742
  %1009 = vst [vmem:[#allocation2 + $0xd0] sm:$0xff] %v800
  %1010 = vst [vmem:[#allocation2 + $0xd8] sm:$0xff] %v858
  %1011 = vst [vmem:[#allocation2 + $0xe0] sm:$0xff] %v916
  %1012 = vst [vmem:[#allocation2 + $0xe8] sm:$0xff] %v974
  %1013 = vst [vmem:[#allocation2 + $0xf0] sm:$0xff] %v686
  %1014 = vst [vmem:[#allocation2 + $0xf8] sm:$0xff] %v744
  %1015 = vst [vmem:[#allocation2 + $0x100] sm:$0xff] %v802
  %1016 = vst [vmem:[#allocation2 + $0x108] sm:$0xff] %v860
  %1017 = vst [vmem:[#allocation2 + $0x110] sm:$0xff] %v918
  %1018 = vst [vmem:[#allocation2 + $0x118] sm:$0xff] %v976
  %1019 = vst [vmem:[#allocation2 + $0x120] sm:$0xff] %v689
  %1020 = vst [vmem:[#allocation2 + $0x128] sm:$0xff] %v747
  %1021 = vst [vmem:[#allocation2 + $0x130] sm:$0xff] %v805
  %1022 = vst [vmem:[#allocation2 + $0x138] sm:$0xff] %v863
  %1023 = vst [vmem:[#allocation2 + $0x140] sm:$0xff] %v921
  %1024 = vst [vmem:[#allocation2 + $0x148] sm:$0xff] %v979
  %1025 = vst [vmem:[#allocation2 + $0x150] sm:$0xff] %v691
  %1026 = vst [vmem:[#allocation2 + $0x158] sm:$0xff] %v749
  %1027 = vst [vmem:[#allocation2 + $0x160] sm:$0xff] %v807
  %1028 = vst [vmem:[#allocation2 + $0x168] sm:$0xff] %v865
  %1029 = vst [vmem:[#allocation2 + $0x170] sm:$0xff] %v923
  %1030 = vst [vmem:[#allocation2 + $0x178] sm:$0xff] %v981
  %v1031 = vld [vmem:[%s2] sm:$0xff]
  %v1032 = vld [vmem:[%s2 + $0x8] sm:$0xff]
  %v1033 = vld [vmem:[%s2 + $0x10] sm:$0xff]
  %v1034 = vld [vmem:[%s2 + $0x18] sm:$0xff]
  %v1035 = vld [vmem:[%s2 + $0x20] sm:$0xff]
  %v1036 = vld [vmem:[%s2 + $0x28] sm:$0xff]
  %v1037 = vld [vmem:[%s2 + $0x30] sm:$0xff]
  %v1038 = vld [vmem:[%s2 + $0x38] sm:$0xff]
  %v1039 = vld [vmem:[%s2 + $0x40] sm:$0xff]
  %v1040 = vld [vmem:[%s2 + $0x48] sm:$0xff]
  %v1041 = vld [vmem:[%s2 + $0x50] sm:$0xff]
  %v1042 = vld [vmem:[%s2 + $0x58] sm:$0xff]
  %v1043 = vld [vmem:[%s2 + $0x60] sm:$0xff]
  %v1044 = vld [vmem:[%s2 + $0x68] sm:$0xff]
  %v1045 = vld [vmem:[%s2 + $0x70] sm:$0xff]
  %v1046 = vld [vmem:[%s2 + $0x78] sm:$0xff]
  %v1047 = vld [vmem:[%s2 + $0x80] sm:$0xff]
  %v1048 = vld [vmem:[%s2 + $0x88] sm:$0xff]
  %v1049 = vld [vmem:[%s2 + $0x90] sm:$0xff]
  %v1050 = vld [vmem:[%s2 + $0x98] sm:$0xff]
  %v1051 = vld [vmem:[%s2 + $0xa0] sm:$0xff]
  %v1052 = vld [vmem:[%s2 + $0xa8] sm:$0xff]
  %v1053 = vld [vmem:[%s2 + $0xb0] sm:$0xff]
  %v1054 = vld [vmem:[%s2 + $0xb8] sm:$0xff]
  %v1055 = vld [vmem:[%s2 + $0xc0] sm:$0xff]
  %v1056 = vld [vmem:[%s2 + $0xc8] sm:$0xff]
  %v1057 = vld [vmem:[%s2 + $0xd0] sm:$0xff]
  %v1058 = vld [vmem:[%s2 + $0xd8] sm:$0xff]
  %v1059 = vld [vmem:[%s2 + $0xe0] sm:$0xff]
  %v1060 = vld [vmem:[%s2 + $0xe8] sm:$0xff]
  %v1061 = vld [vmem:[%s2 + $0xf0] sm:$0xff]
  %v1062 = vld [vmem:[%s2 + $0xf8] sm:$0xff]
  %v1063 = vld [vmem:[%s2 + $0x100] sm:$0xff]
  %v1064 = vld [vmem:[%s2 + $0x108] sm:$0xff]
  %v1065 = vld [vmem:[%s2 + $0x110] sm:$0xff]
  %v1066 = vld [vmem:[%s2 + $0x118] sm:$0xff]
  %v1067 = vld [vmem:[%s2 + $0x120] sm:$0xff]
  %v1068 = vld [vmem:[%s2 + $0x128] sm:$0xff]
  %v1069 = vld [vmem:[%s2 + $0x130] sm:$0xff]
  %v1070 = vld [vmem:[%s2 + $0x138] sm:$0xff]
  %v1071 = vld [vmem:[%s2 + $0x140] sm:$0xff]
  %v1072 = vld [vmem:[%s2 + $0x148] sm:$0xff]
  %v1073 = vld [vmem:[%s2 + $0x150] sm:$0xff]
  %v1074 = vld [vmem:[%s2 + $0x158] sm:$0xff]
  %v1075 = vld [vmem:[%s2 + $0x160] sm:$0xff]
  %v1076 = vld [vmem:[%s2 + $0x168] sm:$0xff]
  %v1077 = vld [vmem:[%s2 + $0x170] sm:$0xff]
  %v1078 = vld [vmem:[%s2 + $0x178] sm:$0xff]
  %v1079 = vld [vmem:[%s2 + $0x180] sm:$0xff]
  %v1080 = vld [vmem:[%s2 + $0x188] sm:$0xff]
  %v1081 = vld [vmem:[%s2 + $0x190] sm:$0xff]
  %v1082 = vld [vmem:[%s2 + $0x198] sm:$0xff]
  %v1083 = vld [vmem:[%s2 + $0x1a0] sm:$0xff]
  %v1084 = vld [vmem:[%s2 + $0x1a8] sm:$0xff]
  %v1085 = vld [vmem:[%s2 + $0x1b0] sm:$0xff]
  %v1086 = vld [vmem:[%s2 + $0x1b8] sm:$0xff]
  %v1087 = vld [vmem:[%s2 + $0x1c0] sm:$0xff]
  %v1088 = vld [vmem:[%s2 + $0x1c8] sm:$0xff]
  %v1089 = vld [vmem:[%s2 + $0x1d0] sm:$0xff]
  %v1090 = vld [vmem:[%s2 + $0x1d8] sm:$0xff]
  %v1091 = vld [vmem:[%s2 + $0x1e0] sm:$0xff]
  %v1092 = vld [vmem:[%s2 + $0x1e8] sm:$0xff]
  %v1093 = vld [vmem:[%s2 + $0x1f0] sm:$0xff]
  %v1094 = vld [vmem:[%s2 + $0x1f8] sm:$0xff]
  %v1095 = vld [vmem:[%s2 + $0x200] sm:$0xff]
  %v1096 = vld [vmem:[%s2 + $0x208] sm:$0xff]
  %v1097 = vld [vmem:[%s2 + $0x210] sm:$0xff]
  %v1098 = vld [vmem:[%s2 + $0x218] sm:$0xff]
  %v1099 = vld [vmem:[%s2 + $0x220] sm:$0xff]
  %v1100 = vld [vmem:[%s2 + $0x228] sm:$0xff]
  %v1101 = vld [vmem:[%s2 + $0x230] sm:$0xff]
  %v1102 = vld [vmem:[%s2 + $0x238] sm:$0xff]
  %v1103 = vld [vmem:[%s2 + $0x240] sm:$0xff]
  %v1104 = vld [vmem:[%s2 + $0x248] sm:$0xff]
  %v1105 = vld [vmem:[%s2 + $0x250] sm:$0xff]
  %v1106 = vld [vmem:[%s2 + $0x258] sm:$0xff]
  %v1107 = vld [vmem:[%s2 + $0x260] sm:$0xff]
  %v1108 = vld [vmem:[%s2 + $0x268] sm:$0xff]
  %v1109 = vld [vmem:[%s2 + $0x270] sm:$0xff]
  %v1110 = vld [vmem:[%s2 + $0x278] sm:$0xff]
  %v1111 = vld [vmem:[%s2 + $0x280] sm:$0xff]
  %v1112 = vld [vmem:[%s2 + $0x288] sm:$0xff]
  %v1113 = vld [vmem:[%s2 + $0x290] sm:$0xff]
  %v1114 = vld [vmem:[%s2 + $0x298] sm:$0xff]
  %v1115 = vld [vmem:[%s2 + $0x2a0] sm:$0xff]
  %v1116 = vld [vmem:[%s2 + $0x2a8] sm:$0xff]
  %v1117 = vld [vmem:[%s2 + $0x2b0] sm:$0xff]
  %v1118 = vld [vmem:[%s2 + $0x2b8] sm:$0xff]
  %v1119 = vld [vmem:[%s2 + $0x2c0] sm:$0xff]
  %v1120 = vld [vmem:[%s2 + $0x2c8] sm:$0xff]
  %v1121 = vld [vmem:[%s2 + $0x2d0] sm:$0xff]
  %v1122 = vld [vmem:[%s2 + $0x2d8] sm:$0xff]
  %v1123 = vld [vmem:[%s2 + $0x2e0] sm:$0xff]
  %v1124 = vld [vmem:[%s2 + $0x2e8] sm:$0xff]
  %v1125 = vld [vmem:[%s2 + $0x2f0] sm:$0xff]
  %v1126 = vld [vmem:[%s2 + $0x2f8] sm:$0xff]
  %v1127 = vld [vmem:[%s4] sm:$0x3]
  %v1129 = vperm.slane %v1127, 0
  %v1130 = vperm.slane %v1127, 1
  %v1133 = vld [vmem:[#allocation2] sm:$0xff]
  %v1134 = vld [vmem:[#allocation2 + $0x8] sm:$0xff]
  %v1135 = vld [vmem:[#allocation2 + $0x10] sm:$0xff]
  %v1136 = vld [vmem:[#allocation2 + $0x18] sm:$0xff]
  %v1137 = vld [vmem:[#allocation2 + $0x20] sm:$0xff]
  %v1138 = vld [vmem:[#allocation2 + $0x28] sm:$0xff]
  %v1235 = vunpack.c.l.b16 %v1031
  %v1236 = vunpack.c.h.b16 %v1031
  %v1237 = vunpack.c.l.b16 %v1032
  %v1238 = vunpack.c.h.b16 %v1032
  %v1239 = vunpack.c.l.b16 %v1033
  %v1240 = vunpack.c.h.b16 %v1033
  %v1241 = vunpack.c.l.b16 %v1034
  %v1242 = vunpack.c.h.b16 %v1034
  %v1243 = vunpack.c.l.b16 %v1035
  %v1244 = vunpack.c.h.b16 %v1035
  %v1245 = vunpack.c.l.b16 %v1036
  %v1246 = vunpack.c.h.b16 %v1036
  %v1247 = vunpack.c.l.b16 %v1037
  %v1248 = vunpack.c.h.b16 %v1037
  %v1249 = vunpack.c.l.b16 %v1038
  %v1250 = vunpack.c.h.b16 %v1038
  %v1251 = vunpack.c.l.b16 %v1039
  %v1252 = vunpack.c.h.b16 %v1039
  %v1253 = vunpack.c.l.b16 %v1040
  %v1254 = vunpack.c.h.b16 %v1040
  %v1255 = vunpack.c.l.b16 %v1041
  %v1256 = vunpack.c.h.b16 %v1041
  %v1257 = vunpack.c.l.b16 %v1042
  %v1258 = vunpack.c.h.b16 %v1042
  %v1259 = vunpack.c.l.b16 %v1043
  %v1260 = vunpack.c.h.b16 %v1043
  %v1261 = vunpack.c.l.b16 %v1044
  %v1262 = vunpack.c.h.b16 %v1044
  %v1263 = vunpack.c.l.b16 %v1045
  %v1264 = vunpack.c.h.b16 %v1045
  %v1265 = vunpack.c.l.b16 %v1046
  %v1266 = vunpack.c.h.b16 %v1046
  %v1267 = vunpack.c.l.b16 %v1047
  %v1268 = vunpack.c.h.b16 %v1047
  %v1269 = vunpack.c.l.b16 %v1048
  %v1270 = vunpack.c.h.b16 %v1048
  %v1271 = vunpack.c.l.b16 %v1049
  %v1272 = vunpack.c.h.b16 %v1049
  %v1273 = vunpack.c.l.b16 %v1050
  %v1274 = vunpack.c.h.b16 %v1050
  %v1275 = vunpack.c.l.b16 %v1051
  %v1276 = vunpack.c.h.b16 %v1051
  %v1277 = vunpack.c.l.b16 %v1052
  %v1278 = vunpack.c.h.b16 %v1052
  %v1279 = vunpack.c.l.b16 %v1053
  %v1280 = vunpack.c.h.b16 %v1053
  %v1281 = vunpack.c.l.b16 %v1054
  %v1282 = vunpack.c.h.b16 %v1054
  %v1283 = vunpack.c.l.b16 %v1055
  %v1284 = vunpack.c.h.b16 %v1055
  %v1285 = vunpack.c.l.b16 %v1056
  %v1286 = vunpack.c.h.b16 %v1056
  %v1287 = vunpack.c.l.b16 %v1057
  %v1288 = vunpack.c.h.b16 %v1057
  %v1289 = vunpack.c.l.b16 %v1058
  %v1290 = vunpack.c.h.b16 %v1058
  %v1291 = vunpack.c.l.b16 %v1059
  %v1292 = vunpack.c.h.b16 %v1059
  %v1293 = vunpack.c.l.b16 %v1060
  %v1294 = vunpack.c.h.b16 %v1060
  %v1295 = vunpack.c.l.b16 %v1061
  %v1296 = vunpack.c.h.b16 %v1061
  %v1297 = vunpack.c.l.b16 %v1062
  %v1298 = vunpack.c.h.b16 %v1062
  %v1299 = vunpack.c.l.b16 %v1063
  %v1300 = vunpack.c.h.b16 %v1063
  %v1301 = vunpack.c.l.b16 %v1064
  %v1302 = vunpack.c.h.b16 %v1064
  %v1303 = vunpack.c.l.b16 %v1065
  %v1304 = vunpack.c.h.b16 %v1065
  %v1305 = vunpack.c.l.b16 %v1066
  %v1306 = vunpack.c.h.b16 %v1066
  %v1307 = vunpack.c.l.b16 %v1067
  %v1308 = vunpack.c.h.b16 %v1067
  %v1309 = vunpack.c.l.b16 %v1068
  %v1310 = vunpack.c.h.b16 %v1068
  %v1311 = vunpack.c.l.b16 %v1069
  %v1312 = vunpack.c.h.b16 %v1069
  %v1313 = vunpack.c.l.b16 %v1070
  %v1314 = vunpack.c.h.b16 %v1070
  %v1315 = vunpack.c.l.b16 %v1071
  %v1316 = vunpack.c.h.b16 %v1071
  %v1317 = vunpack.c.l.b16 %v1072
  %v1318 = vunpack.c.h.b16 %v1072
  %v1319 = vunpack.c.l.b16 %v1073
  %v1320 = vunpack.c.h.b16 %v1073
  %v1321 = vunpack.c.l.b16 %v1074
  %v1322 = vunpack.c.h.b16 %v1074
  %v1323 = vunpack.c.l.b16 %v1075
  %v1324 = vunpack.c.h.b16 %v1075
  %v1325 = vunpack.c.l.b16 %v1076
  %v1326 = vunpack.c.h.b16 %v1076
  %v1327 = vunpack.c.l.b16 %v1077
  %v1328 = vunpack.c.h.b16 %v1077
  %v1329 = vunpack.c.l.b16 %v1078
  %v1330 = vunpack.c.h.b16 %v1078
  %v1331 = vunpack.c.l.b16 %v1079
  %v1332 = vunpack.c.h.b16 %v1079
  %v1333 = vunpack.c.l.b16 %v1080
  %v1334 = vunpack.c.h.b16 %v1080
  %v1335 = vunpack.c.l.b16 %v1081
  %v1336 = vunpack.c.h.b16 %v1081
  %v1337 = vunpack.c.l.b16 %v1082
  %v1338 = vunpack.c.h.b16 %v1082
  %v1339 = vunpack.c.l.b16 %v1083
  %v1340 = vunpack.c.h.b16 %v1083
  %v1341 = vunpack.c.l.b16 %v1084
  %v1342 = vunpack.c.h.b16 %v1084
  %v1343 = vunpack.c.l.b16 %v1085
  %v1344 = vunpack.c.h.b16 %v1085
  %v1345 = vunpack.c.l.b16 %v1086
  %v1346 = vunpack.c.h.b16 %v1086
  %v1347 = vunpack.c.l.b16 %v1087
  %v1348 = vunpack.c.h.b16 %v1087
  %v1349 = vunpack.c.l.b16 %v1088
  %v1350 = vunpack.c.h.b16 %v1088
  %v1351 = vunpack.c.l.b16 %v1089
  %v1352 = vunpack.c.h.b16 %v1089
  %v1353 = vunpack.c.l.b16 %v1090
  %v1354 = vunpack.c.h.b16 %v1090
  %v1355 = vunpack.c.l.b16 %v1091
  %v1356 = vunpack.c.h.b16 %v1091
  %v1357 = vunpack.c.l.b16 %v1092
  %v1358 = vunpack.c.h.b16 %v1092
  %v1359 = vunpack.c.l.b16 %v1093
  %v1360 = vunpack.c.h.b16 %v1093
  %v1361 = vunpack.c.l.b16 %v1094
  %v1362 = vunpack.c.h.b16 %v1094
  %v1363 = vunpack.c.l.b16 %v1095
  %v1364 = vunpack.c.h.b16 %v1095
  %v1365 = vunpack.c.l.b16 %v1096
  %v1366 = vunpack.c.h.b16 %v1096
  %v1367 = vunpack.c.l.b16 %v1097
  %v1368 = vunpack.c.h.b16 %v1097
  %v1369 = vunpack.c.l.b16 %v1098
  %v1370 = vunpack.c.h.b16 %v1098
  %v1371 = vunpack.c.l.b16 %v1099
  %v1372 = vunpack.c.h.b16 %v1099
  %v1373 = vunpack.c.l.b16 %v1100
  %v1374 = vunpack.c.h.b16 %v1100
  %v1375 = vunpack.c.l.b16 %v1101
  %v1376 = vunpack.c.h.b16 %v1101
  %v1377 = vunpack.c.l.b16 %v1102
  %v1378 = vunpack.c.h.b16 %v1102
  %v1379 = vunpack.c.l.b16 %v1103
  %v1380 = vunpack.c.h.b16 %v1103
  %v1381 = vunpack.c.l.b16 %v1104
  %v1382 = vunpack.c.h.b16 %v1104
  %v1383 = vunpack.c.l.b16 %v1105
  %v1384 = vunpack.c.h.b16 %v1105
  %v1385 = vunpack.c.l.b16 %v1106
  %v1386 = vunpack.c.h.b16 %v1106
  %v1387 = vunpack.c.l.b16 %v1107
  %v1388 = vunpack.c.h.b16 %v1107
  %v1389 = vunpack.c.l.b16 %v1108
  %v1390 = vunpack.c.h.b16 %v1108
  %v1391 = vunpack.c.l.b16 %v1109
  %v1392 = vunpack.c.h.b16 %v1109
  %v1393 = vunpack.c.l.b16 %v1110
  %v1394 = vunpack.c.h.b16 %v1110
  %v1395 = vunpack.c.l.b16 %v1111
  %v1396 = vunpack.c.h.b16 %v1111
  %v1397 = vunpack.c.l.b16 %v1112
  %v1398 = vunpack.c.h.b16 %v1112
  %v1399 = vunpack.c.l.b16 %v1113
  %v1400 = vunpack.c.h.b16 %v1113
  %v1401 = vunpack.c.l.b16 %v1114
  %v1402 = vunpack.c.h.b16 %v1114
  %v1403 = vunpack.c.l.b16 %v1115
  %v1404 = vunpack.c.h.b16 %v1115
  %v1405 = vunpack.c.l.b16 %v1116
  %v1406 = vunpack.c.h.b16 %v1116
  %v1407 = vunpack.c.l.b16 %v1117
  %v1408 = vunpack.c.h.b16 %v1117
  %v1409 = vunpack.c.l.b16 %v1118
  %v1410 = vunpack.c.h.b16 %v1118
  %v1411 = vunpack.c.l.b16 %v1119
  %v1412 = vunpack.c.h.b16 %v1119
  %v1413 = vunpack.c.l.b16 %v1120
  %v1414 = vunpack.c.h.b16 %v1120
  %v1415 = vunpack.c.l.b16 %v1121
  %v1416 = vunpack.c.h.b16 %v1121
  %v1417 = vunpack.c.l.b16 %v1122
  %v1418 = vunpack.c.h.b16 %v1122
  %v1419 = vunpack.c.l.b16 %v1123
  %v1420 = vunpack.c.h.b16 %v1123
  %v1421 = vunpack.c.l.b16 %v1124
  %v1422 = vunpack.c.h.b16 %v1124
  %v1423 = vunpack.c.l.b16 %v1125
  %v1424 = vunpack.c.h.b16 %v1125
  %v1425 = vunpack.c.l.b16 %v1126
  %v1426 = vunpack.c.h.b16 %v1126
  %v1427 = vpack.c.b16 %v1241, %v1235
  %v1428 = vpack.c.b16 %v1242, %v1236
  %v1429 = vpack.c.b16 %v1243, %v1237
  %v1430 = vpack.c.b16 %v1244, %v1238
  %v1431 = vpack.c.b16 %v1245, %v1239
  %v1432 = vpack.c.b16 %v1246, %v1240
  %v1433 = vpack.c.b16 %v1253, %v1247
  %v1434 = vpack.c.b16 %v1254, %v1248
  %v1435 = vpack.c.b16 %v1255, %v1249
  %v1436 = vpack.c.b16 %v1256, %v1250
  %v1437 = vpack.c.b16 %v1257, %v1251
  %v1438 = vpack.c.b16 %v1258, %v1252
  %v1439 = vpack.c.b16 %v1265, %v1259
  %v1440 = vpack.c.b16 %v1266, %v1260
  %v1441 = vpack.c.b16 %v1267, %v1261
  %v1442 = vpack.c.b16 %v1268, %v1262
  %v1443 = vpack.c.b16 %v1269, %v1263
  %v1444 = vpack.c.b16 %v1270, %v1264
  %v1445 = vpack.c.b16 %v1277, %v1271
  %v1446 = vpack.c.b16 %v1278, %v1272
  %v1447 = vpack.c.b16 %v1279, %v1273
  %v1448 = vpack.c.b16 %v1280, %v1274
  %v1449 = vpack.c.b16 %v1281, %v1275
  %v1450 = vpack.c.b16 %v1282, %v1276
  %v1451 = vpack.c.b16 %v1289, %v1283
  %v1452 = vpack.c.b16 %v1290, %v1284
  %v1453 = vpack.c.b16 %v1291, %v1285
  %v1454 = vpack.c.b16 %v1292, %v1286
  %v1455 = vpack.c.b16 %v1293, %v1287
  %v1456 = vpack.c.b16 %v1294, %v1288
  %v1457 = vpack.c.b16 %v1301, %v1295
  %v1458 = vpack.c.b16 %v1302, %v1296
  %v1459 = vpack.c.b16 %v1303, %v1297
  %v1460 = vpack.c.b16 %v1304, %v1298
  %v1461 = vpack.c.b16 %v1305, %v1299
  %v1462 = vpack.c.b16 %v1306, %v1300
  %v1463 = vpack.c.b16 %v1313, %v1307
  %v1464 = vpack.c.b16 %v1314, %v1308
  %v1465 = vpack.c.b16 %v1315, %v1309
  %v1466 = vpack.c.b16 %v1316, %v1310
  %v1467 = vpack.c.b16 %v1317, %v1311
  %v1468 = vpack.c.b16 %v1318, %v1312
  %v1469 = vpack.c.b16 %v1325, %v1319
  %v1470 = vpack.c.b16 %v1326, %v1320
  %v1471 = vpack.c.b16 %v1327, %v1321
  %v1472 = vpack.c.b16 %v1328, %v1322
  %v1473 = vpack.c.b16 %v1329, %v1323
  %v1474 = vpack.c.b16 %v1330, %v1324
  %v1475 = vpack.c.b16 %v1337, %v1331
  %v1476 = vpack.c.b16 %v1338, %v1332
  %v1477 = vpack.c.b16 %v1339, %v1333
  %v1478 = vpack.c.b16 %v1340, %v1334
  %v1479 = vpack.c.b16 %v1341, %v1335
  %v1480 = vpack.c.b16 %v1342, %v1336
  %v1481 = vpack.c.b16 %v1349, %v1343
  %v1482 = vpack.c.b16 %v1350, %v1344
  %v1483 = vpack.c.b16 %v1351, %v1345
  %v1484 = vpack.c.b16 %v1352, %v1346
  %v1485 = vpack.c.b16 %v1353, %v1347
  %v1486 = vpack.c.b16 %v1354, %v1348
  %v1487 = vpack.c.b16 %v1361, %v1355
  %v1488 = vpack.c.b16 %v1362, %v1356
  %v1489 = vpack.c.b16 %v1363, %v1357
  %v1490 = vpack.c.b16 %v1364, %v1358
  %v1491 = vpack.c.b16 %v1365, %v1359
  %v1492 = vpack.c.b16 %v1366, %v1360
  %v1493 = vpack.c.b16 %v1373, %v1367
  %v1494 = vpack.c.b16 %v1374, %v1368
  %v1495 = vpack.c.b16 %v1375, %v1369
  %v1496 = vpack.c.b16 %v1376, %v1370
  %v1497 = vpack.c.b16 %v1377, %v1371
  %v1498 = vpack.c.b16 %v1378, %v1372
  %v1499 = vpack.c.b16 %v1385, %v1379
  %v1500 = vpack.c.b16 %v1386, %v1380
  %v1501 = vpack.c.b16 %v1387, %v1381
  %v1502 = vpack.c.b16 %v1388, %v1382
  %v1503 = vpack.c.b16 %v1389, %v1383
  %v1504 = vpack.c.b16 %v1390, %v1384
  %v1505 = vpack.c.b16 %v1397, %v1391
  %v1506 = vpack.c.b16 %v1398, %v1392
  %v1507 = vpack.c.b16 %v1399, %v1393
  %v1508 = vpack.c.b16 %v1400, %v1394
  %v1509 = vpack.c.b16 %v1401, %v1395
  %v1510 = vpack.c.b16 %v1402, %v1396
  %v1511 = vpack.c.b16 %v1409, %v1403
  %v1512 = vpack.c.b16 %v1410, %v1404
  %v1513 = vpack.c.b16 %v1411, %v1405
  %v1514 = vpack.c.b16 %v1412, %v1406
  %v1515 = vpack.c.b16 %v1413, %v1407
  %v1516 = vpack.c.b16 %v1414, %v1408
  %v1517 = vpack.c.b16 %v1421, %v1415
  %v1518 = vpack.c.b16 %v1422, %v1416
  %v1519 = vpack.c.b16 %v1423, %v1417
  %v1520 = vpack.c.b16 %v1424, %v1418
  %v1521 = vpack.c.b16 %v1425, %v1419
  %v1522 = vpack.c.b16 %v1426, %v1420
  %1619 = vmatpush.bf16.msra.mxu0 %v1469
  %1620 = vmatpush.bf16.msra.mxu0 %v1463
  %1621 = vmatpush.bf16.msra.mxu0 %v1457
  %1622 = vmatpush.bf16.msra.mxu0 %v1451
  %1623 = vmatpush.bf16.msra.mxu0 %v1445
  %1624 = vmatpush.bf16.msra.mxu0 %v1439
  %1625 = vmatpush.bf16.msra.mxu0 %v1433
  %1626 = vmatpush.bf16.msra.mxu0 %v1427
  %1627 = vmatmul.bf16.gmra.mxu0 0
  %v1628 = vpop.f32.mrf.mxu0
  %v1629 = vadd.f32 0.0, %v1628
  %v1630 = vpop.f32.mrf.mxu0
  %1631 = vdwg.mxu0
  %1632 = vmatpush.bf16.msra.mxu0 %v1517
  %1633 = vmatpush.bf16.msra.mxu0 %v1511
  %1634 = vmatpush.bf16.msra.mxu0 %v1505
  %1635 = vmatpush.bf16.msra.mxu0 %v1499
  %1636 = vmatpush.bf16.msra.mxu0 %v1493
  %1637 = vmatpush.bf16.msra.mxu0 %v1487
  %1638 = vmatpush.bf16.msra.mxu0 %v1481
  %1639 = vmatpush.bf16.msra.mxu0 %v1475
  %1640 = vmatmul.bf16.gmra.mxu0 0
  %v1641 = vpop.f32.mrf.mxu0
  %v1642 = vadd.f32 %v1629, %v1641
  %v1643 = vpop.f32.mrf.mxu0
  %1644 = vdwg.mxu0
  %1645 = vmatpush.bf16.msra.mxu0 %v1470
  %1646 = vmatpush.bf16.msra.mxu0 %v1464
  %1647 = vmatpush.bf16.msra.mxu0 %v1458
  %1648 = vmatpush.bf16.msra.mxu0 %v1452
  %1649 = vmatpush.bf16.msra.mxu0 %v1446
  %1650 = vmatpush.bf16.msra.mxu0 %v1440
  %1651 = vmatpush.bf16.msra.mxu0 %v1434
  %1652 = vmatpush.bf16.msra.mxu0 %v1428
  %1653 = vmatmul.bf16.gmra.mxu0 0
  %v1654 = vpop.f32.mrf.mxu0
  %v1655 = vadd.f32 0.0, %v1654
  %v1656 = vpop.f32.mrf.mxu0
  %1657 = vdwg.mxu0
  %1658 = vmatpush.bf16.msra.mxu0 %v1518
  %1659 = vmatpush.bf16.msra.mxu0 %v1512
  %1660 = vmatpush.bf16.msra.mxu0 %v1506
  %1661 = vmatpush.bf16.msra.mxu0 %v1500
  %1662 = vmatpush.bf16.msra.mxu0 %v1494
  %1663 = vmatpush.bf16.msra.mxu0 %v1488
  %1664 = vmatpush.bf16.msra.mxu0 %v1482
  %1665 = vmatpush.bf16.msra.mxu0 %v1476
  %1666 = vmatmul.bf16.gmra.mxu0 0
  %v1667 = vpop.f32.mrf.mxu0
  %v1668 = vadd.f32 %v1655, %v1667
  %v1669 = vpop.f32.mrf.mxu0
  %1670 = vdwg.mxu0
  %1671 = vmatpush.bf16.msra.mxu0 %v1471
  %1672 = vmatpush.bf16.msra.mxu0 %v1465
  %1673 = vmatpush.bf16.msra.mxu0 %v1459
  %1674 = vmatpush.bf16.msra.mxu0 %v1453
  %1675 = vmatpush.bf16.msra.mxu0 %v1447
  %1676 = vmatpush.bf16.msra.mxu0 %v1441
  %1677 = vmatpush.bf16.msra.mxu0 %v1435
  %1678 = vmatpush.bf16.msra.mxu0 %v1429
  %1679 = vmatmul.bf16.gmra.mxu0 0
  %v1680 = vpop.f32.mrf.mxu0
  %v1681 = vadd.f32 0.0, %v1680
  %v1682 = vpop.f32.mrf.mxu0
  %1683 = vdwg.mxu0
  %1684 = vmatpush.bf16.msra.mxu0 %v1519
  %1685 = vmatpush.bf16.msra.mxu0 %v1513
  %1686 = vmatpush.bf16.msra.mxu0 %v1507
  %1687 = vmatpush.bf16.msra.mxu0 %v1501
  %1688 = vmatpush.bf16.msra.mxu0 %v1495
  %1689 = vmatpush.bf16.msra.mxu0 %v1489
  %1690 = vmatpush.bf16.msra.mxu0 %v1483
  %1691 = vmatpush.bf16.msra.mxu0 %v1477
  %1692 = vmatmul.bf16.gmra.mxu0 0
  %v1693 = vpop.f32.mrf.mxu0
  %v1694 = vadd.f32 %v1681, %v1693
  %v1695 = vpop.f32.mrf.mxu0
  %1696 = vdwg.mxu0
  %1697 = vmatpush.bf16.msra.mxu0 %v1472
  %1698 = vmatpush.bf16.msra.mxu0 %v1466
  %1699 = vmatpush.bf16.msra.mxu0 %v1460
  %1700 = vmatpush.bf16.msra.mxu0 %v1454
  %1701 = vmatpush.bf16.msra.mxu0 %v1448
  %1702 = vmatpush.bf16.msra.mxu0 %v1442
  %1703 = vmatpush.bf16.msra.mxu0 %v1436
  %1704 = vmatpush.bf16.msra.mxu0 %v1430
  %1705 = vmatmul.bf16.gmra.mxu0 0
  %v1706 = vpop.f32.mrf.mxu0
  %v1707 = vadd.f32 0.0, %v1706
  %v1708 = vpop.f32.mrf.mxu0
  %1709 = vdwg.mxu0
  %1710 = vmatpush.bf16.msra.mxu0 %v1520
  %1711 = vmatpush.bf16.msra.mxu0 %v1514
  %1712 = vmatpush.bf16.msra.mxu0 %v1508
  %1713 = vmatpush.bf16.msra.mxu0 %v1502
  %1714 = vmatpush.bf16.msra.mxu0 %v1496
  %1715 = vmatpush.bf16.msra.mxu0 %v1490
  %1716 = vmatpush.bf16.msra.mxu0 %v1484
  %1717 = vmatpush.bf16.msra.mxu0 %v1478
  %1718 = vmatmul.bf16.gmra.mxu0 0
  %v1719 = vpop.f32.mrf.mxu0
  %v1720 = vadd.f32 %v1707, %v1719
  %v1721 = vpop.f32.mrf.mxu0
  %1722 = vdwg.mxu0
  %1723 = vmatpush.bf16.msra.mxu0 %v1473
  %1724 = vmatpush.bf16.msra.mxu0 %v1467
  %1725 = vmatpush.bf16.msra.mxu0 %v1461
  %1726 = vmatpush.bf16.msra.mxu0 %v1455
  %1727 = vmatpush.bf16.msra.mxu0 %v1449
  %1728 = vmatpush.bf16.msra.mxu0 %v1443
  %1729 = vmatpush.bf16.msra.mxu0 %v1437
  %1730 = vmatpush.bf16.msra.mxu0 %v1431
  %1731 = vmatmul.bf16.gmra.mxu0 0
  %v1732 = vpop.f32.mrf.mxu0
  %v1733 = vadd.f32 0.0, %v1732
  %v1734 = vpop.f32.mrf.mxu0
  %1735 = vdwg.mxu0
  %1736 = vmatpush.bf16.msra.mxu0 %v1521
  %1737 = vmatpush.bf16.msra.mxu0 %v1515
  %1738 = vmatpush.bf16.msra.mxu0 %v1509
  %1739 = vmatpush.bf16.msra.mxu0 %v1503
  %1740 = vmatpush.bf16.msra.mxu0 %v1497
  %1741 = vmatpush.bf16.msra.mxu0 %v1491
  %1742 = vmatpush.bf16.msra.mxu0 %v1485
  %1743 = vmatpush.bf16.msra.mxu0 %v1479
  %1744 = vmatmul.bf16.gmra.mxu0 0
  %v1745 = vpop.f32.mrf.mxu0
  %v1746 = vadd.f32 %v1733, %v1745
  %v1747 = vpop.f32.mrf.mxu0
  %1748 = vdwg.mxu0
  %1749 = vmatpush.bf16.msra.mxu0 %v1474
  %1750 = vmatpush.bf16.msra.mxu0 %v1468
  %1751 = vmatpush.bf16.msra.mxu0 %v1462
  %1752 = vmatpush.bf16.msra.mxu0 %v1456
  %1753 = vmatpush.bf16.msra.mxu0 %v1450
  %1754 = vmatpush.bf16.msra.mxu0 %v1444
  %1755 = vmatpush.bf16.msra.mxu0 %v1438
  %1756 = vmatpush.bf16.msra.mxu0 %v1432
  %1757 = vmatmul.bf16.gmra.mxu0 0
  %v1758 = vpop.f32.mrf.mxu0
  %v1759 = vadd.f32 0.0, %v1758
  %v1760 = vpop.f32.mrf.mxu0
  %1761 = vdwg.mxu0
  %1762 = vmatpush.bf16.msra.mxu0 %v1522
  %1763 = vmatpush.bf16.msra.mxu0 %v1516
  %1764 = vmatpush.bf16.msra.mxu0 %v1510
  %1765 = vmatpush.bf16.msra.mxu0 %v1504
  %1766 = vmatpush.bf16.msra.mxu0 %v1498
  %1767 = vmatpush.bf16.msra.mxu0 %v1492
  %1768 = vmatpush.bf16.msra.mxu0 %v1486
  %1769 = vmatpush.bf16.msra.mxu0 %v1480
  %1770 = vmatmul.bf16.gmra.mxu0 0
  %v1771 = vpop.f32.mrf.mxu0
  %v1772 = vadd.f32 %v1759, %v1771
  %v1773 = vpop.f32.mrf.mxu0
  %1774 = vdwg.mxu0
  %v1775 = vadd.f32 %v1133, %v1642
  %v1776 = vadd.f32 %v1134, %v1668
  %v1777 = vadd.f32 %v1135, %v1694
  %v1778 = vadd.f32 %v1136, %v1720
  %v1779 = vxor.u32 %v1775, 2147483648
  %v1780 = vxor.u32 %v1776, 2147483648
  %v1781 = vxor.u32 %v1777, 2147483648
  %v1782 = vxor.u32 %v1778, 2147483648
  %v1783 = vmul.f32 %v1779, 1.442695
  %v1784 = vpow.pop %v1783
  %v1785 = vmul.f32 %v1780, 1.442695
  %v1786 = vpow.pop %v1785
  %v1787 = vmul.f32 %v1781, 1.442695
  %v1788 = vpow.pop %v1787
  %v1789 = vmul.f32 %v1782, 1.442695
  %v1790 = vpow.pop %v1789
  %v1791 = vadd.f32 %v1784, 1.0
  %v1792 = vadd.f32 %v1786, 1.0
  %v1793 = vadd.f32 %v1788, 1.0
  %v1794 = vadd.f32 %v1790, 1.0
  %v1795 = vrcp.pop %v1791
  %v1796 = vmul.f32 %v1791, %v1795
  %v1797 = vsub.f32 1.0, %v1796
  %v1798 = vmul.f32 %v1795, %v1797
  %v1799 = vadd.f32 %v1795, %v1798
  %vm1800 = vweird.f32 %v1791
  %vm1801 = vweird.f32 %v1795
  %vm1802 = vmor %vm1800, %vm1801
  %v1803 = vsel %vm1802, %v1795, %v1799
  %v1804 = vand.u32 2147483647, %v1791
  %vm1805 = vcmp.eq.f32.partialorder %v1804, 8.507059e+37
  %v1806 = vand.u32 %v1791, 2147483648
  %v1807 = vor.u32 1.1754944e-38, %v1806
  %v1808 = vsel %vm1805, %v1807, %v1803
  %v1809 = vmul.f32 1.0, %v1808
  %v1810 = vrcp.pop %v1792
  %v1811 = vmul.f32 %v1792, %v1810
  %v1812 = vsub.f32 1.0, %v1811
  %v1813 = vmul.f32 %v1810, %v1812
  %v1814 = vadd.f32 %v1810, %v1813
  %vm1815 = vweird.f32 %v1792
  %vm1816 = vweird.f32 %v1810
  %vm1817 = vmor %vm1815, %vm1816
  %v1818 = vsel %vm1817, %v1810, %v1814
  %v1819 = vand.u32 2147483647, %v1792
  %vm1820 = vcmp.eq.f32.partialorder %v1819, 8.507059e+37
  %v1821 = vand.u32 %v1792, 2147483648
  %v1822 = vor.u32 1.1754944e-38, %v1821
  %v1823 = vsel %vm1820, %v1822, %v1818
  %v1824 = vmul.f32 1.0, %v1823
  %v1825 = vrcp.pop %v1793
  %v1826 = vmul.f32 %v1793, %v1825
  %v1827 = vsub.f32 1.0, %v1826
  %v1828 = vmul.f32 %v1825, %v1827
  %v1829 = vadd.f32 %v1825, %v1828
  %vm1830 = vweird.f32 %v1793
  %vm1831 = vweird.f32 %v1825
  %vm1832 = vmor %vm1830, %vm1831
  %v1833 = vsel %vm1832, %v1825, %v1829
  %v1834 = vand.u32 2147483647, %v1793
  %vm1835 = vcmp.eq.f32.partialorder %v1834, 8.507059e+37
  %v1836 = vand.u32 %v1793, 2147483648
  %v1837 = vor.u32 1.1754944e-38, %v1836
  %v1838 = vsel %vm1835, %v1837, %v1833
  %v1839 = vmul.f32 1.0, %v1838
  %v1840 = vrcp.pop %v1794
  %v1841 = vmul.f32 %v1794, %v1840
  %v1842 = vsub.f32 1.0, %v1841
  %v1843 = vmul.f32 %v1840, %v1842
  %v1844 = vadd.f32 %v1840, %v1843
  %vm1845 = vweird.f32 %v1794
  %vm1846 = vweird.f32 %v1840
  %vm1847 = vmor %vm1845, %vm1846
  %v1848 = vsel %vm1847, %v1840, %v1844
  %v1849 = vand.u32 2147483647, %v1794
  %vm1850 = vcmp.eq.f32.partialorder %v1849, 8.507059e+37
  %v1851 = vand.u32 %v1794, 2147483648
  %v1852 = vor.u32 1.1754944e-38, %v1851
  %v1853 = vsel %vm1850, %v1852, %v1848
  %v1854 = vmul.f32 1.0, %v1853
  %v1855 = vadd.f32 %v1746, %v1129
  %v1856 = vadd.f32 %v1772, %v1130
  %v1857 = vmul.f32 %v1809, %v1855
  %v1858 = vmul.f32 %v1824, %v1856
  %v1859 = vadd.f32 %v1137, %v1857
  %v1860 = vadd.f32 %v1138, %v1858
  %v1861 = vtanh.pop %v1859
  %v1862 = vtanh.pop %v1860
  %v1863 = vsub.f32 1.0, %v1839
  %v1864 = vsub.f32 1.0, %v1854
  %v1865 = vmul.f32 %v1863, %v1861
  %v1866 = vmul.f32 %v1864, %v1862
  %v1867 = vmul.f32 %v1839, 0.0
  %v1868 = vmul.f32 %v1854, 0.0
  %v1869 = vadd.f32 %v1865, %v1867
  %v1870 = vadd.f32 %v1866, %v1868
  %1871 = vst [vmem:[%s5] sm:$0xff] %v1869
  %s1872 = scalar_lea.vmem %s5, 112
  %1873 = vst [vmem:[%s1872 + $0x8] sm:$0xff] %v1870
  %s1874 = scalar_lea.vmem [#allocation2], 48
  %v1875 = vld [vmem:[%s1874] sm:$0xff]
  %v1876 = vld [vmem:[%s1874 + $0x8] sm:$0xff]
  %v1877 = vld [vmem:[%s1874 + $0x10] sm:$0xff]
  %v1878 = vld [vmem:[%s1874 + $0x18] sm:$0xff]
  %v1879 = vld [vmem:[%s1874 + $0x20] sm:$0xff]
  %v1880 = vld [vmem:[%s1874 + $0x28] sm:$0xff]
  %v1881 = vpack.c.bf16 %v1869, %v1869
  %v1882 = vpack.c.bf16 %v1870, %v1870
  %1883 = vmatpush.bf16.msra.mxu0 %v1469
  %1884 = vmatpush.bf16.msra.mxu0 %v1463
  %1885 = vmatpush.bf16.msra.mxu0 %v1457
  %1886 = vmatpush.bf16.msra.mxu0 %v1451
  %1887 = vmatpush.bf16.msra.mxu0 %v1445
  %1888 = vmatpush.bf16.msra.mxu0 %v1439
  %1889 = vmatpush.bf16.msra.mxu0 %v1433
  %1890 = vmatpush.bf16.msra.mxu0 %v1427
  %1891 = vmatmul.bf16.gmra.mxu0 %v1881
  %v1892 = vpop.f32.mrf.mxu0
  %v1893 = vadd.f32 0.0, %v1892
  %v1894 = vpop.f32.mrf.mxu0
  %1895 = vdwg.mxu0
  %1896 = vmatpush.bf16.msra.mxu0 %v1517
  %1897 = vmatpush.bf16.msra.mxu0 %v1511
  %1898 = vmatpush.bf16.msra.mxu0 %v1505
  %1899 = vmatpush.bf16.msra.mxu0 %v1499
  %1900 = vmatpush.bf16.msra.mxu0 %v1493
  %1901 = vmatpush.bf16.msra.mxu0 %v1487
  %1902 = vmatpush.bf16.msra.mxu0 %v1481
  %1903 = vmatpush.bf16.msra.mxu0 %v1475
  %1904 = vmatmul.bf16.gmra.mxu0 %v1882
  %v1905 = vpop.f32.mrf.mxu0
  %v1906 = vadd.f32 %v1893, %v1905
  %v1907 = vpop.f32.mrf.mxu0
  %1908 = vdwg.mxu0
  %1909 = vmatpush.bf16.msra.mxu0 %v1470
  %1910 = vmatpush.bf16.msra.mxu0 %v1464
  %1911 = vmatpush.bf16.msra.mxu0 %v1458
  %1912 = vmatpush.bf16.msra.mxu0 %v1452
  %1913 = vmatpush.bf16.msra.mxu0 %v1446
  %1914 = vmatpush.bf16.msra.mxu0 %v1440
  %1915 = vmatpush.bf16.msra.mxu0 %v1434
  %1916 = vmatpush.bf16.msra.mxu0 %v1428
  %1917 = vmatmul.bf16.gmra.mxu0 %v1881
  %v1918 = vpop.f32.mrf.mxu0
  %v1919 = vadd.f32 0.0, %v1918
  %v1920 = vpop.f32.mrf.mxu0
  %1921 = vdwg.mxu0
  %1922 = vmatpush.bf16.msra.mxu0 %v1518
  %1923 = vmatpush.bf16.msra.mxu0 %v1512
  %1924 = vmatpush.bf16.msra.mxu0 %v1506
  %1925 = vmatpush.bf16.msra.mxu0 %v1500
  %1926 = vmatpush.bf16.msra.mxu0 %v1494
  %1927 = vmatpush.bf16.msra.mxu0 %v1488
  %1928 = vmatpush.bf16.msra.mxu0 %v1482
  %1929 = vmatpush.bf16.msra.mxu0 %v1476
  %1930 = vmatmul.bf16.gmra.mxu0 %v1882
  %v1931 = vpop.f32.mrf.mxu0
  %v1932 = vadd.f32 %v1919, %v1931
  %v1933 = vpop.f32.mrf.mxu0
  %1934 = vdwg.mxu0
  %1935 = vmatpush.bf16.msra.mxu0 %v1471
  %1936 = vmatpush.bf16.msra.mxu0 %v1465
  %1937 = vmatpush.bf16.msra.mxu0 %v1459
  %1938 = vmatpush.bf16.msra.mxu0 %v1453
  %1939 = vmatpush.bf16.msra.mxu0 %v1447
  %1940 = vmatpush.bf16.msra.mxu0 %v1441
  %1941 = vmatpush.bf16.msra.mxu0 %v1435
  %1942 = vmatpush.bf16.msra.mxu0 %v1429
  %1943 = vmatmul.bf16.gmra.mxu0 %v1881
  %v1944 = vpop.f32.mrf.mxu0
  %v1945 = vadd.f32 0.0, %v1944
  %v1946 = vpop.f32.mrf.mxu0
  %1947 = vdwg.mxu0
  %1948 = vmatpush.bf16.msra.mxu0 %v1519
  %1949 = vmatpush.bf16.msra.mxu0 %v1513
  %1950 = vmatpush.bf16.msra.mxu0 %v1507
  %1951 = vmatpush.bf16.msra.mxu0 %v1501
  %1952 = vmatpush.bf16.msra.mxu0 %v1495
  %1953 = vmatpush.bf16.msra.mxu0 %v1489
  %1954 = vmatpush.bf16.msra.mxu0 %v1483
  %1955 = vmatpush.bf16.msra.mxu0 %v1477
  %1956 = vmatmul.bf16.gmra.mxu0 %v1882
  %v1957 = vpop.f32.mrf.mxu0
  %v1958 = vadd.f32 %v1945, %v1957
  %v1959 = vpop.f32.mrf.mxu0
  %1960 = vdwg.mxu0
  %1961 = vmatpush.bf16.msra.mxu0 %v1472
  %1962 = vmatpush.bf16.msra.mxu0 %v1466
  %1963 = vmatpush.bf16.msra.mxu0 %v1460
  %1964 = vmatpush.bf16.msra.mxu0 %v1454
  %1965 = vmatpush.bf16.msra.mxu0 %v1448
  %1966 = vmatpush.bf16.msra.mxu0 %v1442
  %1967 = vmatpush.bf16.msra.mxu0 %v1436
  %1968 = vmatpush.bf16.msra.mxu0 %v1430
  %1969 = vmatmul.bf16.gmra.mxu0 %v1881
  %v1970 = vpop.f32.mrf.mxu0
  %v1971 = vadd.f32 0.0, %v1970
  %v1972 = vpop.f32.mrf.mxu0
  %1973 = vdwg.mxu0
  %1974 = vmatpush.bf16.msra.mxu0 %v1520
  %1975 = vmatpush.bf16.msra.mxu0 %v1514
  %1976 = vmatpush.bf16.msra.mxu0 %v1508
  %1977 = vmatpush.bf16.msra.mxu0 %v1502
  %1978 = vmatpush.bf16.msra.mxu0 %v1496
  %1979 = vmatpush.bf16.msra.mxu0 %v1490
  %1980 = vmatpush.bf16.msra.mxu0 %v1484
  %1981 = vmatpush.bf16.msra.mxu0 %v1478
  %1982 = vmatmul.bf16.gmra.mxu0 %v1882
  %v1983 = vpop.f32.mrf.mxu0
  %v1984 = vadd.f32 %v1971, %v1983
  %v1985 = vpop.f32.mrf.mxu0
  %1986 = vdwg.mxu0
  %1987 = vmatpush.bf16.msra.mxu0 %v1473
  %1988 = vmatpush.bf16.msra.mxu0 %v1467
  %1989 = vmatpush.bf16.msra.mxu0 %v1461
  %1990 = vmatpush.bf16.msra.mxu0 %v1455
  %1991 = vmatpush.bf16.msra.mxu0 %v1449
  %1992 = vmatpush.bf16.msra.mxu0 %v1443
  %1993 = vmatpush.bf16.msra.mxu0 %v1437
  %1994 = vmatpush.bf16.msra.mxu0 %v1431
  %1995 = vmatmul.bf16.gmra.mxu0 %v1881
  %v1996 = vpop.f32.mrf.mxu0
  %v1997 = vadd.f32 0.0, %v1996
  %v1998 = vpop.f32.mrf.mxu0
  %1999 = vdwg.mxu0
  %2000 = vmatpush.bf16.msra.mxu0 %v1521
  %2001 = vmatpush.bf16.msra.mxu0 %v1515
  %2002 = vmatpush.bf16.msra.mxu0 %v1509
  %2003 = vmatpush.bf16.msra.mxu0 %v1503
  %2004 = vmatpush.bf16.msra.mxu0 %v1497
  %2005 = vmatpush.bf16.msra.mxu0 %v1491
  %2006 = vmatpush.bf16.msra.mxu0 %v1485
  %2007 = vmatpush.bf16.msra.mxu0 %v1479
  %2008 = vmatmul.bf16.gmra.mxu0 %v1882
  %v2009 = vpop.f32.mrf.mxu0
  %v2010 = vadd.f32 %v1997, %v2009
  %v2011 = vpop.f32.mrf.mxu0
  %2012 = vdwg.mxu0
  %2013 = vmatpush.bf16.msra.mxu0 %v1474
  %2014 = vmatpush.bf16.msra.mxu0 %v1468
  %2015 = vmatpush.bf16.msra.mxu0 %v1462
  %2016 = vmatpush.bf16.msra.mxu0 %v1456
  %2017 = vmatpush.bf16.msra.mxu0 %v1450
  %2018 = vmatpush.bf16.msra.mxu0 %v1444
  %2019 = vmatpush.bf16.msra.mxu0 %v1438
  %2020 = vmatpush.bf16.msra.mxu0 %v1432
  %2021 = vmatmul.bf16.gmra.mxu0 %v1881
  %v2022 = vpop.f32.mrf.mxu0
  %v2023 = vadd.f32 0.0, %v2022
  %v2024 = vpop.f32.mrf.mxu0
  %2025 = vdwg.mxu0
  %2026 = vmatpush.bf16.msra.mxu0 %v1522
  %2027 = vmatpush.bf16.msra.mxu0 %v1516
  %2028 = vmatpush.bf16.msra.mxu0 %v1510
  %2029 = vmatpush.bf16.msra.mxu0 %v1504
  %2030 = vmatpush.bf16.msra.mxu0 %v1498
  %2031 = vmatpush.bf16.msra.mxu0 %v1492
  %2032 = vmatpush.bf16.msra.mxu0 %v1486
  %2033 = vmatpush.bf16.msra.mxu0 %v1480
  %2034 = vmatmul.bf16.gmra.mxu0 %v1882
  %v2035 = vpop.f32.mrf.mxu0
  %v2036 = vadd.f32 %v2023, %v2035
  %v2037 = vpop.f32.mrf.mxu0
  %2038 = vdwg.mxu0
  %v2039 = vadd.f32 %v1875, %v1906
  %v2040 = vadd.f32 %v1876, %v1932
  %v2041 = vadd.f32 %v1877, %v1958
  %v2042 = vadd.f32 %v1878, %v1984
  %v2043 = vxor.u32 %v2039, 2147483648
  %v2044 = vxor.u32 %v2040, 2147483648
  %v2045 = vxor.u32 %v2041, 2147483648
  %v2046 = vxor.u32 %v2042, 2147483648
  %v2047 = vmul.f32 %v2043, 1.442695
  %v2048 = vpow.pop %v2047
  %v2049 = vmul.f32 %v2044, 1.442695
  %v2050 = vpow.pop %v2049
  %v2051 = vmul.f32 %v2045, 1.442695
  %v2052 = vpow.pop %v2051
  %v2053 = vmul.f32 %v2046, 1.442695
  %v2054 = vpow.pop %v2053
  %v2055 = vadd.f32 %v2048, 1.0
  %v2056 = vadd.f32 %v2050, 1.0
  %v2057 = vadd.f32 %v2052, 1.0
  %v2058 = vadd.f32 %v2054, 1.0
  %v2059 = vrcp.pop %v2055
  %v2060 = vmul.f32 %v2055, %v2059
  %v2061 = vsub.f32 1.0, %v2060
  %v2062 = vmul.f32 %v2059, %v2061
  %v2063 = vadd.f32 %v2059, %v2062
  %vm2064 = vweird.f32 %v2055
  %vm2065 = vweird.f32 %v2059
  %vm2066 = vmor %vm2064, %vm2065
  %v2067 = vsel %vm2066, %v2059, %v2063
  %v2068 = vand.u32 2147483647, %v2055
  %vm2069 = vcmp.eq.f32.partialorder %v2068, 8.507059e+37
  %v2070 = vand.u32 %v2055, 2147483648
  %v2071 = vor.u32 1.1754944e-38, %v2070
  %v2072 = vsel %vm2069, %v2071, %v2067
  %v2073 = vmul.f32 1.0, %v2072
  %v2074 = vrcp.pop %v2056
  %v2075 = vmul.f32 %v2056, %v2074
  %v2076 = vsub.f32 1.0, %v2075
  %v2077 = vmul.f32 %v2074, %v2076
  %v2078 = vadd.f32 %v2074, %v2077
  %vm2079 = vweird.f32 %v2056
  %vm2080 = vweird.f32 %v2074
  %vm2081 = vmor %vm2079, %vm2080
  %v2082 = vsel %vm2081, %v2074, %v2078
  %v2083 = vand.u32 2147483647, %v2056
  %vm2084 = vcmp.eq.f32.partialorder %v2083, 8.507059e+37
  %v2085 = vand.u32 %v2056, 2147483648
  %v2086 = vor.u32 1.1754944e-38, %v2085
  %v2087 = vsel %vm2084, %v2086, %v2082
  %v2088 = vmul.f32 1.0, %v2087
  %v2089 = vrcp.pop %v2057
  %v2090 = vmul.f32 %v2057, %v2089
  %v2091 = vsub.f32 1.0, %v2090
  %v2092 = vmul.f32 %v2089, %v2091
  %v2093 = vadd.f32 %v2089, %v2092
  %vm2094 = vweird.f32 %v2057
  %vm2095 = vweird.f32 %v2089
  %vm2096 = vmor %vm2094, %vm2095
  %v2097 = vsel %vm2096, %v2089, %v2093
  %v2098 = vand.u32 2147483647, %v2057
  %vm2099 = vcmp.eq.f32.partialorder %v2098, 8.507059e+37
  %v2100 = vand.u32 %v2057, 2147483648
  %v2101 = vor.u32 1.1754944e-38, %v2100
  %v2102 = vsel %vm2099, %v2101, %v2097
  %v2103 = vmul.f32 1.0, %v2102
  %v2104 = vrcp.pop %v2058
  %v2105 = vmul.f32 %v2058, %v2104
  %v2106 = vsub.f32 1.0, %v2105
  %v2107 = vmul.f32 %v2104, %v2106
  %v2108 = vadd.f32 %v2104, %v2107
  %vm2109 = vweird.f32 %v2058
  %vm2110 = vweird.f32 %v2104
  %vm2111 = vmor %vm2109, %vm2110
  %v2112 = vsel %vm2111, %v2104, %v2108
  %v2113 = vand.u32 2147483647, %v2058
  %vm2114 = vcmp.eq.f32.partialorder %v2113, 8.507059e+37
  %v2115 = vand.u32 %v2058, 2147483648
  %v2116 = vor.u32 1.1754944e-38, %v2115
  %v2117 = vsel %vm2114, %v2116, %v2112
  %v2118 = vmul.f32 1.0, %v2117
  %v2119 = vadd.f32 %v2010, %v1129
  %v2120 = vadd.f32 %v2036, %v1130
  %v2121 = vmul.f32 %v2073, %v2119
  %v2122 = vmul.f32 %v2088, %v2120
  %v2123 = vadd.f32 %v1879, %v2121
  %v2124 = vadd.f32 %v1880, %v2122
  %v2125 = vtanh.pop %v2123
  %v2126 = vtanh.pop %v2124
  %v2127 = vsub.f32 1.0, %v2103
  %v2128 = vsub.f32 1.0, %v2118
  %v2129 = vmul.f32 %v2127, %v2125
  %v2130 = vmul.f32 %v2128, %v2126
  %v2131 = vmul.f32 %v2103, %v1869
  %v2132 = vmul.f32 %v2118, %v1870
  %v2133 = vadd.f32 %v2129, %v2131
  %v2134 = vadd.f32 %v2130, %v2132
  %s2135 = scalar_lea.vmem %s5, 16
  %2136 = vst [vmem:[%s2135] sm:$0xff] %v2133
  %s2137 = scalar_lea.vmem %s5, 96
  %2138 = vst [vmem:[%s2137 + $0x8] sm:$0xff] %v2134
  %s2139 = scalar_lea.vmem [#allocation2], 96
  %v2140 = vld [vmem:[%s2139] sm:$0xff]
  %v2141 = vld [vmem:[%s2139 + $0x8] sm:$0xff]
  %v2142 = vld [vmem:[%s2139 + $0x10] sm:$0xff]
  %v2143 = vld [vmem:[%s2139 + $0x18] sm:$0xff]
  %v2144 = vld [vmem:[%s2139 + $0x20] sm:$0xff]
  %v2145 = vld [vmem:[%s2139 + $0x28] sm:$0xff]
  %v2146 = vpack.c.bf16 %v2133, %v2133
  %v2147 = vpack.c.bf16 %v2134, %v2134
  %2148 = vmatpush.bf16.msra.mxu0 %v1469
  %2149 = vmatpush.bf16.msra.mxu0 %v1463
  %2150 = vmatpush.bf16.msra.mxu0 %v1457
  %2151 = vmatpush.bf16.msra.mxu0 %v1451
  %2152 = vmatpush.bf16.msra.mxu0 %v1445
  %2153 = vmatpush.bf16.msra.mxu0 %v1439
  %2154 = vmatpush.bf16.msra.mxu0 %v1433
  %2155 = vmatpush.bf16.msra.mxu0 %v1427
  %2156 = vmatmul.bf16.gmra.mxu0 %v2146
  %v2157 = vpop.f32.mrf.mxu0
  %v2158 = vadd.f32 0.0, %v2157
  %v2159 = vpop.f32.mrf.mxu0
  %2160 = vdwg.mxu0
  %2161 = vmatpush.bf16.msra.mxu0 %v1517
  %2162 = vmatpush.bf16.msra.mxu0 %v1511
  %2163 = vmatpush.bf16.msra.mxu0 %v1505
  %2164 = vmatpush.bf16.msra.mxu0 %v1499
  %2165 = vmatpush.bf16.msra.mxu0 %v1493
  %2166 = vmatpush.bf16.msra.mxu0 %v1487
  %2167 = vmatpush.bf16.msra.mxu0 %v1481
  %2168 = vmatpush.bf16.msra.mxu0 %v1475
  %2169 = vmatmul.bf16.gmra.mxu0 %v2147
  %v2170 = vpop.f32.mrf.mxu0
  %v2171 = vadd.f32 %v2158, %v2170
  %v2172 = vpop.f32.mrf.mxu0
  %2173 = vdwg.mxu0
  %2174 = vmatpush.bf16.msra.mxu0 %v1470
  %2175 = vmatpush.bf16.msra.mxu0 %v1464
  %2176 = vmatpush.bf16.msra.mxu0 %v1458
  %2177 = vmatpush.bf16.msra.mxu0 %v1452
  %2178 = vmatpush.bf16.msra.mxu0 %v1446
  %2179 = vmatpush.bf16.msra.mxu0 %v1440
  %2180 = vmatpush.bf16.msra.mxu0 %v1434
  %2181 = vmatpush.bf16.msra.mxu0 %v1428
  %2182 = vmatmul.bf16.gmra.mxu0 %v2146
  %v2183 = vpop.f32.mrf.mxu0
  %v2184 = vadd.f32 0.0, %v2183
  %v2185 = vpop.f32.mrf.mxu0
  %2186 = vdwg.mxu0
  %2187 = vmatpush.bf16.msra.mxu0 %v1518
  %2188 = vmatpush.bf16.msra.mxu0 %v1512
  %2189 = vmatpush.bf16.msra.mxu0 %v1506
  %2190 = vmatpush.bf16.msra.mxu0 %v1500
  %2191 = vmatpush.bf16.msra.mxu0 %v1494
  %2192 = vmatpush.bf16.msra.mxu0 %v1488
  %2193 = vmatpush.bf16.msra.mxu0 %v1482
  %2194 = vmatpush.bf16.msra.mxu0 %v1476
  %2195 = vmatmul.bf16.gmra.mxu0 %v2147
  %v2196 = vpop.f32.mrf.mxu0
  %v2197 = vadd.f32 %v2184, %v2196
  %v2198 = vpop.f32.mrf.mxu0
  %2199 = vdwg.mxu0
  %2200 = vmatpush.bf16.msra.mxu0 %v1471
  %2201 = vmatpush.bf16.msra.mxu0 %v1465
  %2202 = vmatpush.bf16.msra.mxu0 %v1459
  %2203 = vmatpush.bf16.msra.mxu0 %v1453
  %2204 = vmatpush.bf16.msra.mxu0 %v1447
  %2205 = vmatpush.bf16.msra.mxu0 %v1441
  %2206 = vmatpush.bf16.msra.mxu0 %v1435
  %2207 = vmatpush.bf16.msra.mxu0 %v1429
  %2208 = vmatmul.bf16.gmra.mxu0 %v2146
  %v2209 = vpop.f32.mrf.mxu0
  %v2210 = vadd.f32 0.0, %v2209
  %v2211 = vpop.f32.mrf.mxu0
  %2212 = vdwg.mxu0
  %2213 = vmatpush.bf16.msra.mxu0 %v1519
  %2214 = vmatpush.bf16.msra.mxu0 %v1513
  %2215 = vmatpush.bf16.msra.mxu0 %v1507
  %2216 = vmatpush.bf16.msra.mxu0 %v1501
  %2217 = vmatpush.bf16.msra.mxu0 %v1495
  %2218 = vmatpush.bf16.msra.mxu0 %v1489
  %2219 = vmatpush.bf16.msra.mxu0 %v1483
  %2220 = vmatpush.bf16.msra.mxu0 %v1477
  %2221 = vmatmul.bf16.gmra.mxu0 %v2147
  %v2222 = vpop.f32.mrf.mxu0
  %v2223 = vadd.f32 %v2210, %v2222
  %v2224 = vpop.f32.mrf.mxu0
  %2225 = vdwg.mxu0
  %2226 = vmatpush.bf16.msra.mxu0 %v1472
  %2227 = vmatpush.bf16.msra.mxu0 %v1466
  %2228 = vmatpush.bf16.msra.mxu0 %v1460
  %2229 = vmatpush.bf16.msra.mxu0 %v1454
  %2230 = vmatpush.bf16.msra.mxu0 %v1448
  %2231 = vmatpush.bf16.msra.mxu0 %v1442
  %2232 = vmatpush.bf16.msra.mxu0 %v1436
  %2233 = vmatpush.bf16.msra.mxu0 %v1430
  %2234 = vmatmul.bf16.gmra.mxu0 %v2146
  %v2235 = vpop.f32.mrf.mxu0
  %v2236 = vadd.f32 0.0, %v2235
  %v2237 = vpop.f32.mrf.mxu0
  %2238 = vdwg.mxu0
  %2239 = vmatpush.bf16.msra.mxu0 %v1520
  %2240 = vmatpush.bf16.msra.mxu0 %v1514
  %2241 = vmatpush.bf16.msra.mxu0 %v1508
  %2242 = vmatpush.bf16.msra.mxu0 %v1502
  %2243 = vmatpush.bf16.msra.mxu0 %v1496
  %2244 = vmatpush.bf16.msra.mxu0 %v1490
  %2245 = vmatpush.bf16.msra.mxu0 %v1484
  %2246 = vmatpush.bf16.msra.mxu0 %v1478
  %2247 = vmatmul.bf16.gmra.mxu0 %v2147
  %v2248 = vpop.f32.mrf.mxu0
  %v2249 = vadd.f32 %v2236, %v2248
  %v2250 = vpop.f32.mrf.mxu0
  %2251 = vdwg.mxu0
  %2252 = vmatpush.bf16.msra.mxu0 %v1473
  %2253 = vmatpush.bf16.msra.mxu0 %v1467
  %2254 = vmatpush.bf16.msra.mxu0 %v1461
  %2255 = vmatpush.bf16.msra.mxu0 %v1455
  %2256 = vmatpush.bf16.msra.mxu0 %v1449
  %2257 = vmatpush.bf16.msra.mxu0 %v1443
  %2258 = vmatpush.bf16.msra.mxu0 %v1437
  %2259 = vmatpush.bf16.msra.mxu0 %v1431
  %2260 = vmatmul.bf16.gmra.mxu0 %v2146
  %v2261 = vpop.f32.mrf.mxu0
  %v2262 = vadd.f32 0.0, %v2261
  %v2263 = vpop.f32.mrf.mxu0
  %2264 = vdwg.mxu0
  %2265 = vmatpush.bf16.msra.mxu0 %v1521
  %2266 = vmatpush.bf16.msra.mxu0 %v1515
  %2267 = vmatpush.bf16.msra.mxu0 %v1509
  %2268 = vmatpush.bf16.msra.mxu0 %v1503
  %2269 = vmatpush.bf16.msra.mxu0 %v1497
  %2270 = vmatpush.bf16.msra.mxu0 %v1491
  %2271 = vmatpush.bf16.msra.mxu0 %v1485
  %2272 = vmatpush.bf16.msra.mxu0 %v1479
  %2273 = vmatmul.bf16.gmra.mxu0 %v2147
  %v2274 = vpop.f32.mrf.mxu0
  %v2275 = vadd.f32 %v2262, %v2274
  %v2276 = vpop.f32.mrf.mxu0
  %2277 = vdwg.mxu0
  %2278 = vmatpush.bf16.msra.mxu0 %v1474
  %2279 = vmatpush.bf16.msra.mxu0 %v1468
  %2280 = vmatpush.bf16.msra.mxu0 %v1462
  %2281 = vmatpush.bf16.msra.mxu0 %v1456
  %2282 = vmatpush.bf16.msra.mxu0 %v1450
  %2283 = vmatpush.bf16.msra.mxu0 %v1444
  %2284 = vmatpush.bf16.msra.mxu0 %v1438
  %2285 = vmatpush.bf16.msra.mxu0 %v1432
  %2286 = vmatmul.bf16.gmra.mxu0 %v2146
  %v2287 = vpop.f32.mrf.mxu0
  %v2288 = vadd.f32 0.0, %v2287
  %v2289 = vpop.f32.mrf.mxu0
  %2290 = vdwg.mxu0
  %2291 = vmatpush.bf16.msra.mxu0 %v1522
  %2292 = vmatpush.bf16.msra.mxu0 %v1516
  %2293 = vmatpush.bf16.msra.mxu0 %v1510
  %2294 = vmatpush.bf16.msra.mxu0 %v1504
  %2295 = vmatpush.bf16.msra.mxu0 %v1498
  %2296 = vmatpush.bf16.msra.mxu0 %v1492
  %2297 = vmatpush.bf16.msra.mxu0 %v1486
  %2298 = vmatpush.bf16.msra.mxu0 %v1480
  %2299 = vmatmul.bf16.gmra.mxu0 %v2147
  %v2300 = vpop.f32.mrf.mxu0
  %v2301 = vadd.f32 %v2288, %v2300
  %v2302 = vpop.f32.mrf.mxu0
  %2303 = vdwg.mxu0
  %v2304 = vadd.f32 %v2140, %v2171
  %v2305 = vadd.f32 %v2141, %v2197
  %v2306 = vadd.f32 %v2142, %v2223
  %v2307 = vadd.f32 %v2143, %v2249
  %v2308 = vxor.u32 %v2304, 2147483648
  %v2309 = vxor.u32 %v2305, 2147483648
  %v2310 = vxor.u32 %v2306, 2147483648
  %v2311 = vxor.u32 %v2307, 2147483648
  %v2312 = vmul.f32 %v2308, 1.442695
  %v2313 = vpow.pop %v2312
  %v2314 = vmul.f32 %v2309, 1.442695
  %v2315 = vpow.pop %v2314
  %v2316 = vmul.f32 %v2310, 1.442695
  %v2317 = vpow.pop %v2316
  %v2318 = vmul.f32 %v2311, 1.442695
  %v2319 = vpow.pop %v2318
  %v2320 = vadd.f32 %v2313, 1.0
  %v2321 = vadd.f32 %v2315, 1.0
  %v2322 = vadd.f32 %v2317, 1.0
  %v2323 = vadd.f32 %v2319, 1.0
  %v2324 = vrcp.pop %v2320
  %v2325 = vmul.f32 %v2320, %v2324
  %v2326 = vsub.f32 1.0, %v2325
  %v2327 = vmul.f32 %v2324, %v2326
  %v2328 = vadd.f32 %v2324, %v2327
  %vm2329 = vweird.f32 %v2320
  %vm2330 = vweird.f32 %v2324
  %vm2331 = vmor %vm2329, %vm2330
  %v2332 = vsel %vm2331, %v2324, %v2328
  %v2333 = vand.u32 2147483647, %v2320
  %vm2334 = vcmp.eq.f32.partialorder %v2333, 8.507059e+37
  %v2335 = vand.u32 %v2320, 2147483648
  %v2336 = vor.u32 1.1754944e-38, %v2335
  %v2337 = vsel %vm2334, %v2336, %v2332
  %v2338 = vmul.f32 1.0, %v2337
  %v2339 = vrcp.pop %v2321
  %v2340 = vmul.f32 %v2321, %v2339
  %v2341 = vsub.f32 1.0, %v2340
  %v2342 = vmul.f32 %v2339, %v2341
  %v2343 = vadd.f32 %v2339, %v2342
  %vm2344 = vweird.f32 %v2321
  %vm2345 = vweird.f32 %v2339
  %vm2346 = vmor %vm2344, %vm2345
  %v2347 = vsel %vm2346, %v2339, %v2343
  %v2348 = vand.u32 2147483647, %v2321
  %vm2349 = vcmp.eq.f32.partialorder %v2348, 8.507059e+37
  %v2350 = vand.u32 %v2321, 2147483648
  %v2351 = vor.u32 1.1754944e-38, %v2350
  %v2352 = vsel %vm2349, %v2351, %v2347
  %v2353 = vmul.f32 1.0, %v2352
  %v2354 = vrcp.pop %v2322
  %v2355 = vmul.f32 %v2322, %v2354
  %v2356 = vsub.f32 1.0, %v2355
  %v2357 = vmul.f32 %v2354, %v2356
  %v2358 = vadd.f32 %v2354, %v2357
  %vm2359 = vweird.f32 %v2322
  %vm2360 = vweird.f32 %v2354
  %vm2361 = vmor %vm2359, %vm2360
  %v2362 = vsel %vm2361, %v2354, %v2358
  %v2363 = vand.u32 2147483647, %v2322
  %vm2364 = vcmp.eq.f32.partialorder %v2363, 8.507059e+37
  %v2365 = vand.u32 %v2322, 2147483648
  %v2366 = vor.u32 1.1754944e-38, %v2365
  %v2367 = vsel %vm2364, %v2366, %v2362
  %v2368 = vmul.f32 1.0, %v2367
  %v2369 = vrcp.pop %v2323
  %v2370 = vmul.f32 %v2323, %v2369
  %v2371 = vsub.f32 1.0, %v2370
  %v2372 = vmul.f32 %v2369, %v2371
  %v2373 = vadd.f32 %v2369, %v2372
  %vm2374 = vweird.f32 %v2323
  %vm2375 = vweird.f32 %v2369
  %vm2376 = vmor %vm2374, %vm2375
  %v2377 = vsel %vm2376, %v2369, %v2373
  %v2378 = vand.u32 2147483647, %v2323
  %vm2379 = vcmp.eq.f32.partialorder %v2378, 8.507059e+37
  %v2380 = vand.u32 %v2323, 2147483648
  %v2381 = vor.u32 1.1754944e-38, %v2380
  %v2382 = vsel %vm2379, %v2381, %v2377
  %v2383 = vmul.f32 1.0, %v2382
  %v2384 = vadd.f32 %v2275, %v1129
  %v2385 = vadd.f32 %v2301, %v1130
  %v2386 = vmul.f32 %v2338, %v2384
  %v2387 = vmul.f32 %v2353, %v2385
  %v2388 = vadd.f32 %v2144, %v2386
  %v2389 = vadd.f32 %v2145, %v2387
  %v2390 = vtanh.pop %v2388
  %v2391 = vtanh.pop %v2389
  %v2392 = vsub.f32 1.0, %v2368
  %v2393 = vsub.f32 1.0, %v2383
  %v2394 = vmul.f32 %v2392, %v2390
  %v2395 = vmul.f32 %v2393, %v2391
  %v2396 = vmul.f32 %v2368, %v2133
  %v2397 = vmul.f32 %v2383, %v2134
  %v2398 = vadd.f32 %v2394, %v2396
  %v2399 = vadd.f32 %v2395, %v2397
  %s2400 = scalar_lea.vmem %s5, 32
  %2401 = vst [vmem:[%s2400] sm:$0xff] %v2398
  %s2402 = scalar_lea.vmem %s5, 80
  %2403 = vst [vmem:[%s2402 + $0x8] sm:$0xff] %v2399
  %s2404 = scalar_lea.vmem [#allocation2], 144
  %v2405 = vld [vmem:[%s2404] sm:$0xff]
  %v2406 = vld [vmem:[%s2404 + $0x8] sm:$0xff]
  %v2407 = vld [vmem:[%s2404 + $0x10] sm:$0xff]
  %v2408 = vld [vmem:[%s2404 + $0x18] sm:$0xff]
  %v2409 = vld [vmem:[%s2404 + $0x20] sm:$0xff]
  %v2410 = vld [vmem:[%s2404 + $0x28] sm:$0xff]
  %v2411 = vpack.c.bf16 %v2398, %v2398
  %v2412 = vpack.c.bf16 %v2399, %v2399
  %2413 = vmatpush.bf16.msra.mxu0 %v1469
  %2414 = vmatpush.bf16.msra.mxu0 %v1463
  %2415 = vmatpush.bf16.msra.mxu0 %v1457
  %2416 = vmatpush.bf16.msra.mxu0 %v1451
  %2417 = vmatpush.bf16.msra.mxu0 %v1445
  %2418 = vmatpush.bf16.msra.mxu0 %v1439
  %2419 = vmatpush.bf16.msra.mxu0 %v1433
  %2420 = vmatpush.bf16.msra.mxu0 %v1427
  %2421 = vmatmul.bf16.gmra.mxu0 %v2411
  %v2422 = vpop.f32.mrf.mxu0
  %v2423 = vadd.f32 0.0, %v2422
  %v2424 = vpop.f32.mrf.mxu0
  %2425 = vdwg.mxu0
  %2426 = vmatpush.bf16.msra.mxu0 %v1517
  %2427 = vmatpush.bf16.msra.mxu0 %v1511
  %2428 = vmatpush.bf16.msra.mxu0 %v1505
  %2429 = vmatpush.bf16.msra.mxu0 %v1499
  %2430 = vmatpush.bf16.msra.mxu0 %v1493
  %2431 = vmatpush.bf16.msra.mxu0 %v1487
  %2432 = vmatpush.bf16.msra.mxu0 %v1481
  %2433 = vmatpush.bf16.msra.mxu0 %v1475
  %2434 = vmatmul.bf16.gmra.mxu0 %v2412
  %v2435 = vpop.f32.mrf.mxu0
  %v2436 = vadd.f32 %v2423, %v2435
  %v2437 = vpop.f32.mrf.mxu0
  %2438 = vdwg.mxu0
  %2439 = vmatpush.bf16.msra.mxu0 %v1470
  %2440 = vmatpush.bf16.msra.mxu0 %v1464
  %2441 = vmatpush.bf16.msra.mxu0 %v1458
  %2442 = vmatpush.bf16.msra.mxu0 %v1452
  %2443 = vmatpush.bf16.msra.mxu0 %v1446
  %2444 = vmatpush.bf16.msra.mxu0 %v1440
  %2445 = vmatpush.bf16.msra.mxu0 %v1434
  %2446 = vmatpush.bf16.msra.mxu0 %v1428
  %2447 = vmatmul.bf16.gmra.mxu0 %v2411
  %v2448 = vpop.f32.mrf.mxu0
  %v2449 = vadd.f32 0.0, %v2448
  %v2450 = vpop.f32.mrf.mxu0
  %2451 = vdwg.mxu0
  %2452 = vmatpush.bf16.msra.mxu0 %v1518
  %2453 = vmatpush.bf16.msra.mxu0 %v1512
  %2454 = vmatpush.bf16.msra.mxu0 %v1506
  %2455 = vmatpush.bf16.msra.mxu0 %v1500
  %2456 = vmatpush.bf16.msra.mxu0 %v1494
  %2457 = vmatpush.bf16.msra.mxu0 %v1488
  %2458 = vmatpush.bf16.msra.mxu0 %v1482
  %2459 = vmatpush.bf16.msra.mxu0 %v1476
  %2460 = vmatmul.bf16.gmra.mxu0 %v2412
  %v2461 = vpop.f32.mrf.mxu0
  %v2462 = vadd.f32 %v2449, %v2461
  %v2463 = vpop.f32.mrf.mxu0
  %2464 = vdwg.mxu0
  %2465 = vmatpush.bf16.msra.mxu0 %v1471
  %2466 = vmatpush.bf16.msra.mxu0 %v1465
  %2467 = vmatpush.bf16.msra.mxu0 %v1459
  %2468 = vmatpush.bf16.msra.mxu0 %v1453
  %2469 = vmatpush.bf16.msra.mxu0 %v1447
  %2470 = vmatpush.bf16.msra.mxu0 %v1441
  %2471 = vmatpush.bf16.msra.mxu0 %v1435
  %2472 = vmatpush.bf16.msra.mxu0 %v1429
  %2473 = vmatmul.bf16.gmra.mxu0 %v2411
  %v2474 = vpop.f32.mrf.mxu0
  %v2475 = vadd.f32 0.0, %v2474
  %v2476 = vpop.f32.mrf.mxu0
  %2477 = vdwg.mxu0
  %2478 = vmatpush.bf16.msra.mxu0 %v1519
  %2479 = vmatpush.bf16.msra.mxu0 %v1513
  %2480 = vmatpush.bf16.msra.mxu0 %v1507
  %2481 = vmatpush.bf16.msra.mxu0 %v1501
  %2482 = vmatpush.bf16.msra.mxu0 %v1495
  %2483 = vmatpush.bf16.msra.mxu0 %v1489
  %2484 = vmatpush.bf16.msra.mxu0 %v1483
  %2485 = vmatpush.bf16.msra.mxu0 %v1477
  %2486 = vmatmul.bf16.gmra.mxu0 %v2412
  %v2487 = vpop.f32.mrf.mxu0
  %v2488 = vadd.f32 %v2475, %v2487
  %v2489 = vpop.f32.mrf.mxu0
  %2490 = vdwg.mxu0
  %2491 = vmatpush.bf16.msra.mxu0 %v1472
  %2492 = vmatpush.bf16.msra.mxu0 %v1466
  %2493 = vmatpush.bf16.msra.mxu0 %v1460
  %2494 = vmatpush.bf16.msra.mxu0 %v1454
  %2495 = vmatpush.bf16.msra.mxu0 %v1448
  %2496 = vmatpush.bf16.msra.mxu0 %v1442
  %2497 = vmatpush.bf16.msra.mxu0 %v1436
  %2498 = vmatpush.bf16.msra.mxu0 %v1430
  %2499 = vmatmul.bf16.gmra.mxu0 %v2411
  %v2500 = vpop.f32.mrf.mxu0
  %v2501 = vadd.f32 0.0, %v2500
  %v2502 = vpop.f32.mrf.mxu0
  %2503 = vdwg.mxu0
  %2504 = vmatpush.bf16.msra.mxu0 %v1520
  %2505 = vmatpush.bf16.msra.mxu0 %v1514
  %2506 = vmatpush.bf16.msra.mxu0 %v1508
  %2507 = vmatpush.bf16.msra.mxu0 %v1502
  %2508 = vmatpush.bf16.msra.mxu0 %v1496
  %2509 = vmatpush.bf16.msra.mxu0 %v1490
  %2510 = vmatpush.bf16.msra.mxu0 %v1484
  %2511 = vmatpush.bf16.msra.mxu0 %v1478
  %2512 = vmatmul.bf16.gmra.mxu0 %v2412
  %v2513 = vpop.f32.mrf.mxu0
  %v2514 = vadd.f32 %v2501, %v2513
  %v2515 = vpop.f32.mrf.mxu0
  %2516 = vdwg.mxu0
  %2517 = vmatpush.bf16.msra.mxu0 %v1473
  %2518 = vmatpush.bf16.msra.mxu0 %v1467
  %2519 = vmatpush.bf16.msra.mxu0 %v1461
  %2520 = vmatpush.bf16.msra.mxu0 %v1455
  %2521 = vmatpush.bf16.msra.mxu0 %v1449
  %2522 = vmatpush.bf16.msra.mxu0 %v1443
  %2523 = vmatpush.bf16.msra.mxu0 %v1437
  %2524 = vmatpush.bf16.msra.mxu0 %v1431
  %2525 = vmatmul.bf16.gmra.mxu0 %v2411
  %v2526 = vpop.f32.mrf.mxu0
  %v2527 = vadd.f32 0.0, %v2526
  %v2528 = vpop.f32.mrf.mxu0
  %2529 = vdwg.mxu0
  %2530 = vmatpush.bf16.msra.mxu0 %v1521
  %2531 = vmatpush.bf16.msra.mxu0 %v1515
  %2532 = vmatpush.bf16.msra.mxu0 %v1509
  %2533 = vmatpush.bf16.msra.mxu0 %v1503
  %2534 = vmatpush.bf16.msra.mxu0 %v1497
  %2535 = vmatpush.bf16.msra.mxu0 %v1491
  %2536 = vmatpush.bf16.msra.mxu0 %v1485
  %2537 = vmatpush.bf16.msra.mxu0 %v1479
  %2538 = vmatmul.bf16.gmra.mxu0 %v2412
  %v2539 = vpop.f32.mrf.mxu0
  %v2540 = vadd.f32 %v2527, %v2539
  %v2541 = vpop.f32.mrf.mxu0
  %2542 = vdwg.mxu0
  %2543 = vmatpush.bf16.msra.mxu0 %v1474
  %2544 = vmatpush.bf16.msra.mxu0 %v1468
  %2545 = vmatpush.bf16.msra.mxu0 %v1462
  %2546 = vmatpush.bf16.msra.mxu0 %v1456
  %2547 = vmatpush.bf16.msra.mxu0 %v1450
  %2548 = vmatpush.bf16.msra.mxu0 %v1444
  %2549 = vmatpush.bf16.msra.mxu0 %v1438
  %2550 = vmatpush.bf16.msra.mxu0 %v1432
  %2551 = vmatmul.bf16.gmra.mxu0 %v2411
  %v2552 = vpop.f32.mrf.mxu0
  %v2553 = vadd.f32 0.0, %v2552
  %v2554 = vpop.f32.mrf.mxu0
  %2555 = vdwg.mxu0
  %2556 = vmatpush.bf16.msra.mxu0 %v1522
  %2557 = vmatpush.bf16.msra.mxu0 %v1516
  %2558 = vmatpush.bf16.msra.mxu0 %v1510
  %2559 = vmatpush.bf16.msra.mxu0 %v1504
  %2560 = vmatpush.bf16.msra.mxu0 %v1498
  %2561 = vmatpush.bf16.msra.mxu0 %v1492
  %2562 = vmatpush.bf16.msra.mxu0 %v1486
  %2563 = vmatpush.bf16.msra.mxu0 %v1480
  %2564 = vmatmul.bf16.gmra.mxu0 %v2412
  %v2565 = vpop.f32.mrf.mxu0
  %v2566 = vadd.f32 %v2553, %v2565
  %v2567 = vpop.f32.mrf.mxu0
  %2568 = vdwg.mxu0
  %v2569 = vadd.f32 %v2405, %v2436
  %v2570 = vadd.f32 %v2406, %v2462
  %v2571 = vadd.f32 %v2407, %v2488
  %v2572 = vadd.f32 %v2408, %v2514
  %v2573 = vxor.u32 %v2569, 2147483648
  %v2574 = vxor.u32 %v2570, 2147483648
  %v2575 = vxor.u32 %v2571, 2147483648
  %v2576 = vxor.u32 %v2572, 2147483648
  %v2577 = vmul.f32 %v2573, 1.442695
  %v2578 = vpow.pop %v2577
  %v2579 = vmul.f32 %v2574, 1.442695
  %v2580 = vpow.pop %v2579
  %v2581 = vmul.f32 %v2575, 1.442695
  %v2582 = vpow.pop %v2581
  %v2583 = vmul.f32 %v2576, 1.442695
  %v2584 = vpow.pop %v2583
  %v2585 = vadd.f32 %v2578, 1.0
  %v2586 = vadd.f32 %v2580, 1.0
  %v2587 = vadd.f32 %v2582, 1.0
  %v2588 = vadd.f32 %v2584, 1.0
  %v2589 = vrcp.pop %v2585
  %v2590 = vmul.f32 %v2585, %v2589
  %v2591 = vsub.f32 1.0, %v2590
  %v2592 = vmul.f32 %v2589, %v2591
  %v2593 = vadd.f32 %v2589, %v2592
  %vm2594 = vweird.f32 %v2585
  %vm2595 = vweird.f32 %v2589
  %vm2596 = vmor %vm2594, %vm2595
  %v2597 = vsel %vm2596, %v2589, %v2593
  %v2598 = vand.u32 2147483647, %v2585
  %vm2599 = vcmp.eq.f32.partialorder %v2598, 8.507059e+37
  %v2600 = vand.u32 %v2585, 2147483648
  %v2601 = vor.u32 1.1754944e-38, %v2600
  %v2602 = vsel %vm2599, %v2601, %v2597
  %v2603 = vmul.f32 1.0, %v2602
  %v2604 = vrcp.pop %v2586
  %v2605 = vmul.f32 %v2586, %v2604
  %v2606 = vsub.f32 1.0, %v2605
  %v2607 = vmul.f32 %v2604, %v2606
  %v2608 = vadd.f32 %v2604, %v2607
  %vm2609 = vweird.f32 %v2586
  %vm2610 = vweird.f32 %v2604
  %vm2611 = vmor %vm2609, %vm2610
  %v2612 = vsel %vm2611, %v2604, %v2608
  %v2613 = vand.u32 2147483647, %v2586
  %vm2614 = vcmp.eq.f32.partialorder %v2613, 8.507059e+37
  %v2615 = vand.u32 %v2586, 2147483648
  %v2616 = vor.u32 1.1754944e-38, %v2615
  %v2617 = vsel %vm2614, %v2616, %v2612
  %v2618 = vmul.f32 1.0, %v2617
  %v2619 = vrcp.pop %v2587
  %v2620 = vmul.f32 %v2587, %v2619
  %v2621 = vsub.f32 1.0, %v2620
  %v2622 = vmul.f32 %v2619, %v2621
  %v2623 = vadd.f32 %v2619, %v2622
  %vm2624 = vweird.f32 %v2587
  %vm2625 = vweird.f32 %v2619
  %vm2626 = vmor %vm2624, %vm2625
  %v2627 = vsel %vm2626, %v2619, %v2623
  %v2628 = vand.u32 2147483647, %v2587
  %vm2629 = vcmp.eq.f32.partialorder %v2628, 8.507059e+37
  %v2630 = vand.u32 %v2587, 2147483648
  %v2631 = vor.u32 1.1754944e-38, %v2630
  %v2632 = vsel %vm2629, %v2631, %v2627
  %v2633 = vmul.f32 1.0, %v2632
  %v2634 = vrcp.pop %v2588
  %v2635 = vmul.f32 %v2588, %v2634
  %v2636 = vsub.f32 1.0, %v2635
  %v2637 = vmul.f32 %v2634, %v2636
  %v2638 = vadd.f32 %v2634, %v2637
  %vm2639 = vweird.f32 %v2588
  %vm2640 = vweird.f32 %v2634
  %vm2641 = vmor %vm2639, %vm2640
  %v2642 = vsel %vm2641, %v2634, %v2638
  %v2643 = vand.u32 2147483647, %v2588
  %vm2644 = vcmp.eq.f32.partialorder %v2643, 8.507059e+37
  %v2645 = vand.u32 %v2588, 2147483648
  %v2646 = vor.u32 1.1754944e-38, %v2645
  %v2647 = vsel %vm2644, %v2646, %v2642
  %v2648 = vmul.f32 1.0, %v2647
  %v2649 = vadd.f32 %v2540, %v1129
  %v2650 = vadd.f32 %v2566, %v1130
  %v2651 = vmul.f32 %v2603, %v2649
  %v2652 = vmul.f32 %v2618, %v2650
  %v2653 = vadd.f32 %v2409, %v2651
  %v2654 = vadd.f32 %v2410, %v2652
  %v2655 = vtanh.pop %v2653
  %v2656 = vtanh.pop %v2654
  %v2657 = vsub.f32 1.0, %v2633
  %v2658 = vsub.f32 1.0, %v2648
  %v2659 = vmul.f32 %v2657, %v2655
  %v2660 = vmul.f32 %v2658, %v2656
  %v2661 = vmul.f32 %v2633, %v2398
  %v2662 = vmul.f32 %v2648, %v2399
  %v2663 = vadd.f32 %v2659, %v2661
  %v2664 = vadd.f32 %v2660, %v2662
  %s2665 = scalar_lea.vmem %s5, 48
  %2666 = vst [vmem:[%s2665] sm:$0xff] %v2663
  %s2667 = scalar_lea.vmem %s5, 64
  %2668 = vst [vmem:[%s2667 + $0x8] sm:$0xff] %v2664
  %s2669 = scalar_lea.vmem [#allocation2], 192
  %v2670 = vld [vmem:[%s2669] sm:$0xff]
  %v2671 = vld [vmem:[%s2669 + $0x8] sm:$0xff]
  %v2672 = vld [vmem:[%s2669 + $0x10] sm:$0xff]
  %v2673 = vld [vmem:[%s2669 + $0x18] sm:$0xff]
  %v2674 = vld [vmem:[%s2669 + $0x20] sm:$0xff]
  %v2675 = vld [vmem:[%s2669 + $0x28] sm:$0xff]
  %v2676 = vpack.c.bf16 %v2663, %v2663
  %v2677 = vpack.c.bf16 %v2664, %v2664
  %2678 = vmatpush.bf16.msra.mxu0 %v1469
  %2679 = vmatpush.bf16.msra.mxu0 %v1463
  %2680 = vmatpush.bf16.msra.mxu0 %v1457
  %2681 = vmatpush.bf16.msra.mxu0 %v1451
  %2682 = vmatpush.bf16.msra.mxu0 %v1445
  %2683 = vmatpush.bf16.msra.mxu0 %v1439
  %2684 = vmatpush.bf16.msra.mxu0 %v1433
  %2685 = vmatpush.bf16.msra.mxu0 %v1427
  %2686 = vmatmul.bf16.gmra.mxu0 %v2676
  %v2687 = vpop.f32.mrf.mxu0
  %v2688 = vadd.f32 0.0, %v2687
  %v2689 = vpop.f32.mrf.mxu0
  %2690 = vdwg.mxu0
  %2691 = vmatpush.bf16.msra.mxu0 %v1517
  %2692 = vmatpush.bf16.msra.mxu0 %v1511
  %2693 = vmatpush.bf16.msra.mxu0 %v1505
  %2694 = vmatpush.bf16.msra.mxu0 %v1499
  %2695 = vmatpush.bf16.msra.mxu0 %v1493
  %2696 = vmatpush.bf16.msra.mxu0 %v1487
  %2697 = vmatpush.bf16.msra.mxu0 %v1481
  %2698 = vmatpush.bf16.msra.mxu0 %v1475
  %2699 = vmatmul.bf16.gmra.mxu0 %v2677
  %v2700 = vpop.f32.mrf.mxu0
  %v2701 = vadd.f32 %v2688, %v2700
  %v2702 = vpop.f32.mrf.mxu0
  %2703 = vdwg.mxu0
  %2704 = vmatpush.bf16.msra.mxu0 %v1470
  %2705 = vmatpush.bf16.msra.mxu0 %v1464
  %2706 = vmatpush.bf16.msra.mxu0 %v1458
  %2707 = vmatpush.bf16.msra.mxu0 %v1452
  %2708 = vmatpush.bf16.msra.mxu0 %v1446
  %2709 = vmatpush.bf16.msra.mxu0 %v1440
  %2710 = vmatpush.bf16.msra.mxu0 %v1434
  %2711 = vmatpush.bf16.msra.mxu0 %v1428
  %2712 = vmatmul.bf16.gmra.mxu0 %v2676
  %v2713 = vpop.f32.mrf.mxu0
  %v2714 = vadd.f32 0.0, %v2713
  %v2715 = vpop.f32.mrf.mxu0
  %2716 = vdwg.mxu0
  %2717 = vmatpush.bf16.msra.mxu0 %v1518
  %2718 = vmatpush.bf16.msra.mxu0 %v1512
  %2719 = vmatpush.bf16.msra.mxu0 %v1506
  %2720 = vmatpush.bf16.msra.mxu0 %v1500
  %2721 = vmatpush.bf16.msra.mxu0 %v1494
  %2722 = vmatpush.bf16.msra.mxu0 %v1488
  %2723 = vmatpush.bf16.msra.mxu0 %v1482
  %2724 = vmatpush.bf16.msra.mxu0 %v1476
  %2725 = vmatmul.bf16.gmra.mxu0 %v2677
  %v2726 = vpop.f32.mrf.mxu0
  %v2727 = vadd.f32 %v2714, %v2726
  %v2728 = vpop.f32.mrf.mxu0
  %2729 = vdwg.mxu0
  %2730 = vmatpush.bf16.msra.mxu0 %v1471
  %2731 = vmatpush.bf16.msra.mxu0 %v1465
  %2732 = vmatpush.bf16.msra.mxu0 %v1459
  %2733 = vmatpush.bf16.msra.mxu0 %v1453
  %2734 = vmatpush.bf16.msra.mxu0 %v1447
  %2735 = vmatpush.bf16.msra.mxu0 %v1441
  %2736 = vmatpush.bf16.msra.mxu0 %v1435
  %2737 = vmatpush.bf16.msra.mxu0 %v1429
  %2738 = vmatmul.bf16.gmra.mxu0 %v2676
  %v2739 = vpop.f32.mrf.mxu0
  %v2740 = vadd.f32 0.0, %v2739
  %v2741 = vpop.f32.mrf.mxu0
  %2742 = vdwg.mxu0
  %2743 = vmatpush.bf16.msra.mxu0 %v1519
  %2744 = vmatpush.bf16.msra.mxu0 %v1513
  %2745 = vmatpush.bf16.msra.mxu0 %v1507
  %2746 = vmatpush.bf16.msra.mxu0 %v1501
  %2747 = vmatpush.bf16.msra.mxu0 %v1495
  %2748 = vmatpush.bf16.msra.mxu0 %v1489
  %2749 = vmatpush.bf16.msra.mxu0 %v1483
  %2750 = vmatpush.bf16.msra.mxu0 %v1477
  %2751 = vmatmul.bf16.gmra.mxu0 %v2677
  %v2752 = vpop.f32.mrf.mxu0
  %v2753 = vadd.f32 %v2740, %v2752
  %v2754 = vpop.f32.mrf.mxu0
  %2755 = vdwg.mxu0
  %2756 = vmatpush.bf16.msra.mxu0 %v1472
  %2757 = vmatpush.bf16.msra.mxu0 %v1466
  %2758 = vmatpush.bf16.msra.mxu0 %v1460
  %2759 = vmatpush.bf16.msra.mxu0 %v1454
  %2760 = vmatpush.bf16.msra.mxu0 %v1448
  %2761 = vmatpush.bf16.msra.mxu0 %v1442
  %2762 = vmatpush.bf16.msra.mxu0 %v1436
  %2763 = vmatpush.bf16.msra.mxu0 %v1430
  %2764 = vmatmul.bf16.gmra.mxu0 %v2676
  %v2765 = vpop.f32.mrf.mxu0
  %v2766 = vadd.f32 0.0, %v2765
  %v2767 = vpop.f32.mrf.mxu0
  %2768 = vdwg.mxu0
  %2769 = vmatpush.bf16.msra.mxu0 %v1520
  %2770 = vmatpush.bf16.msra.mxu0 %v1514
  %2771 = vmatpush.bf16.msra.mxu0 %v1508
  %2772 = vmatpush.bf16.msra.mxu0 %v1502
  %2773 = vmatpush.bf16.msra.mxu0 %v1496
  %2774 = vmatpush.bf16.msra.mxu0 %v1490
  %2775 = vmatpush.bf16.msra.mxu0 %v1484
  %2776 = vmatpush.bf16.msra.mxu0 %v1478
  %2777 = vmatmul.bf16.gmra.mxu0 %v2677
  %v2778 = vpop.f32.mrf.mxu0
  %v2779 = vadd.f32 %v2766, %v2778
  %v2780 = vpop.f32.mrf.mxu0
  %2781 = vdwg.mxu0
  %2782 = vmatpush.bf16.msra.mxu0 %v1473
  %2783 = vmatpush.bf16.msra.mxu0 %v1467
  %2784 = vmatpush.bf16.msra.mxu0 %v1461
  %2785 = vmatpush.bf16.msra.mxu0 %v1455
  %2786 = vmatpush.bf16.msra.mxu0 %v1449
  %2787 = vmatpush.bf16.msra.mxu0 %v1443
  %2788 = vmatpush.bf16.msra.mxu0 %v1437
  %2789 = vmatpush.bf16.msra.mxu0 %v1431
  %2790 = vmatmul.bf16.gmra.mxu0 %v2676
  %v2791 = vpop.f32.mrf.mxu0
  %v2792 = vadd.f32 0.0, %v2791
  %v2793 = vpop.f32.mrf.mxu0
  %2794 = vdwg.mxu0
  %2795 = vmatpush.bf16.msra.mxu0 %v1521
  %2796 = vmatpush.bf16.msra.mxu0 %v1515
  %2797 = vmatpush.bf16.msra.mxu0 %v1509
  %2798 = vmatpush.bf16.msra.mxu0 %v1503
  %2799 = vmatpush.bf16.msra.mxu0 %v1497
  %2800 = vmatpush.bf16.msra.mxu0 %v1491
  %2801 = vmatpush.bf16.msra.mxu0 %v1485
  %2802 = vmatpush.bf16.msra.mxu0 %v1479
  %2803 = vmatmul.bf16.gmra.mxu0 %v2677
  %v2804 = vpop.f32.mrf.mxu0
  %v2805 = vadd.f32 %v2792, %v2804
  %v2806 = vpop.f32.mrf.mxu0
  %2807 = vdwg.mxu0
  %2808 = vmatpush.bf16.msra.mxu0 %v1474
  %2809 = vmatpush.bf16.msra.mxu0 %v1468
  %2810 = vmatpush.bf16.msra.mxu0 %v1462
  %2811 = vmatpush.bf16.msra.mxu0 %v1456
  %2812 = vmatpush.bf16.msra.mxu0 %v1450
  %2813 = vmatpush.bf16.msra.mxu0 %v1444
  %2814 = vmatpush.bf16.msra.mxu0 %v1438
  %2815 = vmatpush.bf16.msra.mxu0 %v1432
  %2816 = vmatmul.bf16.gmra.mxu0 %v2676
  %v2817 = vpop.f32.mrf.mxu0
  %v2818 = vadd.f32 0.0, %v2817
  %v2819 = vpop.f32.mrf.mxu0
  %2820 = vdwg.mxu0
  %2821 = vmatpush.bf16.msra.mxu0 %v1522
  %2822 = vmatpush.bf16.msra.mxu0 %v1516
  %2823 = vmatpush.bf16.msra.mxu0 %v1510
  %2824 = vmatpush.bf16.msra.mxu0 %v1504
  %2825 = vmatpush.bf16.msra.mxu0 %v1498
  %2826 = vmatpush.bf16.msra.mxu0 %v1492
  %2827 = vmatpush.bf16.msra.mxu0 %v1486
  %2828 = vmatpush.bf16.msra.mxu0 %v1480
  %2829 = vmatmul.bf16.gmra.mxu0 %v2677
  %v2830 = vpop.f32.mrf.mxu0
  %v2831 = vadd.f32 %v2818, %v2830
  %v2832 = vpop.f32.mrf.mxu0
  %2833 = vdwg.mxu0
  %v2834 = vadd.f32 %v2670, %v2701
  %v2835 = vadd.f32 %v2671, %v2727
  %v2836 = vadd.f32 %v2672, %v2753
  %v2837 = vadd.f32 %v2673, %v2779
  %v2838 = vxor.u32 %v2834, 2147483648
  %v2839 = vxor.u32 %v2835, 2147483648
  %v2840 = vxor.u32 %v2836, 2147483648
  %v2841 = vxor.u32 %v2837, 2147483648
  %v2842 = vmul.f32 %v2838, 1.442695
  %v2843 = vpow.pop %v2842
  %v2844 = vmul.f32 %v2839, 1.442695
  %v2845 = vpow.pop %v2844
  %v2846 = vmul.f32 %v2840, 1.442695
  %v2847 = vpow.pop %v2846
  %v2848 = vmul.f32 %v2841, 1.442695
  %v2849 = vpow.pop %v2848
  %v2850 = vadd.f32 %v2843, 1.0
  %v2851 = vadd.f32 %v2845, 1.0
  %v2852 = vadd.f32 %v2847, 1.0
  %v2853 = vadd.f32 %v2849, 1.0
  %v2854 = vrcp.pop %v2850
  %v2855 = vmul.f32 %v2850, %v2854
  %v2856 = vsub.f32 1.0, %v2855
  %v2857 = vmul.f32 %v2854, %v2856
  %v2858 = vadd.f32 %v2854, %v2857
  %vm2859 = vweird.f32 %v2850
  %vm2860 = vweird.f32 %v2854
  %vm2861 = vmor %vm2859, %vm2860
  %v2862 = vsel %vm2861, %v2854, %v2858
  %v2863 = vand.u32 2147483647, %v2850
  %vm2864 = vcmp.eq.f32.partialorder %v2863, 8.507059e+37
  %v2865 = vand.u32 %v2850, 2147483648
  %v2866 = vor.u32 1.1754944e-38, %v2865
  %v2867 = vsel %vm2864, %v2866, %v2862
  %v2868 = vmul.f32 1.0, %v2867
  %v2869 = vrcp.pop %v2851
  %v2870 = vmul.f32 %v2851, %v2869
  %v2871 = vsub.f32 1.0, %v2870
  %v2872 = vmul.f32 %v2869, %v2871
  %v2873 = vadd.f32 %v2869, %v2872
  %vm2874 = vweird.f32 %v2851
  %vm2875 = vweird.f32 %v2869
  %vm2876 = vmor %vm2874, %vm2875
  %v2877 = vsel %vm2876, %v2869, %v2873
  %v2878 = vand.u32 2147483647, %v2851
  %vm2879 = vcmp.eq.f32.partialorder %v2878, 8.507059e+37
  %v2880 = vand.u32 %v2851, 2147483648
  %v2881 = vor.u32 1.1754944e-38, %v2880
  %v2882 = vsel %vm2879, %v2881, %v2877
  %v2883 = vmul.f32 1.0, %v2882
  %v2884 = vrcp.pop %v2852
  %v2885 = vmul.f32 %v2852, %v2884
  %v2886 = vsub.f32 1.0, %v2885
  %v2887 = vmul.f32 %v2884, %v2886
  %v2888 = vadd.f32 %v2884, %v2887
  %vm2889 = vweird.f32 %v2852
  %vm2890 = vweird.f32 %v2884
  %vm2891 = vmor %vm2889, %vm2890
  %v2892 = vsel %vm2891, %v2884, %v2888
  %v2893 = vand.u32 2147483647, %v2852
  %vm2894 = vcmp.eq.f32.partialorder %v2893, 8.507059e+37
  %v2895 = vand.u32 %v2852, 2147483648
  %v2896 = vor.u32 1.1754944e-38, %v2895
  %v2897 = vsel %vm2894, %v2896, %v2892
  %v2898 = vmul.f32 1.0, %v2897
  %v2899 = vrcp.pop %v2853
  %v2900 = vmul.f32 %v2853, %v2899
  %v2901 = vsub.f32 1.0, %v2900
  %v2902 = vmul.f32 %v2899, %v2901
  %v2903 = vadd.f32 %v2899, %v2902
  %vm2904 = vweird.f32 %v2853
  %vm2905 = vweird.f32 %v2899
  %vm2906 = vmor %vm2904, %vm2905
  %v2907 = vsel %vm2906, %v2899, %v2903
  %v2908 = vand.u32 2147483647, %v2853
  %vm2909 = vcmp.eq.f32.partialorder %v2908, 8.507059e+37
  %v2910 = vand.u32 %v2853, 2147483648
  %v2911 = vor.u32 1.1754944e-38, %v2910
  %v2912 = vsel %vm2909, %v2911, %v2907
  %v2913 = vmul.f32 1.0, %v2912
  %v2914 = vadd.f32 %v2805, %v1129
  %v2915 = vadd.f32 %v2831, %v1130
  %v2916 = vmul.f32 %v2868, %v2914
  %v2917 = vmul.f32 %v2883, %v2915
  %v2918 = vadd.f32 %v2674, %v2916
  %v2919 = vadd.f32 %v2675, %v2917
  %v2920 = vtanh.pop %v2918
  %v2921 = vtanh.pop %v2919
  %v2922 = vsub.f32 1.0, %v2898
  %v2923 = vsub.f32 1.0, %v2913
  %v2924 = vmul.f32 %v2922, %v2920
  %v2925 = vmul.f32 %v2923, %v2921
  %v2926 = vmul.f32 %v2898, %v2663
  %v2927 = vmul.f32 %v2913, %v2664
  %v2928 = vadd.f32 %v2924, %v2926
  %v2929 = vadd.f32 %v2925, %v2927
  %2930 = vst [vmem:[%s2667] sm:$0xff] %v2928
  %2931 = vst [vmem:[%s2665 + $0x8] sm:$0xff] %v2929
  %s2932 = scalar_lea.vmem [#allocation2], 240
  %v2933 = vld [vmem:[%s2932] sm:$0xff]
  %v2934 = vld [vmem:[%s2932 + $0x8] sm:$0xff]
  %v2935 = vld [vmem:[%s2932 + $0x10] sm:$0xff]
  %v2936 = vld [vmem:[%s2932 + $0x18] sm:$0xff]
  %v2937 = vld [vmem:[%s2932 + $0x20] sm:$0xff]
  %v2938 = vld [vmem:[%s2932 + $0x28] sm:$0xff]
  %v2939 = vpack.c.bf16 %v2928, %v2928
  %v2940 = vpack.c.bf16 %v2929, %v2929
  %2941 = vmatpush.bf16.msra.mxu0 %v1469
  %2942 = vmatpush.bf16.msra.mxu0 %v1463
  %2943 = vmatpush.bf16.msra.mxu0 %v1457
  %2944 = vmatpush.bf16.msra.mxu0 %v1451
  %2945 = vmatpush.bf16.msra.mxu0 %v1445
  %2946 = vmatpush.bf16.msra.mxu0 %v1439
  %2947 = vmatpush.bf16.msra.mxu0 %v1433
  %2948 = vmatpush.bf16.msra.mxu0 %v1427
  %2949 = vmatmul.bf16.gmra.mxu0 %v2939
  %v2950 = vpop.f32.mrf.mxu0
  %v2951 = vadd.f32 0.0, %v2950
  %v2952 = vpop.f32.mrf.mxu0
  %2953 = vdwg.mxu0
  %2954 = vmatpush.bf16.msra.mxu0 %v1517
  %2955 = vmatpush.bf16.msra.mxu0 %v1511
  %2956 = vmatpush.bf16.msra.mxu0 %v1505
  %2957 = vmatpush.bf16.msra.mxu0 %v1499
  %2958 = vmatpush.bf16.msra.mxu0 %v1493
  %2959 = vmatpush.bf16.msra.mxu0 %v1487
  %2960 = vmatpush.bf16.msra.mxu0 %v1481
  %2961 = vmatpush.bf16.msra.mxu0 %v1475
  %2962 = vmatmul.bf16.gmra.mxu0 %v2940
  %v2963 = vpop.f32.mrf.mxu0
  %v2964 = vadd.f32 %v2951, %v2963
  %v2965 = vpop.f32.mrf.mxu0
  %2966 = vdwg.mxu0
  %2967 = vmatpush.bf16.msra.mxu0 %v1470
  %2968 = vmatpush.bf16.msra.mxu0 %v1464
  %2969 = vmatpush.bf16.msra.mxu0 %v1458
  %2970 = vmatpush.bf16.msra.mxu0 %v1452
  %2971 = vmatpush.bf16.msra.mxu0 %v1446
  %2972 = vmatpush.bf16.msra.mxu0 %v1440
  %2973 = vmatpush.bf16.msra.mxu0 %v1434
  %2974 = vmatpush.bf16.msra.mxu0 %v1428
  %2975 = vmatmul.bf16.gmra.mxu0 %v2939
  %v2976 = vpop.f32.mrf.mxu0
  %v2977 = vadd.f32 0.0, %v2976
  %v2978 = vpop.f32.mrf.mxu0
  %2979 = vdwg.mxu0
  %2980 = vmatpush.bf16.msra.mxu0 %v1518
  %2981 = vmatpush.bf16.msra.mxu0 %v1512
  %2982 = vmatpush.bf16.msra.mxu0 %v1506
  %2983 = vmatpush.bf16.msra.mxu0 %v1500
  %2984 = vmatpush.bf16.msra.mxu0 %v1494
  %2985 = vmatpush.bf16.msra.mxu0 %v1488
  %2986 = vmatpush.bf16.msra.mxu0 %v1482
  %2987 = vmatpush.bf16.msra.mxu0 %v1476
  %2988 = vmatmul.bf16.gmra.mxu0 %v2940
  %v2989 = vpop.f32.mrf.mxu0
  %v2990 = vadd.f32 %v2977, %v2989
  %v2991 = vpop.f32.mrf.mxu0
  %2992 = vdwg.mxu0
  %2993 = vmatpush.bf16.msra.mxu0 %v1471
  %2994 = vmatpush.bf16.msra.mxu0 %v1465
  %2995 = vmatpush.bf16.msra.mxu0 %v1459
  %2996 = vmatpush.bf16.msra.mxu0 %v1453
  %2997 = vmatpush.bf16.msra.mxu0 %v1447
  %2998 = vmatpush.bf16.msra.mxu0 %v1441
  %2999 = vmatpush.bf16.msra.mxu0 %v1435
  %3000 = vmatpush.bf16.msra.mxu0 %v1429
  %3001 = vmatmul.bf16.gmra.mxu0 %v2939
  %v3002 = vpop.f32.mrf.mxu0
  %v3003 = vadd.f32 0.0, %v3002
  %v3004 = vpop.f32.mrf.mxu0
  %3005 = vdwg.mxu0
  %3006 = vmatpush.bf16.msra.mxu0 %v1519
  %3007 = vmatpush.bf16.msra.mxu0 %v1513
  %3008 = vmatpush.bf16.msra.mxu0 %v1507
  %3009 = vmatpush.bf16.msra.mxu0 %v1501
  %3010 = vmatpush.bf16.msra.mxu0 %v1495
  %3011 = vmatpush.bf16.msra.mxu0 %v1489
  %3012 = vmatpush.bf16.msra.mxu0 %v1483
  %3013 = vmatpush.bf16.msra.mxu0 %v1477
  %3014 = vmatmul.bf16.gmra.mxu0 %v2940
  %v3015 = vpop.f32.mrf.mxu0
  %v3016 = vadd.f32 %v3003, %v3015
  %v3017 = vpop.f32.mrf.mxu0
  %3018 = vdwg.mxu0
  %3019 = vmatpush.bf16.msra.mxu0 %v1472
  %3020 = vmatpush.bf16.msra.mxu0 %v1466
  %3021 = vmatpush.bf16.msra.mxu0 %v1460
  %3022 = vmatpush.bf16.msra.mxu0 %v1454
  %3023 = vmatpush.bf16.msra.mxu0 %v1448
  %3024 = vmatpush.bf16.msra.mxu0 %v1442
  %3025 = vmatpush.bf16.msra.mxu0 %v1436
  %3026 = vmatpush.bf16.msra.mxu0 %v1430
  %3027 = vmatmul.bf16.gmra.mxu0 %v2939
  %v3028 = vpop.f32.mrf.mxu0
  %v3029 = vadd.f32 0.0, %v3028
  %v3030 = vpop.f32.mrf.mxu0
  %3031 = vdwg.mxu0
  %3032 = vmatpush.bf16.msra.mxu0 %v1520
  %3033 = vmatpush.bf16.msra.mxu0 %v1514
  %3034 = vmatpush.bf16.msra.mxu0 %v1508
  %3035 = vmatpush.bf16.msra.mxu0 %v1502
  %3036 = vmatpush.bf16.msra.mxu0 %v1496
  %3037 = vmatpush.bf16.msra.mxu0 %v1490
  %3038 = vmatpush.bf16.msra.mxu0 %v1484
  %3039 = vmatpush.bf16.msra.mxu0 %v1478
  %3040 = vmatmul.bf16.gmra.mxu0 %v2940
  %v3041 = vpop.f32.mrf.mxu0
  %v3042 = vadd.f32 %v3029, %v3041
  %v3043 = vpop.f32.mrf.mxu0
  %3044 = vdwg.mxu0
  %3045 = vmatpush.bf16.msra.mxu0 %v1473
  %3046 = vmatpush.bf16.msra.mxu0 %v1467
  %3047 = vmatpush.bf16.msra.mxu0 %v1461
  %3048 = vmatpush.bf16.msra.mxu0 %v1455
  %3049 = vmatpush.bf16.msra.mxu0 %v1449
  %3050 = vmatpush.bf16.msra.mxu0 %v1443
  %3051 = vmatpush.bf16.msra.mxu0 %v1437
  %3052 = vmatpush.bf16.msra.mxu0 %v1431
  %3053 = vmatmul.bf16.gmra.mxu0 %v2939
  %v3054 = vpop.f32.mrf.mxu0
  %v3055 = vadd.f32 0.0, %v3054
  %v3056 = vpop.f32.mrf.mxu0
  %3057 = vdwg.mxu0
  %3058 = vmatpush.bf16.msra.mxu0 %v1521
  %3059 = vmatpush.bf16.msra.mxu0 %v1515
  %3060 = vmatpush.bf16.msra.mxu0 %v1509
  %3061 = vmatpush.bf16.msra.mxu0 %v1503
  %3062 = vmatpush.bf16.msra.mxu0 %v1497
  %3063 = vmatpush.bf16.msra.mxu0 %v1491
  %3064 = vmatpush.bf16.msra.mxu0 %v1485
  %3065 = vmatpush.bf16.msra.mxu0 %v1479
  %3066 = vmatmul.bf16.gmra.mxu0 %v2940
  %v3067 = vpop.f32.mrf.mxu0
  %v3068 = vadd.f32 %v3055, %v3067
  %v3069 = vpop.f32.mrf.mxu0
  %3070 = vdwg.mxu0
  %3071 = vmatpush.bf16.msra.mxu0 %v1474
  %3072 = vmatpush.bf16.msra.mxu0 %v1468
  %3073 = vmatpush.bf16.msra.mxu0 %v1462
  %3074 = vmatpush.bf16.msra.mxu0 %v1456
  %3075 = vmatpush.bf16.msra.mxu0 %v1450
  %3076 = vmatpush.bf16.msra.mxu0 %v1444
  %3077 = vmatpush.bf16.msra.mxu0 %v1438
  %3078 = vmatpush.bf16.msra.mxu0 %v1432
  %3079 = vmatmul.bf16.gmra.mxu0 %v2939
  %v3080 = vpop.f32.mrf.mxu0
  %v3081 = vadd.f32 0.0, %v3080
  %v3082 = vpop.f32.mrf.mxu0
  %3083 = vdwg.mxu0
  %3084 = vmatpush.bf16.msra.mxu0 %v1522
  %3085 = vmatpush.bf16.msra.mxu0 %v1516
  %3086 = vmatpush.bf16.msra.mxu0 %v1510
  %3087 = vmatpush.bf16.msra.mxu0 %v1504
  %3088 = vmatpush.bf16.msra.mxu0 %v1498
  %3089 = vmatpush.bf16.msra.mxu0 %v1492
  %3090 = vmatpush.bf16.msra.mxu0 %v1486
  %3091 = vmatpush.bf16.msra.mxu0 %v1480
  %3092 = vmatmul.bf16.gmra.mxu0 %v2940
  %v3093 = vpop.f32.mrf.mxu0
  %v3094 = vadd.f32 %v3081, %v3093
  %v3095 = vpop.f32.mrf.mxu0
  %3096 = vdwg.mxu0
  %v3097 = vadd.f32 %v2933, %v2964
  %v3098 = vadd.f32 %v2934, %v2990
  %v3099 = vadd.f32 %v2935, %v3016
  %v3100 = vadd.f32 %v2936, %v3042
  %v3101 = vxor.u32 %v3097, 2147483648
  %v3102 = vxor.u32 %v3098, 2147483648
  %v3103 = vxor.u32 %v3099, 2147483648
  %v3104 = vxor.u32 %v3100, 2147483648
  %v3105 = vmul.f32 %v3101, 1.442695
  %v3106 = vpow.pop %v3105
  %v3107 = vmul.f32 %v3102, 1.442695
  %v3108 = vpow.pop %v3107
  %v3109 = vmul.f32 %v3103, 1.442695
  %v3110 = vpow.pop %v3109
  %v3111 = vmul.f32 %v3104, 1.442695
  %v3112 = vpow.pop %v3111
  %v3113 = vadd.f32 %v3106, 1.0
  %v3114 = vadd.f32 %v3108, 1.0
  %v3115 = vadd.f32 %v3110, 1.0
  %v3116 = vadd.f32 %v3112, 1.0
  %v3117 = vrcp.pop %v3113
  %v3118 = vmul.f32 %v3113, %v3117
  %v3119 = vsub.f32 1.0, %v3118
  %v3120 = vmul.f32 %v3117, %v3119
  %v3121 = vadd.f32 %v3117, %v3120
  %vm3122 = vweird.f32 %v3113
  %vm3123 = vweird.f32 %v3117
  %vm3124 = vmor %vm3122, %vm3123
  %v3125 = vsel %vm3124, %v3117, %v3121
  %v3126 = vand.u32 2147483647, %v3113
  %vm3127 = vcmp.eq.f32.partialorder %v3126, 8.507059e+37
  %v3128 = vand.u32 %v3113, 2147483648
  %v3129 = vor.u32 1.1754944e-38, %v3128
  %v3130 = vsel %vm3127, %v3129, %v3125
  %v3131 = vmul.f32 1.0, %v3130
  %v3132 = vrcp.pop %v3114
  %v3133 = vmul.f32 %v3114, %v3132
  %v3134 = vsub.f32 1.0, %v3133
  %v3135 = vmul.f32 %v3132, %v3134
  %v3136 = vadd.f32 %v3132, %v3135
  %vm3137 = vweird.f32 %v3114
  %vm3138 = vweird.f32 %v3132
  %vm3139 = vmor %vm3137, %vm3138
  %v3140 = vsel %vm3139, %v3132, %v3136
  %v3141 = vand.u32 2147483647, %v3114
  %vm3142 = vcmp.eq.f32.partialorder %v3141, 8.507059e+37
  %v3143 = vand.u32 %v3114, 2147483648
  %v3144 = vor.u32 1.1754944e-38, %v3143
  %v3145 = vsel %vm3142, %v3144, %v3140
  %v3146 = vmul.f32 1.0, %v3145
  %v3147 = vrcp.pop %v3115
  %v3148 = vmul.f32 %v3115, %v3147
  %v3149 = vsub.f32 1.0, %v3148
  %v3150 = vmul.f32 %v3147, %v3149
  %v3151 = vadd.f32 %v3147, %v3150
  %vm3152 = vweird.f32 %v3115
  %vm3153 = vweird.f32 %v3147
  %vm3154 = vmor %vm3152, %vm3153
  %v3155 = vsel %vm3154, %v3147, %v3151
  %v3156 = vand.u32 2147483647, %v3115
  %vm3157 = vcmp.eq.f32.partialorder %v3156, 8.507059e+37
  %v3158 = vand.u32 %v3115, 2147483648
  %v3159 = vor.u32 1.1754944e-38, %v3158
  %v3160 = vsel %vm3157, %v3159, %v3155
  %v3161 = vmul.f32 1.0, %v3160
  %v3162 = vrcp.pop %v3116
  %v3163 = vmul.f32 %v3116, %v3162
  %v3164 = vsub.f32 1.0, %v3163
  %v3165 = vmul.f32 %v3162, %v3164
  %v3166 = vadd.f32 %v3162, %v3165
  %vm3167 = vweird.f32 %v3116
  %vm3168 = vweird.f32 %v3162
  %vm3169 = vmor %vm3167, %vm3168
  %v3170 = vsel %vm3169, %v3162, %v3166
  %v3171 = vand.u32 2147483647, %v3116
  %vm3172 = vcmp.eq.f32.partialorder %v3171, 8.507059e+37
  %v3173 = vand.u32 %v3116, 2147483648
  %v3174 = vor.u32 1.1754944e-38, %v3173
  %v3175 = vsel %vm3172, %v3174, %v3170
  %v3176 = vmul.f32 1.0, %v3175
  %v3177 = vadd.f32 %v3068, %v1129
  %v3178 = vadd.f32 %v3094, %v1130
  %v3179 = vmul.f32 %v3131, %v3177
  %v3180 = vmul.f32 %v3146, %v3178
  %v3181 = vadd.f32 %v2937, %v3179
  %v3182 = vadd.f32 %v2938, %v3180
  %v3183 = vtanh.pop %v3181
  %v3184 = vtanh.pop %v3182
  %v3185 = vsub.f32 1.0, %v3161
  %v3186 = vsub.f32 1.0, %v3176
  %v3187 = vmul.f32 %v3185, %v3183
  %v3188 = vmul.f32 %v3186, %v3184
  %v3189 = vmul.f32 %v3161, %v2928
  %v3190 = vmul.f32 %v3176, %v2929
  %v3191 = vadd.f32 %v3187, %v3189
  %v3192 = vadd.f32 %v3188, %v3190
  %3193 = vst [vmem:[%s2402] sm:$0xff] %v3191
  %3194 = vst [vmem:[%s2400 + $0x8] sm:$0xff] %v3192
  %s3195 = scalar_lea.vmem [#allocation2], 288
  %v3196 = vld [vmem:[%s3195] sm:$0xff]
  %v3197 = vld [vmem:[%s3195 + $0x8] sm:$0xff]
  %v3198 = vld [vmem:[%s3195 + $0x10] sm:$0xff]
  %v3199 = vld [vmem:[%s3195 + $0x18] sm:$0xff]
  %v3200 = vld [vmem:[%s3195 + $0x20] sm:$0xff]
  %v3201 = vld [vmem:[%s3195 + $0x28] sm:$0xff]
  %v3202 = vpack.c.bf16 %v3191, %v3191
  %v3203 = vpack.c.bf16 %v3192, %v3192
  %3204 = vmatpush.bf16.msra.mxu0 %v1469
  %3205 = vmatpush.bf16.msra.mxu0 %v1463
  %3206 = vmatpush.bf16.msra.mxu0 %v1457
  %3207 = vmatpush.bf16.msra.mxu0 %v1451
  %3208 = vmatpush.bf16.msra.mxu0 %v1445
  %3209 = vmatpush.bf16.msra.mxu0 %v1439
  %3210 = vmatpush.bf16.msra.mxu0 %v1433
  %3211 = vmatpush.bf16.msra.mxu0 %v1427
  %3212 = vmatmul.bf16.gmra.mxu0 %v3202
  %v3213 = vpop.f32.mrf.mxu0
  %v3214 = vadd.f32 0.0, %v3213
  %v3215 = vpop.f32.mrf.mxu0
  %3216 = vdwg.mxu0
  %3217 = vmatpush.bf16.msra.mxu0 %v1517
  %3218 = vmatpush.bf16.msra.mxu0 %v1511
  %3219 = vmatpush.bf16.msra.mxu0 %v1505
  %3220 = vmatpush.bf16.msra.mxu0 %v1499
  %3221 = vmatpush.bf16.msra.mxu0 %v1493
  %3222 = vmatpush.bf16.msra.mxu0 %v1487
  %3223 = vmatpush.bf16.msra.mxu0 %v1481
  %3224 = vmatpush.bf16.msra.mxu0 %v1475
  %3225 = vmatmul.bf16.gmra.mxu0 %v3203
  %v3226 = vpop.f32.mrf.mxu0
  %v3227 = vadd.f32 %v3214, %v3226
  %v3228 = vpop.f32.mrf.mxu0
  %3229 = vdwg.mxu0
  %3230 = vmatpush.bf16.msra.mxu0 %v1470
  %3231 = vmatpush.bf16.msra.mxu0 %v1464
  %3232 = vmatpush.bf16.msra.mxu0 %v1458
  %3233 = vmatpush.bf16.msra.mxu0 %v1452
  %3234 = vmatpush.bf16.msra.mxu0 %v1446
  %3235 = vmatpush.bf16.msra.mxu0 %v1440
  %3236 = vmatpush.bf16.msra.mxu0 %v1434
  %3237 = vmatpush.bf16.msra.mxu0 %v1428
  %3238 = vmatmul.bf16.gmra.mxu0 %v3202
  %v3239 = vpop.f32.mrf.mxu0
  %v3240 = vadd.f32 0.0, %v3239
  %v3241 = vpop.f32.mrf.mxu0
  %3242 = vdwg.mxu0
  %3243 = vmatpush.bf16.msra.mxu0 %v1518
  %3244 = vmatpush.bf16.msra.mxu0 %v1512
  %3245 = vmatpush.bf16.msra.mxu0 %v1506
  %3246 = vmatpush.bf16.msra.mxu0 %v1500
  %3247 = vmatpush.bf16.msra.mxu0 %v1494
  %3248 = vmatpush.bf16.msra.mxu0 %v1488
  %3249 = vmatpush.bf16.msra.mxu0 %v1482
  %3250 = vmatpush.bf16.msra.mxu0 %v1476
  %3251 = vmatmul.bf16.gmra.mxu0 %v3203
  %v3252 = vpop.f32.mrf.mxu0
  %v3253 = vadd.f32 %v3240, %v3252
  %v3254 = vpop.f32.mrf.mxu0
  %3255 = vdwg.mxu0
  %3256 = vmatpush.bf16.msra.mxu0 %v1471
  %3257 = vmatpush.bf16.msra.mxu0 %v1465
  %3258 = vmatpush.bf16.msra.mxu0 %v1459
  %3259 = vmatpush.bf16.msra.mxu0 %v1453
  %3260 = vmatpush.bf16.msra.mxu0 %v1447
  %3261 = vmatpush.bf16.msra.mxu0 %v1441
  %3262 = vmatpush.bf16.msra.mxu0 %v1435
  %3263 = vmatpush.bf16.msra.mxu0 %v1429
  %3264 = vmatmul.bf16.gmra.mxu0 %v3202
  %v3265 = vpop.f32.mrf.mxu0
  %v3266 = vadd.f32 0.0, %v3265
  %v3267 = vpop.f32.mrf.mxu0
  %3268 = vdwg.mxu0
  %3269 = vmatpush.bf16.msra.mxu0 %v1519
  %3270 = vmatpush.bf16.msra.mxu0 %v1513
  %3271 = vmatpush.bf16.msra.mxu0 %v1507
  %3272 = vmatpush.bf16.msra.mxu0 %v1501
  %3273 = vmatpush.bf16.msra.mxu0 %v1495
  %3274 = vmatpush.bf16.msra.mxu0 %v1489
  %3275 = vmatpush.bf16.msra.mxu0 %v1483
  %3276 = vmatpush.bf16.msra.mxu0 %v1477
  %3277 = vmatmul.bf16.gmra.mxu0 %v3203
  %v3278 = vpop.f32.mrf.mxu0
  %v3279 = vadd.f32 %v3266, %v3278
  %v3280 = vpop.f32.mrf.mxu0
  %3281 = vdwg.mxu0
  %3282 = vmatpush.bf16.msra.mxu0 %v1472
  %3283 = vmatpush.bf16.msra.mxu0 %v1466
  %3284 = vmatpush.bf16.msra.mxu0 %v1460
  %3285 = vmatpush.bf16.msra.mxu0 %v1454
  %3286 = vmatpush.bf16.msra.mxu0 %v1448
  %3287 = vmatpush.bf16.msra.mxu0 %v1442
  %3288 = vmatpush.bf16.msra.mxu0 %v1436
  %3289 = vmatpush.bf16.msra.mxu0 %v1430
  %3290 = vmatmul.bf16.gmra.mxu0 %v3202
  %v3291 = vpop.f32.mrf.mxu0
  %v3292 = vadd.f32 0.0, %v3291
  %v3293 = vpop.f32.mrf.mxu0
  %3294 = vdwg.mxu0
  %3295 = vmatpush.bf16.msra.mxu0 %v1520
  %3296 = vmatpush.bf16.msra.mxu0 %v1514
  %3297 = vmatpush.bf16.msra.mxu0 %v1508
  %3298 = vmatpush.bf16.msra.mxu0 %v1502
  %3299 = vmatpush.bf16.msra.mxu0 %v1496
  %3300 = vmatpush.bf16.msra.mxu0 %v1490
  %3301 = vmatpush.bf16.msra.mxu0 %v1484
  %3302 = vmatpush.bf16.msra.mxu0 %v1478
  %3303 = vmatmul.bf16.gmra.mxu0 %v3203
  %v3304 = vpop.f32.mrf.mxu0
  %v3305 = vadd.f32 %v3292, %v3304
  %v3306 = vpop.f32.mrf.mxu0
  %3307 = vdwg.mxu0
  %3308 = vmatpush.bf16.msra.mxu0 %v1473
  %3309 = vmatpush.bf16.msra.mxu0 %v1467
  %3310 = vmatpush.bf16.msra.mxu0 %v1461
  %3311 = vmatpush.bf16.msra.mxu0 %v1455
  %3312 = vmatpush.bf16.msra.mxu0 %v1449
  %3313 = vmatpush.bf16.msra.mxu0 %v1443
  %3314 = vmatpush.bf16.msra.mxu0 %v1437
  %3315 = vmatpush.bf16.msra.mxu0 %v1431
  %3316 = vmatmul.bf16.gmra.mxu0 %v3202
  %v3317 = vpop.f32.mrf.mxu0
  %v3318 = vadd.f32 0.0, %v3317
  %v3319 = vpop.f32.mrf.mxu0
  %3320 = vdwg.mxu0
  %3321 = vmatpush.bf16.msra.mxu0 %v1521
  %3322 = vmatpush.bf16.msra.mxu0 %v1515
  %3323 = vmatpush.bf16.msra.mxu0 %v1509
  %3324 = vmatpush.bf16.msra.mxu0 %v1503
  %3325 = vmatpush.bf16.msra.mxu0 %v1497
  %3326 = vmatpush.bf16.msra.mxu0 %v1491
  %3327 = vmatpush.bf16.msra.mxu0 %v1485
  %3328 = vmatpush.bf16.msra.mxu0 %v1479
  %3329 = vmatmul.bf16.gmra.mxu0 %v3203
  %v3330 = vpop.f32.mrf.mxu0
  %v3331 = vadd.f32 %v3318, %v3330
  %v3332 = vpop.f32.mrf.mxu0
  %3333 = vdwg.mxu0
  %3334 = vmatpush.bf16.msra.mxu0 %v1474
  %3335 = vmatpush.bf16.msra.mxu0 %v1468
  %3336 = vmatpush.bf16.msra.mxu0 %v1462
  %3337 = vmatpush.bf16.msra.mxu0 %v1456
  %3338 = vmatpush.bf16.msra.mxu0 %v1450
  %3339 = vmatpush.bf16.msra.mxu0 %v1444
  %3340 = vmatpush.bf16.msra.mxu0 %v1438
  %3341 = vmatpush.bf16.msra.mxu0 %v1432
  %3342 = vmatmul.bf16.gmra.mxu0 %v3202
  %v3343 = vpop.f32.mrf.mxu0
  %v3344 = vadd.f32 0.0, %v3343
  %v3345 = vpop.f32.mrf.mxu0
  %3346 = vdwg.mxu0
  %3347 = vmatpush.bf16.msra.mxu0 %v1522
  %3348 = vmatpush.bf16.msra.mxu0 %v1516
  %3349 = vmatpush.bf16.msra.mxu0 %v1510
  %3350 = vmatpush.bf16.msra.mxu0 %v1504
  %3351 = vmatpush.bf16.msra.mxu0 %v1498
  %3352 = vmatpush.bf16.msra.mxu0 %v1492
  %3353 = vmatpush.bf16.msra.mxu0 %v1486
  %3354 = vmatpush.bf16.msra.mxu0 %v1480
  %3355 = vmatmul.bf16.gmra.mxu0 %v3203
  %v3356 = vpop.f32.mrf.mxu0
  %v3357 = vadd.f32 %v3344, %v3356
  %v3358 = vpop.f32.mrf.mxu0
  %3359 = vdwg.mxu0
  %v3360 = vadd.f32 %v3196, %v3227
  %v3361 = vadd.f32 %v3197, %v3253
  %v3362 = vadd.f32 %v3198, %v3279
  %v3363 = vadd.f32 %v3199, %v3305
  %v3364 = vxor.u32 %v3360, 2147483648
  %v3365 = vxor.u32 %v3361, 2147483648
  %v3366 = vxor.u32 %v3362, 2147483648
  %v3367 = vxor.u32 %v3363, 2147483648
  %v3368 = vmul.f32 %v3364, 1.442695
  %v3369 = vpow.pop %v3368
  %v3370 = vmul.f32 %v3365, 1.442695
  %v3371 = vpow.pop %v3370
  %v3372 = vmul.f32 %v3366, 1.442695
  %v3373 = vpow.pop %v3372
  %v3374 = vmul.f32 %v3367, 1.442695
  %v3375 = vpow.pop %v3374
  %v3376 = vadd.f32 %v3369, 1.0
  %v3377 = vadd.f32 %v3371, 1.0
  %v3378 = vadd.f32 %v3373, 1.0
  %v3379 = vadd.f32 %v3375, 1.0
  %v3380 = vrcp.pop %v3376
  %v3381 = vmul.f32 %v3376, %v3380
  %v3382 = vsub.f32 1.0, %v3381
  %v3383 = vmul.f32 %v3380, %v3382
  %v3384 = vadd.f32 %v3380, %v3383
  %vm3385 = vweird.f32 %v3376
  %vm3386 = vweird.f32 %v3380
  %vm3387 = vmor %vm3385, %vm3386
  %v3388 = vsel %vm3387, %v3380, %v3384
  %v3389 = vand.u32 2147483647, %v3376
  %vm3390 = vcmp.eq.f32.partialorder %v3389, 8.507059e+37
  %v3391 = vand.u32 %v3376, 2147483648
  %v3392 = vor.u32 1.1754944e-38, %v3391
  %v3393 = vsel %vm3390, %v3392, %v3388
  %v3394 = vmul.f32 1.0, %v3393
  %v3395 = vrcp.pop %v3377
  %v3396 = vmul.f32 %v3377, %v3395
  %v3397 = vsub.f32 1.0, %v3396
  %v3398 = vmul.f32 %v3395, %v3397
  %v3399 = vadd.f32 %v3395, %v3398
  %vm3400 = vweird.f32 %v3377
  %vm3401 = vweird.f32 %v3395
  %vm3402 = vmor %vm3400, %vm3401
  %v3403 = vsel %vm3402, %v3395, %v3399
  %v3404 = vand.u32 2147483647, %v3377
  %vm3405 = vcmp.eq.f32.partialorder %v3404, 8.507059e+37
  %v3406 = vand.u32 %v3377, 2147483648
  %v3407 = vor.u32 1.1754944e-38, %v3406
  %v3408 = vsel %vm3405, %v3407, %v3403
  %v3409 = vmul.f32 1.0, %v3408
  %v3410 = vrcp.pop %v3378
  %v3411 = vmul.f32 %v3378, %v3410
  %v3412 = vsub.f32 1.0, %v3411
  %v3413 = vmul.f32 %v3410, %v3412
  %v3414 = vadd.f32 %v3410, %v3413
  %vm3415 = vweird.f32 %v3378
  %vm3416 = vweird.f32 %v3410
  %vm3417 = vmor %vm3415, %vm3416
  %v3418 = vsel %vm3417, %v3410, %v3414
  %v3419 = vand.u32 2147483647, %v3378
  %vm3420 = vcmp.eq.f32.partialorder %v3419, 8.507059e+37
  %v3421 = vand.u32 %v3378, 2147483648
  %v3422 = vor.u32 1.1754944e-38, %v3421
  %v3423 = vsel %vm3420, %v3422, %v3418
  %v3424 = vmul.f32 1.0, %v3423
  %v3425 = vrcp.pop %v3379
  %v3426 = vmul.f32 %v3379, %v3425
  %v3427 = vsub.f32 1.0, %v3426
  %v3428 = vmul.f32 %v3425, %v3427
  %v3429 = vadd.f32 %v3425, %v3428
  %vm3430 = vweird.f32 %v3379
  %vm3431 = vweird.f32 %v3425
  %vm3432 = vmor %vm3430, %vm3431
  %v3433 = vsel %vm3432, %v3425, %v3429
  %v3434 = vand.u32 2147483647, %v3379
  %vm3435 = vcmp.eq.f32.partialorder %v3434, 8.507059e+37
  %v3436 = vand.u32 %v3379, 2147483648
  %v3437 = vor.u32 1.1754944e-38, %v3436
  %v3438 = vsel %vm3435, %v3437, %v3433
  %v3439 = vmul.f32 1.0, %v3438
  %v3440 = vadd.f32 %v3331, %v1129
  %v3441 = vadd.f32 %v3357, %v1130
  %v3442 = vmul.f32 %v3394, %v3440
  %v3443 = vmul.f32 %v3409, %v3441
  %v3444 = vadd.f32 %v3200, %v3442
  %v3445 = vadd.f32 %v3201, %v3443
  %v3446 = vtanh.pop %v3444
  %v3447 = vtanh.pop %v3445
  %v3448 = vsub.f32 1.0, %v3424
  %v3449 = vsub.f32 1.0, %v3439
  %v3450 = vmul.f32 %v3448, %v3446
  %v3451 = vmul.f32 %v3449, %v3447
  %v3452 = vmul.f32 %v3424, %v3191
  %v3453 = vmul.f32 %v3439, %v3192
  %v3454 = vadd.f32 %v3450, %v3452
  %v3455 = vadd.f32 %v3451, %v3453
  %3456 = vst [vmem:[%s2137] sm:$0xff] %v3454
  %3457 = vst [vmem:[%s2135 + $0x8] sm:$0xff] %v3455
  %s3458 = scalar_lea.vmem [#allocation2], 336
  %v3459 = vld [vmem:[%s3458] sm:$0xff]
  %v3460 = vld [vmem:[%s3458 + $0x8] sm:$0xff]
  %v3461 = vld [vmem:[%s3458 + $0x10] sm:$0xff]
  %v3462 = vld [vmem:[%s3458 + $0x18] sm:$0xff]
  %v3463 = vld [vmem:[%s3458 + $0x20] sm:$0xff]
  %v3464 = vld [vmem:[%s3458 + $0x28] sm:$0xff]
  %v3465 = vpack.c.bf16 %v3454, %v3454
  %v3466 = vpack.c.bf16 %v3455, %v3455
  %3467 = vmatpush.bf16.msra.mxu0 %v1469
  %3468 = vmatpush.bf16.msra.mxu0 %v1463
  %3469 = vmatpush.bf16.msra.mxu0 %v1457
  %3470 = vmatpush.bf16.msra.mxu0 %v1451
  %3471 = vmatpush.bf16.msra.mxu0 %v1445
  %3472 = vmatpush.bf16.msra.mxu0 %v1439
  %3473 = vmatpush.bf16.msra.mxu0 %v1433
  %3474 = vmatpush.bf16.msra.mxu0 %v1427
  %3475 = vmatmul.bf16.gmra.mxu0 %v3465
  %v3476 = vpop.f32.mrf.mxu0
  %v3477 = vadd.f32 0.0, %v3476
  %v3478 = vpop.f32.mrf.mxu0
  %3479 = vdwg.mxu0
  %3480 = vmatpush.bf16.msra.mxu0 %v1517
  %3481 = vmatpush.bf16.msra.mxu0 %v1511
  %3482 = vmatpush.bf16.msra.mxu0 %v1505
  %3483 = vmatpush.bf16.msra.mxu0 %v1499
  %3484 = vmatpush.bf16.msra.mxu0 %v1493
  %3485 = vmatpush.bf16.msra.mxu0 %v1487
  %3486 = vmatpush.bf16.msra.mxu0 %v1481
  %3487 = vmatpush.bf16.msra.mxu0 %v1475
  %3488 = vmatmul.bf16.gmra.mxu0 %v3466
  %v3489 = vpop.f32.mrf.mxu0
  %v3490 = vadd.f32 %v3477, %v3489
  %v3491 = vpop.f32.mrf.mxu0
  %3492 = vdwg.mxu0
  %3493 = vmatpush.bf16.msra.mxu0 %v1470
  %3494 = vmatpush.bf16.msra.mxu0 %v1464
  %3495 = vmatpush.bf16.msra.mxu0 %v1458
  %3496 = vmatpush.bf16.msra.mxu0 %v1452
  %3497 = vmatpush.bf16.msra.mxu0 %v1446
  %3498 = vmatpush.bf16.msra.mxu0 %v1440
  %3499 = vmatpush.bf16.msra.mxu0 %v1434
  %3500 = vmatpush.bf16.msra.mxu0 %v1428
  %3501 = vmatmul.bf16.gmra.mxu0 %v3465
  %v3502 = vpop.f32.mrf.mxu0
  %v3503 = vadd.f32 0.0, %v3502
  %v3504 = vpop.f32.mrf.mxu0
  %3505 = vdwg.mxu0
  %3506 = vmatpush.bf16.msra.mxu0 %v1518
  %3507 = vmatpush.bf16.msra.mxu0 %v1512
  %3508 = vmatpush.bf16.msra.mxu0 %v1506
  %3509 = vmatpush.bf16.msra.mxu0 %v1500
  %3510 = vmatpush.bf16.msra.mxu0 %v1494
  %3511 = vmatpush.bf16.msra.mxu0 %v1488
  %3512 = vmatpush.bf16.msra.mxu0 %v1482
  %3513 = vmatpush.bf16.msra.mxu0 %v1476
  %3514 = vmatmul.bf16.gmra.mxu0 %v3466
  %v3515 = vpop.f32.mrf.mxu0
  %v3516 = vadd.f32 %v3503, %v3515
  %v3517 = vpop.f32.mrf.mxu0
  %3518 = vdwg.mxu0
  %3519 = vmatpush.bf16.msra.mxu0 %v1471
  %3520 = vmatpush.bf16.msra.mxu0 %v1465
  %3521 = vmatpush.bf16.msra.mxu0 %v1459
  %3522 = vmatpush.bf16.msra.mxu0 %v1453
  %3523 = vmatpush.bf16.msra.mxu0 %v1447
  %3524 = vmatpush.bf16.msra.mxu0 %v1441
  %3525 = vmatpush.bf16.msra.mxu0 %v1435
  %3526 = vmatpush.bf16.msra.mxu0 %v1429
  %3527 = vmatmul.bf16.gmra.mxu0 %v3465
  %v3528 = vpop.f32.mrf.mxu0
  %v3529 = vadd.f32 0.0, %v3528
  %v3530 = vpop.f32.mrf.mxu0
  %3531 = vdwg.mxu0
  %3532 = vmatpush.bf16.msra.mxu0 %v1519
  %3533 = vmatpush.bf16.msra.mxu0 %v1513
  %3534 = vmatpush.bf16.msra.mxu0 %v1507
  %3535 = vmatpush.bf16.msra.mxu0 %v1501
  %3536 = vmatpush.bf16.msra.mxu0 %v1495
  %3537 = vmatpush.bf16.msra.mxu0 %v1489
  %3538 = vmatpush.bf16.msra.mxu0 %v1483
  %3539 = vmatpush.bf16.msra.mxu0 %v1477
  %3540 = vmatmul.bf16.gmra.mxu0 %v3466
  %v3541 = vpop.f32.mrf.mxu0
  %v3542 = vadd.f32 %v3529, %v3541
  %v3543 = vpop.f32.mrf.mxu0
  %3544 = vdwg.mxu0
  %3545 = vmatpush.bf16.msra.mxu0 %v1472
  %3546 = vmatpush.bf16.msra.mxu0 %v1466
  %3547 = vmatpush.bf16.msra.mxu0 %v1460
  %3548 = vmatpush.bf16.msra.mxu0 %v1454
  %3549 = vmatpush.bf16.msra.mxu0 %v1448
  %3550 = vmatpush.bf16.msra.mxu0 %v1442
  %3551 = vmatpush.bf16.msra.mxu0 %v1436
  %3552 = vmatpush.bf16.msra.mxu0 %v1430
  %3553 = vmatmul.bf16.gmra.mxu0 %v3465
  %v3554 = vpop.f32.mrf.mxu0
  %v3555 = vadd.f32 0.0, %v3554
  %v3556 = vpop.f32.mrf.mxu0
  %3557 = vdwg.mxu0
  %3558 = vmatpush.bf16.msra.mxu0 %v1520
  %3559 = vmatpush.bf16.msra.mxu0 %v1514
  %3560 = vmatpush.bf16.msra.mxu0 %v1508
  %3561 = vmatpush.bf16.msra.mxu0 %v1502
  %3562 = vmatpush.bf16.msra.mxu0 %v1496
  %3563 = vmatpush.bf16.msra.mxu0 %v1490
  %3564 = vmatpush.bf16.msra.mxu0 %v1484
  %3565 = vmatpush.bf16.msra.mxu0 %v1478
  %3566 = vmatmul.bf16.gmra.mxu0 %v3466
  %v3567 = vpop.f32.mrf.mxu0
  %v3568 = vadd.f32 %v3555, %v3567
  %v3569 = vpop.f32.mrf.mxu0
  %3570 = vdwg.mxu0
  %3571 = vmatpush.bf16.msra.mxu0 %v1473
  %3572 = vmatpush.bf16.msra.mxu0 %v1467
  %3573 = vmatpush.bf16.msra.mxu0 %v1461
  %3574 = vmatpush.bf16.msra.mxu0 %v1455
  %3575 = vmatpush.bf16.msra.mxu0 %v1449
  %3576 = vmatpush.bf16.msra.mxu0 %v1443
  %3577 = vmatpush.bf16.msra.mxu0 %v1437
  %3578 = vmatpush.bf16.msra.mxu0 %v1431
  %3579 = vmatmul.bf16.gmra.mxu0 %v3465
  %v3580 = vpop.f32.mrf.mxu0
  %v3581 = vadd.f32 0.0, %v3580
  %v3582 = vpop.f32.mrf.mxu0
  %3583 = vdwg.mxu0
  %3584 = vmatpush.bf16.msra.mxu0 %v1521
  %3585 = vmatpush.bf16.msra.mxu0 %v1515
  %3586 = vmatpush.bf16.msra.mxu0 %v1509
  %3587 = vmatpush.bf16.msra.mxu0 %v1503
  %3588 = vmatpush.bf16.msra.mxu0 %v1497
  %3589 = vmatpush.bf16.msra.mxu0 %v1491
  %3590 = vmatpush.bf16.msra.mxu0 %v1485
  %3591 = vmatpush.bf16.msra.mxu0 %v1479
  %3592 = vmatmul.bf16.gmra.mxu0 %v3466
  %v3593 = vpop.f32.mrf.mxu0
  %v3594 = vadd.f32 %v3581, %v3593
  %v3595 = vpop.f32.mrf.mxu0
  %3596 = vdwg.mxu0
  %3597 = vmatpush.bf16.msra.mxu0 %v1474
  %3598 = vmatpush.bf16.msra.mxu0 %v1468
  %3599 = vmatpush.bf16.msra.mxu0 %v1462
  %3600 = vmatpush.bf16.msra.mxu0 %v1456
  %3601 = vmatpush.bf16.msra.mxu0 %v1450
  %3602 = vmatpush.bf16.msra.mxu0 %v1444
  %3603 = vmatpush.bf16.msra.mxu0 %v1438
  %3604 = vmatpush.bf16.msra.mxu0 %v1432
  %3605 = vmatmul.bf16.gmra.mxu0 %v3465
  %v3606 = vpop.f32.mrf.mxu0
  %v3607 = vadd.f32 0.0, %v3606
  %v3608 = vpop.f32.mrf.mxu0
  %3609 = vdwg.mxu0
  %3610 = vmatpush.bf16.msra.mxu0 %v1522
  %3611 = vmatpush.bf16.msra.mxu0 %v1516
  %3612 = vmatpush.bf16.msra.mxu0 %v1510
  %3613 = vmatpush.bf16.msra.mxu0 %v1504
  %3614 = vmatpush.bf16.msra.mxu0 %v1498
  %3615 = vmatpush.bf16.msra.mxu0 %v1492
  %3616 = vmatpush.bf16.msra.mxu0 %v1486
  %3617 = vmatpush.bf16.msra.mxu0 %v1480
  %3618 = vmatmul.bf16.gmra.mxu0 %v3466
  %v3619 = vpop.f32.mrf.mxu0
  %v3620 = vadd.f32 %v3607, %v3619
  %v3621 = vpop.f32.mrf.mxu0
  %3622 = vdwg.mxu0
  %v3623 = vadd.f32 %v3459, %v3490
  %v3624 = vadd.f32 %v3460, %v3516
  %v3625 = vadd.f32 %v3461, %v3542
  %v3626 = vadd.f32 %v3462, %v3568
  %v3627 = vxor.u32 %v3623, 2147483648
  %v3628 = vxor.u32 %v3624, 2147483648
  %v3629 = vxor.u32 %v3625, 2147483648
  %v3630 = vxor.u32 %v3626, 2147483648
  %v3631 = vmul.f32 %v3627, 1.442695
  %v3632 = vpow.pop %v3631
  %v3633 = vmul.f32 %v3628, 1.442695
  %v3634 = vpow.pop %v3633
  %v3635 = vmul.f32 %v3629, 1.442695
  %v3636 = vpow.pop %v3635
  %v3637 = vmul.f32 %v3630, 1.442695
  %v3638 = vpow.pop %v3637
  %v3639 = vadd.f32 %v3632, 1.0
  %v3640 = vadd.f32 %v3634, 1.0
  %v3641 = vadd.f32 %v3636, 1.0
  %v3642 = vadd.f32 %v3638, 1.0
  %v3643 = vrcp.pop %v3639
  %v3644 = vmul.f32 %v3639, %v3643
  %v3645 = vsub.f32 1.0, %v3644
  %v3646 = vmul.f32 %v3643, %v3645
  %v3647 = vadd.f32 %v3643, %v3646
  %vm3648 = vweird.f32 %v3639
  %vm3649 = vweird.f32 %v3643
  %vm3650 = vmor %vm3648, %vm3649
  %v3651 = vsel %vm3650, %v3643, %v3647
  %v3652 = vand.u32 2147483647, %v3639
  %vm3653 = vcmp.eq.f32.partialorder %v3652, 8.507059e+37
  %v3654 = vand.u32 %v3639, 2147483648
  %v3655 = vor.u32 1.1754944e-38, %v3654
  %v3656 = vsel %vm3653, %v3655, %v3651
  %v3657 = vmul.f32 1.0, %v3656
  %v3658 = vrcp.pop %v3640
  %v3659 = vmul.f32 %v3640, %v3658
  %v3660 = vsub.f32 1.0, %v3659
  %v3661 = vmul.f32 %v3658, %v3660
  %v3662 = vadd.f32 %v3658, %v3661
  %vm3663 = vweird.f32 %v3640
  %vm3664 = vweird.f32 %v3658
  %vm3665 = vmor %vm3663, %vm3664
  %v3666 = vsel %vm3665, %v3658, %v3662
  %v3667 = vand.u32 2147483647, %v3640
  %vm3668 = vcmp.eq.f32.partialorder %v3667, 8.507059e+37
  %v3669 = vand.u32 %v3640, 2147483648
  %v3670 = vor.u32 1.1754944e-38, %v3669
  %v3671 = vsel %vm3668, %v3670, %v3666
  %v3672 = vmul.f32 1.0, %v3671
  %v3673 = vrcp.pop %v3641
  %v3674 = vmul.f32 %v3641, %v3673
  %v3675 = vsub.f32 1.0, %v3674
  %v3676 = vmul.f32 %v3673, %v3675
  %v3677 = vadd.f32 %v3673, %v3676
  %vm3678 = vweird.f32 %v3641
  %vm3679 = vweird.f32 %v3673
  %vm3680 = vmor %vm3678, %vm3679
  %v3681 = vsel %vm3680, %v3673, %v3677
  %v3682 = vand.u32 2147483647, %v3641
  %vm3683 = vcmp.eq.f32.partialorder %v3682, 8.507059e+37
  %v3684 = vand.u32 %v3641, 2147483648
  %v3685 = vor.u32 1.1754944e-38, %v3684
  %v3686 = vsel %vm3683, %v3685, %v3681
  %v3687 = vmul.f32 1.0, %v3686
  %v3688 = vrcp.pop %v3642
  %v3689 = vmul.f32 %v3642, %v3688
  %v3690 = vsub.f32 1.0, %v3689
  %v3691 = vmul.f32 %v3688, %v3690
  %v3692 = vadd.f32 %v3688, %v3691
  %vm3693 = vweird.f32 %v3642
  %vm3694 = vweird.f32 %v3688
  %vm3695 = vmor %vm3693, %vm3694
  %v3696 = vsel %vm3695, %v3688, %v3692
  %v3697 = vand.u32 2147483647, %v3642
  %vm3698 = vcmp.eq.f32.partialorder %v3697, 8.507059e+37
  %v3699 = vand.u32 %v3642, 2147483648
  %v3700 = vor.u32 1.1754944e-38, %v3699
  %v3701 = vsel %vm3698, %v3700, %v3696
  %v3702 = vmul.f32 1.0, %v3701
  %v3703 = vadd.f32 %v3594, %v1129
  %v3704 = vadd.f32 %v3620, %v1130
  %v3705 = vmul.f32 %v3657, %v3703
  %v3706 = vmul.f32 %v3672, %v3704
  %v3707 = vadd.f32 %v3463, %v3705
  %v3708 = vadd.f32 %v3464, %v3706
  %v3709 = vtanh.pop %v3707
  %v3710 = vtanh.pop %v3708
  %v3711 = vsub.f32 1.0, %v3687
  %v3712 = vsub.f32 1.0, %v3702
  %v3713 = vmul.f32 %v3711, %v3709
  %v3714 = vmul.f32 %v3712, %v3710
  %v3715 = vmul.f32 %v3687, %v3454
  %v3716 = vmul.f32 %v3702, %v3455
  %v3717 = vadd.f32 %v3713, %v3715
  %v3718 = vadd.f32 %v3714, %v3716
  %3719 = vst [vmem:[%s1872] sm:$0xff] %v3717
  %3720 = vst [vmem:[%s5 + $0x8] sm:$0xff] %v3718
  // Predicated region
  $region22: #{word_encoder_forward.1} parent=0 // pred_check
    _
  $region23: #{word_encoder_forward.1} parent=0 // pred_check_branch
    %3722 = sbr.rel (0) target = $region25
  $region24: #{word_encoder_forward.1} parent=0 // pred_region
    _
  $region25: #{word_encoder_forward.1} parent=0 // pred_fallthru
    _
  // Predicated region
  $region26: #{word_encoder_forward.1} parent=0 // pred_check
    _
  $region27: #{word_encoder_forward.1} parent=0 // pred_check_branch
    %3724 = sbr.rel (0) target = $region29
  $region28: #{word_encoder_forward.1} parent=0 // pred_region
    _
  $region29: #{word_encoder_forward.1} parent=0 // pred_fallthru
    _

</llo_original>
